<compile_context>
chip_gen: v7x
topology: tpu7x:2x2x1
jax: 0.10.0
libtpu: 0.0.40
codegen_flags: <defaults>
</compile_context>

<pallas_src>
import functools

import jax
import jax.numpy as jnp
from jax import lax
from jax.experimental import pallas as pl
from jax.experimental.pallas import tpu as pltpu


_PADL = 8   # left zero-pad columns in the scratch; 8 keeps interior stores sublane-aligned


# ---------------- fused kernel ----------------

def _fused_block_kernel(x_ref, w1_ref, w2_ref, s1_ref, b1_ref, s2_ref, b2_ref,
                        o_ref, h1p_ref, *, H, W, TILE_H, dot_dtype):
    # x_ref  : (1, H, W, Cin)            whole image, resident per batch index
    # w1_ref : (Cin, Cmid)               1x1 conv weight
    # w2_ref : (9, Cmid, Cout)           3x3 conv taps, tap-major (dy*3+dx)
    # s*/b*  : (1, C)                    folded BatchNorm scale / bias
    # o_ref  : (1, TILE_H, W, Cout)      one row tile of the output
    # h1p_ref: (TILE_H+2, W+2*_PADL, Cmid) f32 scratch: zero-padded h1 tile (+1-row halo)
    i = pl.program_id(1)
    row0 = pl.multiple_of(i * TILE_H, TILE_H)

    Cin = x_ref.shape[-1]
    Cmid = w1_ref.shape[-1]
    Cout = o_ref.shape[-1]

    w1 = w1_ref[...].astype(dot_dtype)
    s1 = s1_ref[...]
    b1 = b1_ref[...]

    def conv1(x2d):  # (M, Cin) -> (M, Cmid): 1x1 conv + BN + LeakyReLU(0.1), f32 out
        h = jnp.dot(x2d.astype(dot_dtype), w1, preferred_element_type=jnp.float32)
        h = h * s1 + b1
        return jnp.where(h >= 0, h, 0.1 * h)

    # Reset the padded scratch: borders must be zero (that's the conv2 pad=1 halo).
    h1p_ref[...] = jnp.zeros_like(h1p_ref)

    # --- stage 1: 1x1 conv + BN + LeakyReLU for this tile's rows (M = TILE_H*W) ---
    x_mid = x_ref[0, pl.ds(row0, TILE_H), :, :]                    # (TILE_H, W, Cin)
    h_mid = conv1(x_mid.reshape(TILE_H * W, Cin))                  # (TILE_H*W, Cmid)
    h1p_ref[1:1 + TILE_H, _PADL:_PADL + W, :] = h_mid.reshape(TILE_H, W, Cmid)

    # 1-row halos: recomputed from x (cheap) so h1 never round-trips HBM.
    @pl.when(row0 > 0)
    def _():
        x_top = x_ref[0, pl.ds(row0 - 1, 1), :, :]                 # (1, W, Cin)
        h1p_ref[0, _PADL:_PADL + W, :] = conv1(x_top.reshape(W, Cin))

    @pl.when(row0 + TILE_H < H)
    def _():
        x_bot = x_ref[0, pl.ds(row0 + TILE_H, 1), :, :]            # (1, W, Cin)
        h1p_ref[TILE_H + 1, _PADL:_PADL + W, :] = conv1(x_bot.reshape(W, Cin))

    # --- stage 2: 3x3 conv as 9 shifted matmuls over the padded scratch ---
    w2 = w2_ref[...].astype(dot_dtype)                             # (9, Cmid, Cout)
    acc = jnp.zeros((TILE_H * W, Cout), jnp.float32)
    for dy in range(3):
        rows = h1p_ref[dy:dy + TILE_H, :, :]                       # aligned (TILE_H, W+16, Cmid)
        for dx in range(3):
            win = rows[:, _PADL - 1 + dx:_PADL - 1 + dx + W, :]    # (TILE_H, W, Cmid)
            acc = acc + jnp.dot(win.reshape(TILE_H * W, Cmid).astype(dot_dtype),
                                w2[dy * 3 + dx],
                                preferred_element_type=jnp.float32)

    # BN2 + LeakyReLU(0.1) + residual add (Cout == Cin), all in f32.
    y = acc * s2_ref[...] + b2_ref[...]
    y = jnp.where(y >= 0, y, 0.1 * y)
    y = y + x_mid.reshape(TILE_H * W, Cin).astype(jnp.float32)
    o_ref[0] = y.reshape(TILE_H, W, Cout).astype(o_ref.dtype)


# ---------------- wrappers ----------------

def block_forward_nhwc(x_nhwc, w1, w2, s1, b1, s2, b2, *,
                       tile_h=8, dot_dtype=jnp.float32):
    """Fused Block forward on NHWC input.  x_nhwc: (N, H, W, Cin) f32."""
    N, H, W, Cin = x_nhwc.shape
    Cmid = w1.shape[1]
    Cout = w2.shape[3]
    assert Cout == Cin, "residual add requires planes[1] == inplanes"
    assert W % 8 == 0, "W must be a multiple of 8 (sublane tiling)"
    tile_h = min(tile_h, H)
    assert H % tile_h == 0, "H must be divisible by tile_h"

    w2r = w2.reshape(9, Cmid, Cout).astype(jnp.float32)
    s1r = s1.reshape(1, Cmid).astype(jnp.float32)
    b1r = b1.reshape(1, Cmid).astype(jnp.float32)
    s2r = s2.reshape(1, Cout).astype(jnp.float32)
    b2r = b2.reshape(1, Cout).astype(jnp.float32)

    kernel = functools.partial(_fused_block_kernel, H=H, W=W, TILE_H=tile_h,
                               dot_dtype=dot_dtype)
    return pl.pallas_call(
        kernel,
        out_shape=jax.ShapeDtypeStruct((N, H, W, Cout), jnp.float32),
        grid=(N, H // tile_h),
        in_specs=[
            # Whole image per batch index (resident across the row-tile axis).
            # TODO(synk): for large H*W (v7x 64 MiB VMEM) switch to row-window manual DMA.
            pl.BlockSpec((1, H, W, Cin), lambda b, i: (b, 0, 0, 0)),
            pl.BlockSpec((Cin, Cmid), lambda b, i: (0, 0)),
            pl.BlockSpec((9, Cmid, Cout), lambda b, i: (0, 0, 0)),
            pl.BlockSpec((1, Cmid), lambda b, i: (0, 0)),
            pl.BlockSpec((1, Cmid), lambda b, i: (0, 0)),
            pl.BlockSpec((1, Cout), lambda b, i: (0, 0)),
            pl.BlockSpec((1, Cout), lambda b, i: (0, 0)),
        ],
        out_specs=pl.BlockSpec((1, tile_h, W, Cout), lambda b, i: (b, i, 0, 0)),
        scratch_shapes=[pltpu.VMEM((tile_h + 2, W + 2 * _PADL, Cmid), jnp.float32)],
        compiler_params=pltpu.CompilerParams(
            dimension_semantics=("parallel", "parallel")),
    )(x_nhwc, w1.astype(jnp.float32), w2r, s1r, b1r, s2r, b2r)


def block_forward(x_nchw, w1, w2, s1, b1, s2, b2, **kw):
    """PyTorch-layout wrapper: x_nchw (N, Cin, H, W) -> (N, Cout, H, W).
    The NCHW<->NHWC transposes are interface glue; keep the surrounding model in
    NHWC and call block_forward_nhwc directly to avoid these two extra HBM passes."""
    x = jnp.transpose(x_nchw, (0, 2, 3, 1))
    out = block_forward_nhwc(x, w1, w2, s1, b1, s2, b2, **kw)
    return jnp.transpose(out, (0, 3, 1, 2))


# ---------------- reference (plain JAX) ----------------

def ref_forward(x_nchw, w1, w2, s1, b1, s2, b2):
    x = jnp.transpose(x_nchw, (0, 2, 3, 1))        # NHWC
    h = jnp.einsum('nhwc,co->nhwo', x, w1)
    h = h * s1 + b1
    h = jnp.where(h >= 0, h, 0.1 * h)
    h2 = lax.conv_general_dilated(h, w2, (1, 1), 'SAME',
                                  dimension_numbers=('NHWC', 'HWIO', 'NHWC'))
    h2 = h2 * s2 + b2
    h2 = jnp.where(h2 >= 0, h2, 0.1 * h2)
    out = h2 + x
    return jnp.transpose(out, (0, 3, 1, 2))


def fold_bn(gamma, beta, mean, var, eps=1e-5):
    scale = gamma / jnp.sqrt(var + eps)
    bias = beta - mean * scale
    return scale, bias


if __name__ == "__main__":
    # Block(inplanes=8, planes=(4, 8)); residual add requires planes[1] == inplanes.
    N, Cin, H, W = 2, 8, 16, 16
    Cmid, Cout = 4, 8

    key = jax.random.PRNGKey(0)
    kx, k1, k2 = jax.random.split(key, 3)

    x = jax.random.normal(kx, (N, Cin, H, W), jnp.float32)

    # conv weights: (Cin, Cmid) for the 1x1, HWIO (3, 3, Cmid, Cout) for the 3x3.
    w1 = 0.1 * jax.random.normal(k1, (Cin, Cmid), jnp.float32)
    w2 = 0.1 * jax.random.normal(k2, (3, 3, Cmid, Cout), jnp.float32)

    # BatchNorm parameters (deterministic, non-trivial), folded to scale/bias.
    g1 = 1.0 + 0.10 * jnp.arange(Cmid, dtype=jnp.float32)
    bt1 = 0.05 * jnp.arange(Cmid, dtype=jnp.float32)
    m1 = 0.02 * jnp.arange(Cmid, dtype=jnp.float32)
    v1 = 1.0 + 0.05 * jnp.arange(Cmid, dtype=jnp.float32)
    g2 = 1.0 - 0.03 * jnp.arange(Cout, dtype=jnp.float32)
    bt2 = -0.04 * jnp.arange(Cout, dtype=jnp.float32)
    m2 = 0.01 * jnp.arange(Cout, dtype=jnp.float32)
    v2 = 0.8 + 0.02 * jnp.arange(Cout, dtype=jnp.float32)

    s1, b1 = fold_bn(g1, bt1, m1, v1)
    s2, b2 = fold_bn(g2, bt2, m2, v2)

    # tile_h=8 -> 2 row tiles per image: exercises the halo-recompute path.
    out = block_forward(x, w1, w2, s1, b1, s2, b2, tile_h=8, dot_dtype=jnp.float32)
    out = jax.block_until_ready(out)

    ref = ref_forward(x, w1, w2, s1, b1, s2, b2)
    assert out.shape == (N, Cin, H, W)
    assert jnp.allclose(out, ref, rtol=1e-4, atol=1e-4), \
        f"max abs err {jnp.max(jnp.abs(out - ref))}"

    print("KERNEL_OK")
</pallas_src>

<mosaic_0001>
module attributes {stable_mosaic.version = 11 : i64} {
  func.func @_fused_block_kernel(%arg0: i32, %arg1: i32, %arg2: memref<1x16x16x8xf32, #tpu.memory_space<vmem>>, %arg3: memref<8x4xf32, #tpu.memory_space<vmem>>, %arg4: memref<9x4x8xf32, #tpu.memory_space<vmem>>, %arg5: memref<1x4xf32, #tpu.memory_space<vmem>>, %arg6: memref<1x4xf32, #tpu.memory_space<vmem>>, %arg7: memref<1x8xf32, #tpu.memory_space<vmem>>, %arg8: memref<1x8xf32, #tpu.memory_space<vmem>>, %arg9: memref<1x8x16x8xf32, #tpu.memory_space<vmem>>, %arg10: memref<10x32x4xf32, #tpu.memory_space<vmem>>) attributes {dimension_semantics = [#tpu.dimension_semantics<parallel>, #tpu.dimension_semantics<parallel>], iteration_bounds = array<i64: 2, 2>, scalar_prefetch = 0 : i64, scratch_operands = 1 : i64, tpu.core_type = #tpu.core_type<tc>, window_params = [{transform_indices = @transform_0, window_bounds = array<i64: 1, 16, 16, 8>}, {pipeline_mode = #tpu.pipeline_mode<synchronous>, transform_indices = @transform_1, window_bounds = array<i64: 8, 4>}, {pipeline_mode = #tpu.pipeline_mode<synchronous>, transform_indices = @transform_2, window_bounds = array<i64: 9, 4, 8>}, {pipeline_mode = #tpu.pipeline_mode<synchronous>, transform_indices = @transform_3, window_bounds = array<i64: 1, 4>}, {pipeline_mode = #tpu.pipeline_mode<synchronous>, transform_indices = @transform_4, window_bounds = array<i64: 1, 4>}, {pipeline_mode = #tpu.pipeline_mode<synchronous>, transform_indices = @transform_5, window_bounds = array<i64: 1, 8>}, {pipeline_mode = #tpu.pipeline_mode<synchronous>, transform_indices = @transform_6, window_bounds = array<i64: 1, 8>}, {transform_indices = @transform_7, window_bounds = array<i64: 1, 8, 16, 8>}]} {
    %c8_i32 = arith.constant 8 : i32
    %0 = arith.muli %arg1, %c8_i32 : i32
    %1 = tpu.assume_multiple %0, 8 : i32
    %c0 = arith.constant 0 : index
    %c0_0 = arith.constant 0 : index
    %2 = vector.load %arg3[%c0, %c0_0] : memref<8x4xf32, #tpu.memory_space<vmem>>, vector<8x4xf32>
    %c0_1 = arith.constant 0 : index
    %c0_2 = arith.constant 0 : index
    %3 = vector.load %arg5[%c0_1, %c0_2] : memref<1x4xf32, #tpu.memory_space<vmem>>, vector<1x4xf32>
    %c0_3 = arith.constant 0 : index
    %c0_4 = arith.constant 0 : index
    %4 = vector.load %arg6[%c0_3, %c0_4] : memref<1x4xf32, #tpu.memory_space<vmem>>, vector<1x4xf32>
    %cst = arith.constant 0.000000e+00 : f32
    %5 = vector.broadcast %cst : f32 to vector<10x32x4xf32>
    %c0_5 = arith.constant 0 : index
    %c0_6 = arith.constant 0 : index
    %c0_7 = arith.constant 0 : index
    %6 = vector.load %arg10[%c0_5, %c0_6, %c0_7] : memref<10x32x4xf32, #tpu.memory_space<vmem>>, vector<10x32x4xf32>
    tpu.vector_store %arg10[%c0_5, %c0_6, %c0_7], %5 {strides = array<i32>} : memref<10x32x4xf32, #tpu.memory_space<vmem>>, vector<10x32x4xf32>,
    %c0_8 = arith.constant 0 : index
    %7 = arith.index_cast %1 : i32 to index
    %c0_9 = arith.constant 0 : index
    %c0_10 = arith.constant 0 : index
    %8 = vector.load %arg2[%c0_8, %7, %c0_9, %c0_10] : memref<1x16x16x8xf32, #tpu.memory_space<vmem>>, vector<1x8x16x8xf32>
    %9 = vector.shape_cast %8 : vector<1x8x16x8xf32> to vector<8x16x8xf32>
    %10 = vector.shape_cast %9 : vector<8x16x8xf32> to vector<128x8xf32>
    %cst_11 = arith.constant dense<0.000000e+00> : vector<128x4xf32>
    %11 = tpu.matmul %10, %2, %cst_11 {dimension_numbers = #tpu.dot_dimension_numbers<[1], [0], [0], [1], [0, 0, 1, 1], [], []>} : vector<128x8xf32>, vector<8x4xf32>, vector<128x4xf32> -> vector<128x4xf32>
    %12 = vector.broadcast %3 : vector<1x4xf32> to vector<128x4xf32>
    %13 = arith.mulf %11, %12 : vector<128x4xf32>
    %14 = vector.broadcast %4 : vector<1x4xf32> to vector<128x4xf32>
    %15 = arith.addf %13, %14 : vector<128x4xf32>
    %cst_12 = arith.constant 0.000000e+00 : f32
    %16 = vector.broadcast %cst_12 : f32 to vector<128x4xf32>
    %17 = arith.cmpf oge, %15, %16 : vector<128x4xf32>
    %cst_13 = arith.constant 1.000000e-01 : f32
    %18 = vector.broadcast %cst_13 : f32 to vector<128x4xf32>
    %19 = arith.mulf %18, %15 : vector<128x4xf32>
    %20 = arith.select %17, %15, %19 : vector<128x4xi1>, vector<128x4xf32>
    %21 = vector.shape_cast %20 : vector<128x4xf32> to vector<8x16x4xf32>
    %c1 = arith.constant 1 : index
    %c8 = arith.constant 8 : index
    %c0_14 = arith.constant 0 : index
    %22 = vector.load %arg10[%c1, %c8, %c0_14] : memref<10x32x4xf32, #tpu.memory_space<vmem>>, vector<8x16x4xf32>
    tpu.vector_store %arg10[%c1, %c8, %c0_14], %21 {strides = array<i32>} : memref<10x32x4xf32, #tpu.memory_space<vmem>>, vector<8x16x4xf32>,
    %c0_i32 = arith.constant 0 : i32
    %23 = arith.cmpi sgt, %1, %c0_i32 : i32
    %24 = arith.extui %23 : i1 to i32
    %c0_i32_15 = arith.constant 0 : i32
    %25 = arith.cmpi ne, %24, %c0_i32_15 : i32
    scf.if %25 {
      %c1_i32 = arith.constant 1 : i32
      %106 = arith.subi %1, %c1_i32 : i32
      %c0_49 = arith.constant 0 : index
      %107 = arith.index_cast %106 : i32 to index
      %c0_50 = arith.constant 0 : index
      %c0_51 = arith.constant 0 : index
      %108 = vector.load %arg2[%c0_49, %107, %c0_50, %c0_51] : memref<1x16x16x8xf32, #tpu.memory_space<vmem>>, vector<1x1x16x8xf32>
      %109 = vector.shape_cast %108 : vector<1x1x16x8xf32> to vector<1x16x8xf32>
      %110 = vector.shape_cast %109 : vector<1x16x8xf32> to vector<16x8xf32>
      %cst_52 = arith.constant dense<0.000000e+00> : vector<16x4xf32>
      %111 = tpu.matmul %110, %2, %cst_52 {dimension_numbers = #tpu.dot_dimension_numbers<[1], [0], [0], [1], [0, 0, 1, 1], [], []>} : vector<16x8xf32>, vector<8x4xf32>, vector<16x4xf32> -> vector<16x4xf32>
      %112 = vector.broadcast %3 : vector<1x4xf32> to vector<16x4xf32>
      %113 = arith.mulf %111, %112 : vector<16x4xf32>
      %114 = vector.broadcast %4 : vector<1x4xf32> to vector<16x4xf32>
      %115 = arith.addf %113, %114 : vector<16x4xf32>
      %cst_53 = arith.constant 0.000000e+00 : f32
      %116 = vector.broadcast %cst_53 : f32 to vector<16x4xf32>
      %117 = arith.cmpf oge, %115, %116 : vector<16x4xf32>
      %cst_54 = arith.constant 1.000000e-01 : f32
      %118 = vector.broadcast %cst_54 : f32 to vector<16x4xf32>
      %119 = arith.mulf %118, %115 : vector<16x4xf32>
      %120 = arith.select %117, %115, %119 : vector<16x4xi1>, vector<16x4xf32>
      %c0_55 = arith.constant 0 : index
      %c8_56 = arith.constant 8 : index
      %c0_57 = arith.constant 0 : index
      %121 = vector.load %arg10[%c0_55, %c8_56, %c0_57] : memref<10x32x4xf32, #tpu.memory_space<vmem>>, vector<1x16x4xf32>
      %122 = vector.shape_cast %121 : vector<1x16x4xf32> to vector<16x4xf32>
      %123 = vector.shape_cast %120 : vector<16x4xf32> to vector<1x16x4xf32>
      tpu.vector_store %arg10[%c0_55, %c8_56, %c0_57], %123 {strides = array<i32>} : memref<10x32x4xf32, #tpu.memory_space<vmem>>, vector<1x16x4xf32>,
    } else {
    }
    %c8_i32_16 = arith.constant 8 : i32
    %26 = arith.addi %1, %c8_i32_16 : i32
    %c16_i32 = arith.constant 16 : i32
    %27 = arith.cmpi slt, %26, %c16_i32 : i32
    %28 = arith.extui %27 : i1 to i32
    %c0_i32_17 = arith.constant 0 : i32
    %29 = arith.cmpi ne, %28, %c0_i32_17 : i32
    scf.if %29 {
      %c8_i32_49 = arith.constant 8 : i32
      %106 = arith.addi %1, %c8_i32_49 : i32
      %c0_50 = arith.constant 0 : index
      %107 = arith.index_cast %106 : i32 to index
      %c0_51 = arith.constant 0 : index
      %c0_52 = arith.constant 0 : index
      %108 = vector.load %arg2[%c0_50, %107, %c0_51, %c0_52] : memref<1x16x16x8xf32, #tpu.memory_space<vmem>>, vector<1x1x16x8xf32>
      %109 = vector.shape_cast %108 : vector<1x1x16x8xf32> to vector<1x16x8xf32>
      %110 = vector.shape_cast %109 : vector<1x16x8xf32> to vector<16x8xf32>
      %cst_53 = arith.constant dense<0.000000e+00> : vector<16x4xf32>
      %111 = tpu.matmul %110, %2, %cst_53 {dimension_numbers = #tpu.dot_dimension_numbers<[1], [0], [0], [1], [0, 0, 1, 1], [], []>} : vector<16x8xf32>, vector<8x4xf32>, vector<16x4xf32> -> vector<16x4xf32>
      %112 = vector.broadcast %3 : vector<1x4xf32> to vector<16x4xf32>
      %113 = arith.mulf %111, %112 : vector<16x4xf32>
      %114 = vector.broadcast %4 : vector<1x4xf32> to vector<16x4xf32>
      %115 = arith.addf %113, %114 : vector<16x4xf32>
      %cst_54 = arith.constant 0.000000e+00 : f32
      %116 = vector.broadcast %cst_54 : f32 to vector<16x4xf32>
      %117 = arith.cmpf oge, %115, %116 : vector<16x4xf32>
      %cst_55 = arith.constant 1.000000e-01 : f32
      %118 = vector.broadcast %cst_55 : f32 to vector<16x4xf32>
      %119 = arith.mulf %118, %115 : vector<16x4xf32>
      %120 = arith.select %117, %115, %119 : vector<16x4xi1>, vector<16x4xf32>
      %c9 = arith.constant 9 : index
      %c8_56 = arith.constant 8 : index
      %c0_57 = arith.constant 0 : index
      %121 = vector.load %arg10[%c9, %c8_56, %c0_57] : memref<10x32x4xf32, #tpu.memory_space<vmem>>, vector<1x16x4xf32>
      %122 = vector.shape_cast %121 : vector<1x16x4xf32> to vector<16x4xf32>
      %123 = vector.shape_cast %120 : vector<16x4xf32> to vector<1x16x4xf32>
      tpu.vector_store %arg10[%c9, %c8_56, %c0_57], %123 {strides = array<i32>} : memref<10x32x4xf32, #tpu.memory_space<vmem>>, vector<1x16x4xf32>,
    } else {
    }
    %c0_18 = arith.constant 0 : index
    %c0_19 = arith.constant 0 : index
    %c0_20 = arith.constant 0 : index
    %30 = vector.load %arg4[%c0_18, %c0_19, %c0_20] : memref<9x4x8xf32, #tpu.memory_space<vmem>>, vector<9x4x8xf32>
    %cst_21 = arith.constant 0.000000e+00 : f32
    %31 = vector.broadcast %cst_21 : f32 to vector<128x8xf32>
    %c0_22 = arith.constant 0 : index
    %c0_23 = arith.constant 0 : index
    %c0_24 = arith.constant 0 : index
    %32 = vector.load %arg10[%c0_22, %c0_23, %c0_24] : memref<10x32x4xf32, #tpu.memory_space<vmem>>, vector<8x32x4xf32>
    %33 = vector.extract_strided_slice %32 {offsets = [0, 7, 0], sizes = [8, 16, 4], strides = [1, 1, 1]} : vector<8x32x4xf32> to vector<8x16x4xf32>
    %34 = vector.shape_cast %33 : vector<8x16x4xf32> to vector<128x4xf32>
    %35 = vector.extract_strided_slice %30 {offsets = [0, 0, 0], sizes = [1, 4, 8], strides = [1, 1, 1]} : vector<9x4x8xf32> to vector<1x4x8xf32>
    %36 = vector.shape_cast %35 : vector<1x4x8xf32> to vector<4x8xf32>
    %cst_25 = arith.constant dense<0.000000e+00> : vector<128x8xf32>
    %37 = tpu.matmul %34, %36, %cst_25 {dimension_numbers = #tpu.dot_dimension_numbers<[1], [0], [0], [1], [0, 0, 1, 1], [], []>} : vector<128x4xf32>, vector<4x8xf32>, vector<128x8xf32> -> vector<128x8xf32>
    %38 = arith.addf %31, %37 : vector<128x8xf32>
    %39 = vector.extract_strided_slice %32 {offsets = [0, 8, 0], sizes = [8, 16, 4], strides = [1, 1, 1]} : vector<8x32x4xf32> to vector<8x16x4xf32>
    %40 = vector.shape_cast %39 : vector<8x16x4xf32> to vector<128x4xf32>
    %41 = vector.extract_strided_slice %30 {offsets = [1, 0, 0], sizes = [1, 4, 8], strides = [1, 1, 1]} : vector<9x4x8xf32> to vector<1x4x8xf32>
    %42 = vector.shape_cast %41 : vector<1x4x8xf32> to vector<4x8xf32>
    %cst_26 = arith.constant dense<0.000000e+00> : vector<128x8xf32>
    %43 = tpu.matmul %40, %42, %cst_26 {dimension_numbers = #tpu.dot_dimension_numbers<[1], [0], [0], [1], [0, 0, 1, 1], [], []>} : vector<128x4xf32>, vector<4x8xf32>, vector<128x8xf32> -> vector<128x8xf32>
    %44 = arith.addf %38, %43 : vector<128x8xf32>
    %45 = vector.extract_strided_slice %32 {offsets = [0, 9, 0], sizes = [8, 16, 4], strides = [1, 1, 1]} : vector<8x32x4xf32> to vector<8x16x4xf32>
    %46 = vector.shape_cast %45 : vector<8x16x4xf32> to vector<128x4xf32>
    %47 = vector.extract_strided_slice %30 {offsets = [2, 0, 0], sizes = [1, 4, 8], strides = [1, 1, 1]} : vector<9x4x8xf32> to vector<1x4x8xf32>
    %48 = vector.shape_cast %47 : vector<1x4x8xf32> to vector<4x8xf32>
    %cst_27 = arith.constant dense<0.000000e+00> : vector<128x8xf32>
    %49 = tpu.matmul %46, %48, %cst_27 {dimension_numbers = #tpu.dot_dimension_numbers<[1], [0], [0], [1], [0, 0, 1, 1], [], []>} : vector<128x4xf32>, vector<4x8xf32>, vector<128x8xf32> -> vector<128x8xf32>
    %50 = arith.addf %44, %49 : vector<128x8xf32>
    %c1_28 = arith.constant 1 : index
    %c0_29 = arith.constant 0 : index
    %c0_30 = arith.constant 0 : index
    %51 = vector.load %arg10[%c1_28, %c0_29, %c0_30] : memref<10x32x4xf32, #tpu.memory_space<vmem>>, vector<8x32x4xf32>
    %52 = vector.extract_strided_slice %51 {offsets = [0, 7, 0], sizes = [8, 16, 4], strides = [1, 1, 1]} : vector<8x32x4xf32> to vector<8x16x4xf32>
    %53 = vector.shape_cast %52 : vector<8x16x4xf32> to vector<128x4xf32>
    %54 = vector.extract_strided_slice %30 {offsets = [3, 0, 0], sizes = [1, 4, 8], strides = [1, 1, 1]} : vector<9x4x8xf32> to vector<1x4x8xf32>
    %55 = vector.shape_cast %54 : vector<1x4x8xf32> to vector<4x8xf32>
    %cst_31 = arith.constant dense<0.000000e+00> : vector<128x8xf32>
    %56 = tpu.matmul %53, %55, %cst_31 {dimension_numbers = #tpu.dot_dimension_numbers<[1], [0], [0], [1], [0, 0, 1, 1], [], []>} : vector<128x4xf32>, vector<4x8xf32>, vector<128x8xf32> -> vector<128x8xf32>
    %57 = arith.addf %50, %56 : vector<128x8xf32>
    %58 = vector.extract_strided_slice %51 {offsets = [0, 8, 0], sizes = [8, 16, 4], strides = [1, 1, 1]} : vector<8x32x4xf32> to vector<8x16x4xf32>
    %59 = vector.shape_cast %58 : vector<8x16x4xf32> to vector<128x4xf32>
    %60 = vector.extract_strided_slice %30 {offsets = [4, 0, 0], sizes = [1, 4, 8], strides = [1, 1, 1]} : vector<9x4x8xf32> to vector<1x4x8xf32>
    %61 = vector.shape_cast %60 : vector<1x4x8xf32> to vector<4x8xf32>
    %cst_32 = arith.constant dense<0.000000e+00> : vector<128x8xf32>
    %62 = tpu.matmul %59, %61, %cst_32 {dimension_numbers = #tpu.dot_dimension_numbers<[1], [0], [0], [1], [0, 0, 1, 1], [], []>} : vector<128x4xf32>, vector<4x8xf32>, vector<128x8xf32> -> vector<128x8xf32>
    %63 = arith.addf %57, %62 : vector<128x8xf32>
    %64 = vector.extract_strided_slice %51 {offsets = [0, 9, 0], sizes = [8, 16, 4], strides = [1, 1, 1]} : vector<8x32x4xf32> to vector<8x16x4xf32>
    %65 = vector.shape_cast %64 : vector<8x16x4xf32> to vector<128x4xf32>
    %66 = vector.extract_strided_slice %30 {offsets = [5, 0, 0], sizes = [1, 4, 8], strides = [1, 1, 1]} : vector<9x4x8xf32> to vector<1x4x8xf32>
    %67 = vector.shape_cast %66 : vector<1x4x8xf32> to vector<4x8xf32>
    %cst_33 = arith.constant dense<0.000000e+00> : vector<128x8xf32>
    %68 = tpu.matmul %65, %67, %cst_33 {dimension_numbers = #tpu.dot_dimension_numbers<[1], [0], [0], [1], [0, 0, 1, 1], [], []>} : vector<128x4xf32>, vector<4x8xf32>, vector<128x8xf32> -> vector<128x8xf32>
    %69 = arith.addf %63, %68 : vector<128x8xf32>
    %c2 = arith.constant 2 : index
    %c0_34 = arith.constant 0 : index
    %c0_35 = arith.constant 0 : index
    %70 = vector.load %arg10[%c2, %c0_34, %c0_35] : memref<10x32x4xf32, #tpu.memory_space<vmem>>, vector<8x32x4xf32>
    %71 = vector.extract_strided_slice %70 {offsets = [0, 7, 0], sizes = [8, 16, 4], strides = [1, 1, 1]} : vector<8x32x4xf32> to vector<8x16x4xf32>
    %72 = vector.shape_cast %71 : vector<8x16x4xf32> to vector<128x4xf32>
    %73 = vector.extract_strided_slice %30 {offsets = [6, 0, 0], sizes = [1, 4, 8], strides = [1, 1, 1]} : vector<9x4x8xf32> to vector<1x4x8xf32>
    %74 = vector.shape_cast %73 : vector<1x4x8xf32> to vector<4x8xf32>
    %cst_36 = arith.constant dense<0.000000e+00> : vector<128x8xf32>
    %75 = tpu.matmul %72, %74, %cst_36 {dimension_numbers = #tpu.dot_dimension_numbers<[1], [0], [0], [1], [0, 0, 1, 1], [], []>} : vector<128x4xf32>, vector<4x8xf32>, vector<128x8xf32> -> vector<128x8xf32>
    %76 = arith.addf %69, %75 : vector<128x8xf32>
    %77 = vector.extract_strided_slice %70 {offsets = [0, 8, 0], sizes = [8, 16, 4], strides = [1, 1, 1]} : vector<8x32x4xf32> to vector<8x16x4xf32>
    %78 = vector.shape_cast %77 : vector<8x16x4xf32> to vector<128x4xf32>
    %79 = vector.extract_strided_slice %30 {offsets = [7, 0, 0], sizes = [1, 4, 8], strides = [1, 1, 1]} : vector<9x4x8xf32> to vector<1x4x8xf32>
    %80 = vector.shape_cast %79 : vector<1x4x8xf32> to vector<4x8xf32>
    %cst_37 = arith.constant dense<0.000000e+00> : vector<128x8xf32>
    %81 = tpu.matmul %78, %80, %cst_37 {dimension_numbers = #tpu.dot_dimension_numbers<[1], [0], [0], [1], [0, 0, 1, 1], [], []>} : vector<128x4xf32>, vector<4x8xf32>, vector<128x8xf32> -> vector<128x8xf32>
    %82 = arith.addf %76, %81 : vector<128x8xf32>
    %83 = vector.extract_strided_slice %70 {offsets = [0, 9, 0], sizes = [8, 16, 4], strides = [1, 1, 1]} : vector<8x32x4xf32> to vector<8x16x4xf32>
    %84 = vector.shape_cast %83 : vector<8x16x4xf32> to vector<128x4xf32>
    %85 = vector.extract_strided_slice %30 {offsets = [8, 0, 0], sizes = [1, 4, 8], strides = [1, 1, 1]} : vector<9x4x8xf32> to vector<1x4x8xf32>
    %86 = vector.shape_cast %85 : vector<1x4x8xf32> to vector<4x8xf32>
    %cst_38 = arith.constant dense<0.000000e+00> : vector<128x8xf32>
    %87 = tpu.matmul %84, %86, %cst_38 {dimension_numbers = #tpu.dot_dimension_numbers<[1], [0], [0], [1], [0, 0, 1, 1], [], []>} : vector<128x4xf32>, vector<4x8xf32>, vector<128x8xf32> -> vector<128x8xf32>
    %88 = arith.addf %82, %87 : vector<128x8xf32>
    %c0_39 = arith.constant 0 : index
    %c0_40 = arith.constant 0 : index
    %89 = vector.load %arg7[%c0_39, %c0_40] : memref<1x8xf32, #tpu.memory_space<vmem>>, vector<1x8xf32>
    %90 = vector.broadcast %89 : vector<1x8xf32> to vector<128x8xf32>
    %91 = arith.mulf %88, %90 : vector<128x8xf32>
    %c0_41 = arith.constant 0 : index
    %c0_42 = arith.constant 0 : index
    %92 = vector.load %arg8[%c0_41, %c0_42] : memref<1x8xf32, #tpu.memory_space<vmem>>, vector<1x8xf32>
    %93 = vector.broadcast %92 : vector<1x8xf32> to vector<128x8xf32>
    %94 = arith.addf %91, %93 : vector<128x8xf32>
    %cst_43 = arith.constant 0.000000e+00 : f32
    %95 = vector.broadcast %cst_43 : f32 to vector<128x8xf32>
    %96 = arith.cmpf oge, %94, %95 : vector<128x8xf32>
    %cst_44 = arith.constant 1.000000e-01 : f32
    %97 = vector.broadcast %cst_44 : f32 to vector<128x8xf32>
    %98 = arith.mulf %97, %94 : vector<128x8xf32>
    %99 = arith.select %96, %94, %98 : vector<128x8xi1>, vector<128x8xf32>
    %100 = vector.shape_cast %9 : vector<8x16x8xf32> to vector<128x8xf32>
    %101 = arith.addf %99, %100 : vector<128x8xf32>
    %102 = vector.shape_cast %101 : vector<128x8xf32> to vector<8x16x8xf32>
    %c0_45 = arith.constant 0 : index
    %c0_46 = arith.constant 0 : index
    %c0_47 = arith.constant 0 : index
    %c0_48 = arith.constant 0 : index
    %103 = vector.load %arg9[%c0_45, %c0_46, %c0_47, %c0_48] : memref<1x8x16x8xf32, #tpu.memory_space<vmem>>, vector<1x8x16x8xf32>
    %104 = vector.shape_cast %103 : vector<1x8x16x8xf32> to vector<8x16x8xf32>
    %105 = vector.shape_cast %102 : vector<8x16x8xf32> to vector<1x8x16x8xf32>
    tpu.vector_store %arg9[%c0_45, %c0_46, %c0_47, %c0_48], %105 {strides = array<i32>} : memref<1x8x16x8xf32, #tpu.memory_space<vmem>>, vector<1x8x16x8xf32>,
    return
  }
  func.func @transform_0(%arg0: i32, %arg1: i32) -> (i32, i32, i32, i32) {
    %c0_i32 = arith.constant 0 : i32
    %c0_i32_0 = arith.constant 0 : i32
    %c0_i32_1 = arith.constant 0 : i32
    %c0_i32_2 = arith.constant 0 : i32
    return %arg0, %c0_i32, %c0_i32_0, %c0_i32_1 : i32, i32, i32, i32
  }
  func.func @transform_1(%arg0: i32, %arg1: i32) -> (i32, i32) {
    %c0_i32 = arith.constant 0 : i32
    %c0_i32_0 = arith.constant 0 : i32
    %c0_i32_1 = arith.constant 0 : i32
    return %c0_i32, %c0_i32_0 : i32, i32
  }
  func.func @transform_2(%arg0: i32, %arg1: i32) -> (i32, i32, i32) {
    %c0_i32 = arith.constant 0 : i32
    %c0_i32_0 = arith.constant 0 : i32
    %c0_i32_1 = arith.constant 0 : i32
    %c0_i32_2 = arith.constant 0 : i32
    return %c0_i32, %c0_i32_0, %c0_i32_1 : i32, i32, i32
  }
  func.func @transform_3(%arg0: i32, %arg1: i32) -> (i32, i32) {
    %c0_i32 = arith.constant 0 : i32
    %c0_i32_0 = arith.constant 0 : i32
    %c0_i32_1 = arith.constant 0 : i32
    return %c0_i32, %c0_i32_0 : i32, i32
  }
  func.func @transform_4(%arg0: i32, %arg1: i32) -> (i32, i32) {
    %c0_i32 = arith.constant 0 : i32
    %c0_i32_0 = arith.constant 0 : i32
    %c0_i32_1 = arith.constant 0 : i32
    return %c0_i32, %c0_i32_0 : i32, i32
  }
  func.func @transform_5(%arg0: i32, %arg1: i32) -> (i32, i32) {
    %c0_i32 = arith.constant 0 : i32
    %c0_i32_0 = arith.constant 0 : i32
    %c0_i32_1 = arith.constant 0 : i32
    return %c0_i32, %c0_i32_0 : i32, i32
  }
  func.func @transform_6(%arg0: i32, %arg1: i32) -> (i32, i32) {
    %c0_i32 = arith.constant 0 : i32
    %c0_i32_0 = arith.constant 0 : i32
    %c0_i32_1 = arith.constant 0 : i32
    return %c0_i32, %c0_i32_0 : i32, i32
  }
  func.func @transform_7(%arg0: i32, %arg1: i32) -> (i32, i32, i32, i32) {
    %c0_i32 = arith.constant 0 : i32
    %c0_i32_0 = arith.constant 0 : i32
    %c0_i32_1 = arith.constant 0 : i32
    return %arg0, %arg1, %c0_i32, %c0_i32_0 : i32, i32, i32, i32
  }
}

</mosaic_0001>

<llo_original>
// kernel: tpu_custom_call.1
$region0: #{tpu_custom_call.1}
  #allocation0 [shape = 'u32[]', space=smem, size = 0x4, offset = 0x4, fixed_abs, tag = 'smem constant byte address 0x4 - core index']
  #allocation1 [shape = 'u32[144,128]{1,0:T(1,128)}', space=vmem, size = 0x12000, scoped, tag = 'internal scratch']
  #allocation2 [shape = 'f32[10,32,4]{2,1,0:T(8,128)}', space=vmem, size = 0x28000, scoped, tag = 'scratch operand']
  %s0 = inlined_call_operand.vmem [shape: f32[2,16,16,8], index: 0, kind: input, shape index: {}]
  %s1 = inlined_call_operand.vmem [shape: f32[8,4], index: 1, kind: input, shape index: {}]
  %s2 = inlined_call_operand.vmem [shape: f32[9,4,8], index: 2, kind: input, shape index: {}]
  %s3 = inlined_call_operand.vmem [shape: f32[1,4], index: 3, kind: input, shape index: {}]
  %s4 = inlined_call_operand.vmem [shape: f32[1,4], index: 4, kind: input, shape index: {}]
  %s5 = inlined_call_operand.vmem [shape: f32[1,8], index: 5, kind: input, shape index: {}]
  %s6 = inlined_call_operand.vmem [shape: f32[1,8], index: 6, kind: input, shape index: {}]
  %s7 = inlined_call_operand.vmem [shape: f32[2,16,16,8], index: 7, kind: output, shape index: {}]
  %s8 = sld [smem:[#allocation0]]
  $region69: #{tpu_custom_call.1} parent=0
    _
  %s10 = ssub.s32 1, %s8
  %s11 = scalar_select 0, %s10, %s8
  loop: start=0, step=1, limit=6
  $region2: #{tpu_custom_call.1} parent=0 // loop_pre_header
    _
  $region3: #{tpu_custom_call.1} parent=0 // loop_header
    %s13 = sphi 0, %s17
    %p14 = scmp.ge.s32.totalorder %s13, 6
    %s20 = sphi 0, %s32
    %s21 = sphi 0, %s28
    %s22 = sphi 0, %s20
    %s23 = sphi 0, %s21
    %s24 = sphi 0, %s22
    %s25 = sphi 0, %s23
    %s35 = sphi 0, %s37
    %s38 = sphi 0, %s35
    %s39 = sphi 0, %s38
    %s55 = sphi 0, %s39
    %s59 = sphi 0, %s59
    %s61 = sphi 0, %s59
    %s62 = sphi 0, %s61
    %s76 = sphi 0, %s62
    %s80 = sphi 0, %s80
    %s82 = sphi 0, %s80
    %s83 = sphi 0, %s82
    %s97 = sphi 0, %s83
    %s101 = sphi 0, %s101
    %s103 = sphi 0, %s101
    %s104 = sphi 0, %s103
    %s118 = sphi 0, %s104
    %s122 = sphi 0, %s122
    %s124 = sphi 0, %s122
    %s125 = sphi 0, %s124
    %s139 = sphi 0, %s125
    %s143 = sphi 0, %s143
    %s145 = sphi 0, %s143
    %s146 = sphi 0, %s145
    %s160 = sphi 0, %s146
    %s164 = sphi 0, %s164
    %s166 = sphi 0, %s164
    %s167 = sphi 0, %s166
    %s181 = sphi 0, %s167
    %s189 = sphi 0, %s191
    %s192 = sphi 0, %s189
    %s193 = sphi 0, %s192
    %s209 = sphi 0, %s193
  $region4: #{tpu_custom_call.1} parent=0 // loop_header_branch
    %16 = sbr.rel (%p14) target = $region8
  $region5: #{tpu_custom_call.1} parent=0 // loop_body
    %s18 = ssub.s32 %s13, 1
    %s19 = ssub.s32 %s13, 2
    %s26 = sadd.s32 1, %s21
    %p27 = scmp.ge.s32.totalorder %s26, 2
    %s28 = scalar_select %p27, 0, %s26
    %s29 = sadd.s32 1, %s20
    %s30 = scalar_select %p27, %s29, %s20
    %p31 = scmp.ge.s32.totalorder %s30, 2
    %s32 = scalar_select %p31, 0, %s30
    %s33 = ssub.s32 %s20, %s32
    %p34 = scmp.eq.s32.totalorder %s33, 0
    %s36 = sadd.s32 %s35, 1
    %s37 = scalar_select %p34, %s35, %s36
    %p40 = pneg %p34
    %p41 = scmp.eq.s32.totalorder %s13, 3
    %p42 = por %p40, %p41
    %p43 = scmp.ne.s32.totalorder %s35, %s38
    %p44 = scmp.eq.s32.totalorder %s13, 0
    %p45 = por %p43, %p44
    %p46 = scmp.ne.s32.totalorder %s35, %s38
    %p47 = scmp.eq.s32.totalorder %s18, 3
    %p48 = por %p46, %p47
    %p49 = scmp.ne.s32.totalorder %s38, %s39
    %p50 = scmp.eq.s32.totalorder %s18, 0
    %p51 = por %p49, %p50
    %p52 = scmp.ne.s32.totalorder %s38, %s39
    %p53 = scmp.eq.s32.totalorder %s19, 3
    %p54 = por %p52, %p53
    %p56 = scmp.ne.s32.totalorder %s39, %s55
    %p57 = scmp.eq.s32.totalorder %s19, 0
    %p58 = por %p56, %p57
    %s60 = sadd.s32 %s59, 1
    %p63 = scmp.eq.s32.totalorder %s13, 3
    %p64 = scmp.ne.s32.totalorder %s59, %s61
    %p65 = scmp.eq.s32.totalorder %s13, 0
    %p66 = por %p64, %p65
    %p67 = scmp.ne.s32.totalorder %s59, %s61
    %p68 = scmp.eq.s32.totalorder %s18, 3
    %p69 = por %p67, %p68
    %p70 = scmp.ne.s32.totalorder %s61, %s62
    %p71 = scmp.eq.s32.totalorder %s18, 0
    %p72 = por %p70, %p71
    %p73 = scmp.ne.s32.totalorder %s61, %s62
    %p74 = scmp.eq.s32.totalorder %s19, 3
    %p75 = por %p73, %p74
    %p77 = scmp.ne.s32.totalorder %s62, %s76
    %p78 = scmp.eq.s32.totalorder %s19, 0
    %p79 = por %p77, %p78
    %s81 = sadd.s32 %s80, 1
    %p84 = scmp.eq.s32.totalorder %s13, 3
    %p85 = scmp.ne.s32.totalorder %s80, %s82
    %p86 = scmp.eq.s32.totalorder %s13, 0
    %p87 = por %p85, %p86
    %p88 = scmp.ne.s32.totalorder %s80, %s82
    %p89 = scmp.eq.s32.totalorder %s18, 3
    %p90 = por %p88, %p89
    %p91 = scmp.ne.s32.totalorder %s82, %s83
    %p92 = scmp.eq.s32.totalorder %s18, 0
    %p93 = por %p91, %p92
    %p94 = scmp.ne.s32.totalorder %s82, %s83
    %p95 = scmp.eq.s32.totalorder %s19, 3
    %p96 = por %p94, %p95
    %p98 = scmp.ne.s32.totalorder %s83, %s97
    %p99 = scmp.eq.s32.totalorder %s19, 0
    %p100 = por %p98, %p99
    %s102 = sadd.s32 %s101, 1
    %p105 = scmp.eq.s32.totalorder %s13, 3
    %p106 = scmp.ne.s32.totalorder %s101, %s103
    %p107 = scmp.eq.s32.totalorder %s13, 0
    %p108 = por %p106, %p107
    %p109 = scmp.ne.s32.totalorder %s101, %s103
    %p110 = scmp.eq.s32.totalorder %s18, 3
    %p111 = por %p109, %p110
    %p112 = scmp.ne.s32.totalorder %s103, %s104
    %p113 = scmp.eq.s32.totalorder %s18, 0
    %p114 = por %p112, %p113
    %p115 = scmp.ne.s32.totalorder %s103, %s104
    %p116 = scmp.eq.s32.totalorder %s19, 3
    %p117 = por %p115, %p116
    %p119 = scmp.ne.s32.totalorder %s104, %s118
    %p120 = scmp.eq.s32.totalorder %s19, 0
    %p121 = por %p119, %p120
    %s123 = sadd.s32 %s122, 1
    %p126 = scmp.eq.s32.totalorder %s13, 3
    %p127 = scmp.ne.s32.totalorder %s122, %s124
    %p128 = scmp.eq.s32.totalorder %s13, 0
    %p129 = por %p127, %p128
    %p130 = scmp.ne.s32.totalorder %s122, %s124
    %p131 = scmp.eq.s32.totalorder %s18, 3
    %p132 = por %p130, %p131
    %p133 = scmp.ne.s32.totalorder %s124, %s125
    %p134 = scmp.eq.s32.totalorder %s18, 0
    %p135 = por %p133, %p134
    %p136 = scmp.ne.s32.totalorder %s124, %s125
    %p137 = scmp.eq.s32.totalorder %s19, 3
    %p138 = por %p136, %p137
    %p140 = scmp.ne.s32.totalorder %s125, %s139
    %p141 = scmp.eq.s32.totalorder %s19, 0
    %p142 = por %p140, %p141
    %s144 = sadd.s32 %s143, 1
    %p147 = scmp.eq.s32.totalorder %s13, 3
    %p148 = scmp.ne.s32.totalorder %s143, %s145
    %p149 = scmp.eq.s32.totalorder %s13, 0
    %p150 = por %p148, %p149
    %p151 = scmp.ne.s32.totalorder %s143, %s145
    %p152 = scmp.eq.s32.totalorder %s18, 3
    %p153 = por %p151, %p152
    %p154 = scmp.ne.s32.totalorder %s145, %s146
    %p155 = scmp.eq.s32.totalorder %s18, 0
    %p156 = por %p154, %p155
    %p157 = scmp.ne.s32.totalorder %s145, %s146
    %p158 = scmp.eq.s32.totalorder %s19, 3
    %p159 = por %p157, %p158
    %p161 = scmp.ne.s32.totalorder %s146, %s160
    %p162 = scmp.eq.s32.totalorder %s19, 0
    %p163 = por %p161, %p162
    %s165 = sadd.s32 %s164, 1
    %p168 = scmp.eq.s32.totalorder %s13, 3
    %p169 = scmp.ne.s32.totalorder %s164, %s166
    %p170 = scmp.eq.s32.totalorder %s13, 0
    %p171 = por %p169, %p170
    %p172 = scmp.ne.s32.totalorder %s164, %s166
    %p173 = scmp.eq.s32.totalorder %s18, 3
    %p174 = por %p172, %p173
    %p175 = scmp.ne.s32.totalorder %s166, %s167
    %p176 = scmp.eq.s32.totalorder %s18, 0
    %p177 = por %p175, %p176
    %p178 = scmp.ne.s32.totalorder %s166, %s167
    %p179 = scmp.eq.s32.totalorder %s19, 3
    %p180 = por %p178, %p179
    %p182 = scmp.ne.s32.totalorder %s167, %s181
    %p183 = scmp.eq.s32.totalorder %s19, 0
    %p184 = por %p182, %p183
    %s185 = ssub.s32 %s20, %s32
    %s186 = ssub.s32 %s21, %s28
    %s187 = sor.u32 %s185, %s186
    %p188 = scmp.eq.s32.totalorder %s187, 0
    %s190 = sadd.s32 %s189, 1
    %s191 = scalar_select %p188, %s189, %s190
    %p194 = pneg %p188
    %p195 = scmp.eq.s32.totalorder %s13, 3
    %p196 = por %p194, %p195
    %p197 = scmp.ne.s32.totalorder %s189, %s192
    %p198 = scmp.eq.s32.totalorder %s13, 0
    %p199 = por %p197, %p198
    %p200 = scmp.ne.s32.totalorder %s189, %s192
    %p201 = scmp.eq.s32.totalorder %s18, 3
    %p202 = por %p200, %p201
    %p203 = scmp.ne.s32.totalorder %s192, %s193
    %p204 = scmp.eq.s32.totalorder %s18, 0
    %p205 = por %p203, %p204
    %p206 = scmp.ne.s32.totalorder %s192, %s193
    %p207 = scmp.eq.s32.totalorder %s19, 3
    %p208 = por %p206, %p207
    %p210 = scmp.ne.s32.totalorder %s193, %s209
    %p211 = scmp.eq.s32.totalorder %s19, 0
    %p212 = por %p210, %p211
    %p213 = scmp.le.s32.totalorder 1, %s13
    %p214 = scmp.lt.s32.totalorder %s13, 5
    %p215 = pnand %p213, %p214
    %p216 = pneg %p215
    // Predicated region
    $region9: #{tpu_custom_call.1} parent=5 // pred_check
      _
    $region10: #{tpu_custom_call.1} parent=5 // pred_check_branch
      %218 = sbr.rel (%p215) target = $region12
    $region11: #{tpu_custom_call.1} parent=5 // pred_region
      %s219 = ssub.s32 %s13, 1
      // Predicated region
      $region13: #{tpu_custom_call.1} parent=11 // pred_check
        %p220 = pneg %p72
      $region14: #{tpu_custom_call.1} parent=11 // pred_check_branch
        %222 = sbr.rel (%p220) target = $region16
      $region15: #{tpu_custom_call.1} parent=11 // pred_region
        _
      $region16: #{tpu_custom_call.1} parent=11 // pred_fallthru
        _
      // Predicated region
      $region17: #{tpu_custom_call.1} parent=11 // pred_check
        %p223 = pneg %p93
      $region18: #{tpu_custom_call.1} parent=11 // pred_check_branch
        %225 = sbr.rel (%p223) target = $region20
      $region19: #{tpu_custom_call.1} parent=11 // pred_region
        _
      $region20: #{tpu_custom_call.1} parent=11 // pred_fallthru
        _
      // Predicated region
      $region21: #{tpu_custom_call.1} parent=11 // pred_check
        %p226 = pneg %p114
      $region22: #{tpu_custom_call.1} parent=11 // pred_check_branch
        %228 = sbr.rel (%p226) target = $region24
      $region23: #{tpu_custom_call.1} parent=11 // pred_region
        _
      $region24: #{tpu_custom_call.1} parent=11 // pred_fallthru
        _
      // Predicated region
      $region25: #{tpu_custom_call.1} parent=11 // pred_check
        %p229 = pneg %p135
      $region26: #{tpu_custom_call.1} parent=11 // pred_check_branch
        %231 = sbr.rel (%p229) target = $region28
      $region27: #{tpu_custom_call.1} parent=11 // pred_region
        _
      $region28: #{tpu_custom_call.1} parent=11 // pred_fallthru
        _
      // Predicated region
      $region29: #{tpu_custom_call.1} parent=11 // pred_check
        %p232 = pneg %p156
      $region30: #{tpu_custom_call.1} parent=11 // pred_check_branch
        %234 = sbr.rel (%p232) target = $region32
      $region31: #{tpu_custom_call.1} parent=11 // pred_region
        _
      $region32: #{tpu_custom_call.1} parent=11 // pred_fallthru
        _
      // Predicated region
      $region33: #{tpu_custom_call.1} parent=11 // pred_check
        %p235 = pneg %p177
      $region34: #{tpu_custom_call.1} parent=11 // pred_check_branch
        %237 = sbr.rel (%p235) target = $region36
      $region35: #{tpu_custom_call.1} parent=11 // pred_region
        _
      $region36: #{tpu_custom_call.1} parent=11 // pred_fallthru
        _
    $region12: #{tpu_custom_call.1} parent=5 // pred_fallthru
      _
    %p238 = scmp.lt.s32.totalorder %s13, 4
    // Predicated region
    $region37: #{tpu_custom_call.1} parent=5 // pred_check
      %p239 = pneg %p238
    $region38: #{tpu_custom_call.1} parent=5 // pred_check_branch
      %241 = sbr.rel (%p239) target = $region40
    $region39: #{tpu_custom_call.1} parent=5 // pred_region
      // Predicated region
      $region41: #{tpu_custom_call.1} parent=39 // pred_check
        %p242 = pneg %p45
      $region42: #{tpu_custom_call.1} parent=39 // pred_check_branch
        %244 = sbr.rel (%p242) target = $region44
      $region43: #{tpu_custom_call.1} parent=39 // pred_region
        %p245 = scmp.lt.s32.totalorder %s20, 1
        %s246 = scalar_select %p245, %s20, 1
        %s247 = smul.addr %s246, 32
        %s248 = smul.addr %s247, 8
        %s249 = scalar_lea.vmem %s0, %s248
      $region44: #{tpu_custom_call.1} parent=39 // pred_fallthru
        _
    $region40: #{tpu_custom_call.1} parent=5 // pred_fallthru
      _
    %p250 = scmp.le.s32.totalorder 1, %s13
    %p251 = scmp.lt.s32.totalorder %s13, 5
    %p252 = pnand %p250, %p251
    %p253 = pneg %p252
    // Predicated region
    $region45: #{tpu_custom_call.1} parent=5 // pred_check
      _
    $region46: #{tpu_custom_call.1} parent=5 // pred_check_branch
      %255 = sbr.rel (%p252) target = $region48
    $region47: #{tpu_custom_call.1} parent=5 // pred_region
      %s256 = ssub.s32 %s13, 1
      %p257 = scmp.lt.s32.totalorder %s22, 1
      %s258 = scalar_select %p257, %s22, 1
      %s259 = smul.addr %s258, 32
      %s260 = smul.addr %s259, 8
      %s261 = scalar_lea.vmem %s0, %s260
      %p262 = pneg %p51
      %p263 = pneg %p48
      %p264 = pneg %p72
      %p265 = pneg %p69
      %p266 = pneg %p93
      %p267 = pneg %p90
      %p268 = pneg %p114
      %p269 = pneg %p111
      %p270 = pneg %p135
      %p271 = pneg %p132
      %p272 = pneg %p156
      %p273 = pneg %p153
      %p274 = pneg %p177
      %p275 = pneg %p174
      %p276 = pneg %p205
      %p277 = pneg %p202
      %s278 = smul.u32 8, %s23
      %p279 = scmp.lt.s32.totalorder %s22, 1
      %s280 = scalar_select %p279, %s22, 1
      %p281 = scmp.lt.s32.totalorder %s278, 15
      %s282 = scalar_select %p281, %s278, 15
      %s283 = smul.addr %s282, 2
      %s284 = smul.addr %s280, 32
      %s285 = sadd.s32 %s283, %s284
      %s286 = smul.addr %s285, 8
      %s287 = scalar_lea.vmem %s7, %s286
      %p288 = scmp.lt.s32.totalorder %s22, 1
      %s289 = scalar_select %p288, %s22, 1
      %s290 = smul.addr %s289, 32
      %s291 = smul.addr %s290, 8
      %s292 = scalar_lea.vmem %s0, %s291
      %s293 = smul.u32 8, %s23
      %p294 = scmp.lt.s32.totalorder %s22, 1
      %s295 = scalar_select %p294, %s22, 1
      %p296 = scmp.lt.s32.totalorder %s293, 15
      %s297 = scalar_select %p296, %s293, 15
      %s298 = smul.addr %s297, 2
      %s299 = smul.addr %s295, 32
      %s300 = sadd.s32 %s298, %s299
      %s301 = smul.addr %s300, 8
      %s302 = scalar_lea.vmem %s7, %s301
      %s303 = smul.u32 8, %s23
      %s304 = smul.u32 %s23, 8
      %v305 = vld [vmem:[%s1] sm:$0xff]
      %v306 = vld [vmem:[%s3] sm:$0x1]
      %v307 = vld [vmem:[%s4] sm:$0x1]
      %vm308 = vcmask 31744
      %309 = vst.msk [vmem:[#allocation2] sm:$0xff] %vm308, 0.0
      %310 = vst.msk [vmem:[#allocation2 + $0x8] sm:$0xff] %vm308, 0.0
      %311 = vst.msk [vmem:[#allocation2 + $0x10] sm:$0xff] %vm308, 0.0
      %312 = vst.msk [vmem:[#allocation2 + $0x18] sm:$0xff] %vm308, 0.0
      %313 = vst.msk [vmem:[#allocation2 + $0x20] sm:$0xff] %vm308, 0.0
      %314 = vst.msk [vmem:[#allocation2 + $0x28] sm:$0xff] %vm308, 0.0
      %315 = vst.msk [vmem:[#allocation2 + $0x30] sm:$0xff] %vm308, 0.0
      %316 = vst.msk [vmem:[#allocation2 + $0x38] sm:$0xff] %vm308, 0.0
      %317 = vst.msk [vmem:[#allocation2 + $0x40] sm:$0xff] %vm308, 0.0
      %318 = vst.msk [vmem:[#allocation2 + $0x48] sm:$0xff] %vm308, 0.0
      %319 = vst.msk [vmem:[#allocation2 + $0x50] sm:$0xff] %vm308, 0.0
      %320 = vst.msk [vmem:[#allocation2 + $0x58] sm:$0xff] %vm308, 0.0
      %321 = vst.msk [vmem:[#allocation2 + $0x60] sm:$0xff] %vm308, 0.0
      %322 = vst.msk [vmem:[#allocation2 + $0x68] sm:$0xff] %vm308, 0.0
      %323 = vst.msk [vmem:[#allocation2 + $0x70] sm:$0xff] %vm308, 0.0
      %324 = vst.msk [vmem:[#allocation2 + $0x78] sm:$0xff] %vm308, 0.0
      %325 = vst.msk [vmem:[#allocation2 + $0x80] sm:$0xff] %vm308, 0.0
      %326 = vst.msk [vmem:[#allocation2 + $0x88] sm:$0xff] %vm308, 0.0
      %327 = vst.msk [vmem:[#allocation2 + $0x90] sm:$0xff] %vm308, 0.0
      %328 = vst.msk [vmem:[#allocation2 + $0x98] sm:$0xff] %vm308, 0.0
      %329 = vst.msk [vmem:[#allocation2 + $0xa0] sm:$0xff] %vm308, 0.0
      %330 = vst.msk [vmem:[#allocation2 + $0xa8] sm:$0xff] %vm308, 0.0
      %331 = vst.msk [vmem:[#allocation2 + $0xb0] sm:$0xff] %vm308, 0.0
      %332 = vst.msk [vmem:[#allocation2 + $0xb8] sm:$0xff] %vm308, 0.0
      %333 = vst.msk [vmem:[#allocation2 + $0xc0] sm:$0xff] %vm308, 0.0
      %334 = vst.msk [vmem:[#allocation2 + $0xc8] sm:$0xff] %vm308, 0.0
      %335 = vst.msk [vmem:[#allocation2 + $0xd0] sm:$0xff] %vm308, 0.0
      %336 = vst.msk [vmem:[#allocation2 + $0xd8] sm:$0xff] %vm308, 0.0
      %337 = vst.msk [vmem:[#allocation2 + $0xe0] sm:$0xff] %vm308, 0.0
      %338 = vst.msk [vmem:[#allocation2 + $0xe8] sm:$0xff] %vm308, 0.0
      %339 = vst.msk [vmem:[#allocation2 + $0xf0] sm:$0xff] %vm308, 0.0
      %340 = vst.msk [vmem:[#allocation2 + $0xf8] sm:$0xff] %vm308, 0.0
      %341 = vst.msk [vmem:[#allocation2 + $0x100] sm:$0xff] %vm308, 0.0
      %342 = vst.msk [vmem:[#allocation2 + $0x108] sm:$0xff] %vm308, 0.0
      %343 = vst.msk [vmem:[#allocation2 + $0x110] sm:$0xff] %vm308, 0.0
      %344 = vst.msk [vmem:[#allocation2 + $0x118] sm:$0xff] %vm308, 0.0
      %345 = vst.msk [vmem:[#allocation2 + $0x120] sm:$0xff] %vm308, 0.0
      %346 = vst.msk [vmem:[#allocation2 + $0x128] sm:$0xff] %vm308, 0.0
      %347 = vst.msk [vmem:[#allocation2 + $0x130] sm:$0xff] %vm308, 0.0
      %348 = vst.msk [vmem:[#allocation2 + $0x138] sm:$0xff] %vm308, 0.0
      %s349 = smul.u32 %s304, 16
      %s350 = scalar_lea.vmem %s292, %s349
      %v351 = vld [vmem:[%s350] sm:$0xff]
      %v352 = vld [vmem:[%s350 + $0x8] sm:$0xff]
      %v353 = vld [vmem:[%s350 + $0x10] sm:$0xff]
      %v354 = vld [vmem:[%s350 + $0x18] sm:$0xff]
      %v355 = vld [vmem:[%s350 + $0x20] sm:$0xff]
      %v356 = vld [vmem:[%s350 + $0x28] sm:$0xff]
      %v357 = vld [vmem:[%s350 + $0x30] sm:$0xff]
      %v358 = vld [vmem:[%s350 + $0x38] sm:$0xff]
      %v359 = vld [vmem:[%s350 + $0x40] sm:$0xff]
      %v360 = vld [vmem:[%s350 + $0x48] sm:$0xff]
      %v361 = vld [vmem:[%s350 + $0x50] sm:$0xff]
      %v362 = vld [vmem:[%s350 + $0x58] sm:$0xff]
      %v363 = vld [vmem:[%s350 + $0x60] sm:$0xff]
      %v364 = vld [vmem:[%s350 + $0x68] sm:$0xff]
      %v365 = vld [vmem:[%s350 + $0x70] sm:$0xff]
      %v366 = vld [vmem:[%s350 + $0x78] sm:$0xff]
      %vm367 = vcmask 64512
      %v369 = vsel %vm367, %v351, 0
      %v372 = vsel %vm367, %v352, 0
      %v375 = vsel %vm367, %v353, 0
      %v378 = vsel %vm367, %v354, 0
      %v381 = vsel %vm367, %v355, 0
      %v384 = vsel %vm367, %v356, 0
      %v387 = vsel %vm367, %v357, 0
      %v390 = vsel %vm367, %v358, 0
      %v393 = vsel %vm367, %v359, 0
      %v396 = vsel %vm367, %v360, 0
      %v399 = vsel %vm367, %v361, 0
      %v402 = vsel %vm367, %v362, 0
      %v405 = vsel %vm367, %v363, 0
      %v408 = vsel %vm367, %v364, 0
      %v411 = vsel %vm367, %v365, 0
      %v414 = vsel %vm367, %v366, 0
      %416 = vmatprep.subr.mxu0 0.0
      %417 = vmatpush1.msra.mxu0 %v305
      %418 = vmatprep.subr.mxu0 0.0
      %419 = vmatpush1.msra.mxu0 0.0
      %420 = vmatprep.subr.mxu0 0.0
      %421 = vmatpush1.msra.mxu0 0.0
      %422 = vmatprep.subr.mxu0 0.0
      %423 = vmatpush1.msra.mxu0 0.0
      %424 = vmatprep.subr.mxu0 0.0
      %425 = vmatpush1.msra.mxu0 0.0
      %426 = vmatprep.subr.mxu0 0.0
      %427 = vmatpush1.msra.mxu0 0.0
      %428 = vmatprep.subr.mxu0 0.0
      %429 = vmatpush1.msra.mxu0 0.0
      %430 = vmatprep.subr.mxu0 0.0
      %431 = vmatpush1.msra.mxu0 0.0
      %432 = vmatprep.subr.mxu0 0.0
      %433 = vmatpush1.msra.mxu0 0.0
      %434 = vmatprep.subr.mxu0 0.0
      %435 = vmatpush1.msra.mxu0 0.0
      %436 = vmatprep.subr.mxu0 0.0
      %437 = vmatpush1.msra.mxu0 0.0
      %438 = vmatprep.subr.mxu0 0.0
      %439 = vmatpush1.msra.mxu0 0.0
      %440 = vmatprep.subr.mxu0 0.0
      %441 = vmatpush1.msra.mxu0 0.0
      %442 = vmatprep.subr.mxu0 0.0
      %443 = vmatpush1.msra.mxu0 0.0
      %444 = vmatprep.subr.mxu0 0.0
      %445 = vmatpush1.msra.mxu0 0.0
      %446 = vmatprep.subr.mxu0 0.0
      %447 = vmatpush1.msra.mxu0 0.0
      %448 = vmatprep.subr.mxu0 0.0
      %449 = vmatpush1.msra.mxu0 0.0
      %450 = vmatprep.subr.mxu0 0.0
      %451 = vmatpush1.msra.mxu0 0.0
      %452 = vmatprep.subr.mxu0 0.0
      %453 = vmatpush1.msra.mxu0 0.0
      %454 = vmatprep.subr.mxu0 0.0
      %455 = vmatpush1.msra.mxu0 0.0
      %456 = vmatprep.subr.mxu0 0.0
      %457 = vmatpush1.msra.mxu0 0.0
      %458 = vmatprep.subr.mxu0 0.0
      %459 = vmatpush1.msra.mxu0 0.0
      %460 = vmatprep.subr.mxu0 0.0
      %461 = vmatpush1.msra.mxu0 0.0
      %462 = vmatprep.subr.mxu0 0.0
      %463 = vmatpush1.msra.mxu0 0.0
      %464 = vmatprep.subr.mxu0 0.0
      %465 = vmatpush1.msra.mxu0 0.0
      %466 = vmatprep.subr.mxu0 0.0
      %467 = vmatpush1.msra.mxu0 0.0
      %468 = vmatprep.subr.mxu0 0.0
      %469 = vmatpush1.msra.mxu0 0.0
      %470 = vmatprep.subr.mxu0 0.0
      %471 = vmatpush1.msra.mxu0 0.0
      %472 = vmatprep.subr.mxu0 0.0
      %473 = vmatpush1.msra.mxu0 0.0
      %474 = vmatprep.subr.mxu0 0.0
      %475 = vmatpush1.msra.mxu0 0.0
      %476 = vmatprep.subr.mxu0 0.0
      %477 = vmatpush1.msra.mxu0 0.0
      %478 = vmatprep.subr.mxu0 0.0
      %479 = vmatpush1.msra.mxu0 0.0
      %480 = vmatprep.mubr.f32.mxu0 0.0
      %481 = vmatmul.mubr.f32.gmra.mrb[0].mxu0 %v369
      %v482 = vpop.f32.mrb[0].mxu0
      %v483 = vadd.f32 0.0, %v482
      %v484 = vpop.f32.mrb[0].mxu0
      %485 = vmatprep.mubr.f32.mxu0 0.0
      %486 = vmatmul.mubr.f32.gmra.mrb[0].mxu0 %v372
      %v487 = vpop.f32.mrb[0].mxu0
      %v488 = vadd.f32 0.0, %v487
      %v489 = vpop.f32.mrb[0].mxu0
      %490 = vmatprep.mubr.f32.mxu0 0.0
      %491 = vmatmul.mubr.f32.gmra.mrb[0].mxu0 %v375
      %v492 = vpop.f32.mrb[0].mxu0
      %v493 = vadd.f32 0.0, %v492
      %v494 = vpop.f32.mrb[0].mxu0
      %495 = vmatprep.mubr.f32.mxu0 0.0
      %496 = vmatmul.mubr.f32.gmra.mrb[0].mxu0 %v378
      %v497 = vpop.f32.mrb[0].mxu0
      %v498 = vadd.f32 0.0, %v497
      %v499 = vpop.f32.mrb[0].mxu0
      %500 = vmatprep.mubr.f32.mxu0 0.0
      %501 = vmatmul.mubr.f32.gmra.mrb[0].mxu0 %v381
      %v502 = vpop.f32.mrb[0].mxu0
      %v503 = vadd.f32 0.0, %v502
      %v504 = vpop.f32.mrb[0].mxu0
      %505 = vmatprep.mubr.f32.mxu0 0.0
      %506 = vmatmul.mubr.f32.gmra.mrb[0].mxu0 %v384
      %v507 = vpop.f32.mrb[0].mxu0
      %v508 = vadd.f32 0.0, %v507
      %v509 = vpop.f32.mrb[0].mxu0
      %510 = vmatprep.mubr.f32.mxu0 0.0
      %511 = vmatmul.mubr.f32.gmra.mrb[0].mxu0 %v387
      %v512 = vpop.f32.mrb[0].mxu0
      %v513 = vadd.f32 0.0, %v512
      %v514 = vpop.f32.mrb[0].mxu0
      %515 = vmatprep.mubr.f32.mxu0 0.0
      %516 = vmatmul.mubr.f32.gmra.mrb[0].mxu0 %v390
      %v517 = vpop.f32.mrb[0].mxu0
      %v518 = vadd.f32 0.0, %v517
      %v519 = vpop.f32.mrb[0].mxu0
      %520 = vmatprep.mubr.f32.mxu0 0.0
      %521 = vmatmul.mubr.f32.gmra.mrb[0].mxu0 %v393
      %v522 = vpop.f32.mrb[0].mxu0
      %v523 = vadd.f32 0.0, %v522
      %v524 = vpop.f32.mrb[0].mxu0
      %525 = vmatprep.mubr.f32.mxu0 0.0
      %526 = vmatmul.mubr.f32.gmra.mrb[0].mxu0 %v396
      %v527 = vpop.f32.mrb[0].mxu0
      %v528 = vadd.f32 0.0, %v527
      %v529 = vpop.f32.mrb[0].mxu0
      %530 = vmatprep.mubr.f32.mxu0 0.0
      %531 = vmatmul.mubr.f32.gmra.mrb[0].mxu0 %v399
      %v532 = vpop.f32.mrb[0].mxu0
      %v533 = vadd.f32 0.0, %v532
      %v534 = vpop.f32.mrb[0].mxu0
      %535 = vmatprep.mubr.f32.mxu0 0.0
      %536 = vmatmul.mubr.f32.gmra.mrb[0].mxu0 %v402
      %v537 = vpop.f32.mrb[0].mxu0
      %v538 = vadd.f32 0.0, %v537
      %v539 = vpop.f32.mrb[0].mxu0
      %540 = vmatprep.mubr.f32.mxu0 0.0
      %541 = vmatmul.mubr.f32.gmra.mrb[0].mxu0 %v405
      %v542 = vpop.f32.mrb[0].mxu0
      %v543 = vadd.f32 0.0, %v542
      %v544 = vpop.f32.mrb[0].mxu0
      %545 = vmatprep.mubr.f32.mxu0 0.0
      %546 = vmatmul.mubr.f32.gmra.mrb[0].mxu0 %v408
      %v547 = vpop.f32.mrb[0].mxu0
      %v548 = vadd.f32 0.0, %v547
      %v549 = vpop.f32.mrb[0].mxu0
      %550 = vmatprep.mubr.f32.mxu0 0.0
      %551 = vmatmul.mubr.f32.gmra.mrb[0].mxu0 %v411
      %v552 = vpop.f32.mrb[0].mxu0
      %v553 = vadd.f32 0.0, %v552
      %v554 = vpop.f32.mrb[0].mxu0
      %555 = vmatprep.mubr.f32.mxu0 0.0
      %556 = vmatmul.mubr.f32.gmra.mrb[0].mxu0 %v414
      %v557 = vpop.f32.mrb[0].mxu0
      %v558 = vadd.f32 0.0, %v557
      %v559 = vpop.f32.mrb[0].mxu0
      %560 = vdwg.mxu0
      %v562 = vlaneseq
      %v563 = vshrl.u32 %v562, 7
      %v564 = vsub.s32 0, %v563
      %v565 = vrot.slane %v306, %v564
      %v567 = vmul.f32 %v483, %v565
      %v568 = vmul.f32 %v488, %v565
      %v569 = vmul.f32 %v493, %v565
      %v570 = vmul.f32 %v498, %v565
      %v571 = vmul.f32 %v503, %v565
      %v572 = vmul.f32 %v508, %v565
      %v573 = vmul.f32 %v513, %v565
      %v574 = vmul.f32 %v518, %v565
      %v575 = vmul.f32 %v523, %v565
      %v576 = vmul.f32 %v528, %v565
      %v577 = vmul.f32 %v533, %v565
      %v578 = vmul.f32 %v538, %v565
      %v579 = vmul.f32 %v543, %v565
      %v580 = vmul.f32 %v548, %v565
      %v581 = vmul.f32 %v553, %v565
      %v582 = vmul.f32 %v558, %v565
      %v584 = vlaneseq
      %v585 = vshrl.u32 %v584, 7
      %v586 = vsub.s32 0, %v585
      %v587 = vrot.slane %v307, %v586
      %v589 = vadd.f32 %v567, %v587
      %v590 = vadd.f32 %v568, %v587
      %v591 = vadd.f32 %v569, %v587
      %v592 = vadd.f32 %v570, %v587
      %v593 = vadd.f32 %v571, %v587
      %v594 = vadd.f32 %v572, %v587
      %v595 = vadd.f32 %v573, %v587
      %v596 = vadd.f32 %v574, %v587
      %v597 = vadd.f32 %v575, %v587
      %v598 = vadd.f32 %v576, %v587
      %v599 = vadd.f32 %v577, %v587
      %v600 = vadd.f32 %v578, %v587
      %v601 = vadd.f32 %v579, %v587
      %v602 = vadd.f32 %v580, %v587
      %v603 = vadd.f32 %v581, %v587
      %v604 = vadd.f32 %v582, %v587
      %vm605 = vcmp.ge.f32.partialorder %v589, 0.0
      %vm606 = vcmp.ge.f32.partialorder %v590, 0.0
      %vm607 = vcmp.ge.f32.partialorder %v591, 0.0
      %vm608 = vcmp.ge.f32.partialorder %v592, 0.0
      %vm609 = vcmp.ge.f32.partialorder %v593, 0.0
      %vm610 = vcmp.ge.f32.partialorder %v594, 0.0
      %vm611 = vcmp.ge.f32.partialorder %v595, 0.0
      %vm612 = vcmp.ge.f32.partialorder %v596, 0.0
      %vm613 = vcmp.ge.f32.partialorder %v597, 0.0
      %vm614 = vcmp.ge.f32.partialorder %v598, 0.0
      %vm615 = vcmp.ge.f32.partialorder %v599, 0.0
      %vm616 = vcmp.ge.f32.partialorder %v600, 0.0
      %vm617 = vcmp.ge.f32.partialorder %v601, 0.0
      %vm618 = vcmp.ge.f32.partialorder %v602, 0.0
      %vm619 = vcmp.ge.f32.partialorder %v603, 0.0
      %vm620 = vcmp.ge.f32.partialorder %v604, 0.0
      %v621 = vmul.f32 %v589, 0.1
      %v622 = vmul.f32 %v590, 0.1
      %v623 = vmul.f32 %v591, 0.1
      %v624 = vmul.f32 %v592, 0.1
      %v625 = vmul.f32 %v593, 0.1
      %v626 = vmul.f32 %v594, 0.1
      %v627 = vmul.f32 %v595, 0.1
      %v628 = vmul.f32 %v596, 0.1
      %v629 = vmul.f32 %v597, 0.1
      %v630 = vmul.f32 %v598, 0.1
      %v631 = vmul.f32 %v599, 0.1
      %v632 = vmul.f32 %v600, 0.1
      %v633 = vmul.f32 %v601, 0.1
      %v634 = vmul.f32 %v602, 0.1
      %v635 = vmul.f32 %v603, 0.1
      %v636 = vmul.f32 %v604, 0.1
      %v637 = vsel %vm605, %v589, %v621
      %v638 = vsel %vm606, %v590, %v622
      %v639 = vsel %vm607, %v591, %v623
      %v640 = vsel %vm608, %v592, %v624
      %v641 = vsel %vm609, %v593, %v625
      %v642 = vsel %vm610, %v594, %v626
      %v643 = vsel %vm611, %v595, %v627
      %v644 = vsel %vm612, %v596, %v628
      %v645 = vsel %vm613, %v597, %v629
      %v646 = vsel %vm614, %v598, %v630
      %v647 = vsel %vm615, %v599, %v631
      %v648 = vsel %vm616, %v600, %v632
      %v649 = vsel %vm617, %v601, %v633
      %v650 = vsel %vm618, %v602, %v634
      %v651 = vsel %vm619, %v603, %v635
      %v652 = vsel %vm620, %v604, %v636
      %s653 = scalar_lea.vmem [#allocation2], 32
      %654 = vst.msk [vmem:[%s653 + $0x8] sm:$0xff] %vm308, %v637
      %655 = vst.msk [vmem:[%s653 + $0x10] sm:$0xff] %vm308, %v638
      %656 = vst.msk [vmem:[%s653 + $0x28] sm:$0xff] %vm308, %v639
      %657 = vst.msk [vmem:[%s653 + $0x30] sm:$0xff] %vm308, %v640
      %658 = vst.msk [vmem:[%s653 + $0x48] sm:$0xff] %vm308, %v641
      %659 = vst.msk [vmem:[%s653 + $0x50] sm:$0xff] %vm308, %v642
      %660 = vst.msk [vmem:[%s653 + $0x68] sm:$0xff] %vm308, %v643
      %661 = vst.msk [vmem:[%s653 + $0x70] sm:$0xff] %vm308, %v644
      %662 = vst.msk [vmem:[%s653 + $0x88] sm:$0xff] %vm308, %v645
      %663 = vst.msk [vmem:[%s653 + $0x90] sm:$0xff] %vm308, %v646
      %664 = vst.msk [vmem:[%s653 + $0xa8] sm:$0xff] %vm308, %v647
      %665 = vst.msk [vmem:[%s653 + $0xb0] sm:$0xff] %vm308, %v648
      %666 = vst.msk [vmem:[%s653 + $0xc8] sm:$0xff] %vm308, %v649
      %667 = vst.msk [vmem:[%s653 + $0xd0] sm:$0xff] %vm308, %v650
      %668 = vst.msk [vmem:[%s653 + $0xe8] sm:$0xff] %vm308, %v651
      %669 = vst.msk [vmem:[%s653 + $0xf0] sm:$0xff] %vm308, %v652
      %p670 = scmp.gt.s32.totalorder %s304, 0
      // Predicated region
      $region49: #{tpu_custom_call.1} parent=47 // pred_check
        %p671 = pneg %p670
      $region50: #{tpu_custom_call.1} parent=47 // pred_check_branch
        %673 = sbr.rel (%p671) target = $region52
      $region51: #{tpu_custom_call.1} parent=47 // pred_region
        %s674 = ssub.s32 %s304, 1
        %s675 = smul.u32 %s674, 16
        %s676 = scalar_lea.vmem %s292, %s675
        %v677 = vld [vmem:[%s676] sm:$0xff]
        %v678 = vld [vmem:[%s676 + $0x8] sm:$0xff]
        %v680 = vsel %vm367, %v677, 0
        %v683 = vsel %vm367, %v678, 0
        %685 = vmatprep.subr.mxu0 0.0
        %686 = vmatpush1.msra.mxu0 %v305
        %687 = vmatprep.subr.mxu0 0.0
        %688 = vmatpush1.msra.mxu0 0.0
        %689 = vmatprep.subr.mxu0 0.0
        %690 = vmatpush1.msra.mxu0 0.0
        %691 = vmatprep.subr.mxu0 0.0
        %692 = vmatpush1.msra.mxu0 0.0
        %693 = vmatprep.subr.mxu0 0.0
        %694 = vmatpush1.msra.mxu0 0.0
        %695 = vmatprep.subr.mxu0 0.0
        %696 = vmatpush1.msra.mxu0 0.0
        %697 = vmatprep.subr.mxu0 0.0
        %698 = vmatpush1.msra.mxu0 0.0
        %699 = vmatprep.subr.mxu0 0.0
        %700 = vmatpush1.msra.mxu0 0.0
        %701 = vmatprep.subr.mxu0 0.0
        %702 = vmatpush1.msra.mxu0 0.0
        %703 = vmatprep.subr.mxu0 0.0
        %704 = vmatpush1.msra.mxu0 0.0
        %705 = vmatprep.subr.mxu0 0.0
        %706 = vmatpush1.msra.mxu0 0.0
        %707 = vmatprep.subr.mxu0 0.0
        %708 = vmatpush1.msra.mxu0 0.0
        %709 = vmatprep.subr.mxu0 0.0
        %710 = vmatpush1.msra.mxu0 0.0
        %711 = vmatprep.subr.mxu0 0.0
        %712 = vmatpush1.msra.mxu0 0.0
        %713 = vmatprep.subr.mxu0 0.0
        %714 = vmatpush1.msra.mxu0 0.0
        %715 = vmatprep.subr.mxu0 0.0
        %716 = vmatpush1.msra.mxu0 0.0
        %717 = vmatprep.subr.mxu0 0.0
        %718 = vmatpush1.msra.mxu0 0.0
        %719 = vmatprep.subr.mxu0 0.0
        %720 = vmatpush1.msra.mxu0 0.0
        %721 = vmatprep.subr.mxu0 0.0
        %722 = vmatpush1.msra.mxu0 0.0
        %723 = vmatprep.subr.mxu0 0.0
        %724 = vmatpush1.msra.mxu0 0.0
        %725 = vmatprep.subr.mxu0 0.0
        %726 = vmatpush1.msra.mxu0 0.0
        %727 = vmatprep.subr.mxu0 0.0
        %728 = vmatpush1.msra.mxu0 0.0
        %729 = vmatprep.subr.mxu0 0.0
        %730 = vmatpush1.msra.mxu0 0.0
        %731 = vmatprep.subr.mxu0 0.0
        %732 = vmatpush1.msra.mxu0 0.0
        %733 = vmatprep.subr.mxu0 0.0
        %734 = vmatpush1.msra.mxu0 0.0
        %735 = vmatprep.subr.mxu0 0.0
        %736 = vmatpush1.msra.mxu0 0.0
        %737 = vmatprep.subr.mxu0 0.0
        %738 = vmatpush1.msra.mxu0 0.0
        %739 = vmatprep.subr.mxu0 0.0
        %740 = vmatpush1.msra.mxu0 0.0
        %741 = vmatprep.subr.mxu0 0.0
        %742 = vmatpush1.msra.mxu0 0.0
        %743 = vmatprep.subr.mxu0 0.0
        %744 = vmatpush1.msra.mxu0 0.0
        %745 = vmatprep.subr.mxu0 0.0
        %746 = vmatpush1.msra.mxu0 0.0
        %747 = vmatprep.subr.mxu0 0.0
        %748 = vmatpush1.msra.mxu0 0.0
        %749 = vmatprep.mubr.f32.mxu0 0.0
        %750 = vmatmul.mubr.f32.gmra.mrb[0].mxu0 %v680
        %v751 = vpop.f32.mrb[0].mxu0
        %v752 = vadd.f32 0.0, %v751
        %v753 = vpop.f32.mrb[0].mxu0
        %754 = vmatprep.mubr.f32.mxu0 0.0
        %755 = vmatmul.mubr.f32.gmra.mrb[0].mxu0 %v683
        %v756 = vpop.f32.mrb[0].mxu0
        %v757 = vadd.f32 0.0, %v756
        %v758 = vpop.f32.mrb[0].mxu0
        %759 = vdwg.mxu0
        %v760 = vmul.f32 %v752, %v565
        %v761 = vmul.f32 %v757, %v565
        %v762 = vadd.f32 %v760, %v587
        %v763 = vadd.f32 %v761, %v587
        %vm764 = vcmp.ge.f32.partialorder %v762, 0.0
        %vm765 = vcmp.ge.f32.partialorder %v763, 0.0
        %v766 = vmul.f32 %v762, 0.1
        %v767 = vmul.f32 %v763, 0.1
        %v768 = vsel %vm764, %v762, %v766
        %v769 = vsel %vm765, %v763, %v767
        %770 = vst.msk [vmem:[#allocation2 + $0x8] sm:$0xff] %vm308, %v768
        %771 = vst.msk [vmem:[#allocation2 + $0x10] sm:$0xff] %vm308, %v769
      $region52: #{tpu_custom_call.1} parent=47 // pred_fallthru
        _
      %s772 = sadd.s32 %s304, 8
      %p773 = scmp.lt.s32.totalorder %s772, 16
      // Predicated region
      $region53: #{tpu_custom_call.1} parent=47 // pred_check
        %p774 = pneg %p773
      $region54: #{tpu_custom_call.1} parent=47 // pred_check_branch
        %776 = sbr.rel (%p774) target = $region56
      $region55: #{tpu_custom_call.1} parent=47 // pred_region
        %s777 = smul.u32 %s772, 16
        %s778 = scalar_lea.vmem %s292, %s777
        %v779 = vld [vmem:[%s778] sm:$0xff]
        %v780 = vld [vmem:[%s778 + $0x8] sm:$0xff]
        %v782 = vsel %vm367, %v779, 0
        %v785 = vsel %vm367, %v780, 0
        %787 = vmatprep.subr.mxu0 0.0
        %788 = vmatpush1.msra.mxu0 %v305
        %789 = vmatprep.subr.mxu0 0.0
        %790 = vmatpush1.msra.mxu0 0.0
        %791 = vmatprep.subr.mxu0 0.0
        %792 = vmatpush1.msra.mxu0 0.0
        %793 = vmatprep.subr.mxu0 0.0
        %794 = vmatpush1.msra.mxu0 0.0
        %795 = vmatprep.subr.mxu0 0.0
        %796 = vmatpush1.msra.mxu0 0.0
        %797 = vmatprep.subr.mxu0 0.0
        %798 = vmatpush1.msra.mxu0 0.0
        %799 = vmatprep.subr.mxu0 0.0
        %800 = vmatpush1.msra.mxu0 0.0
        %801 = vmatprep.subr.mxu0 0.0
        %802 = vmatpush1.msra.mxu0 0.0
        %803 = vmatprep.subr.mxu0 0.0
        %804 = vmatpush1.msra.mxu0 0.0
        %805 = vmatprep.subr.mxu0 0.0
        %806 = vmatpush1.msra.mxu0 0.0
        %807 = vmatprep.subr.mxu0 0.0
        %808 = vmatpush1.msra.mxu0 0.0
        %809 = vmatprep.subr.mxu0 0.0
        %810 = vmatpush1.msra.mxu0 0.0
        %811 = vmatprep.subr.mxu0 0.0
        %812 = vmatpush1.msra.mxu0 0.0
        %813 = vmatprep.subr.mxu0 0.0
        %814 = vmatpush1.msra.mxu0 0.0
        %815 = vmatprep.subr.mxu0 0.0
        %816 = vmatpush1.msra.mxu0 0.0
        %817 = vmatprep.subr.mxu0 0.0
        %818 = vmatpush1.msra.mxu0 0.0
        %819 = vmatprep.subr.mxu0 0.0
        %820 = vmatpush1.msra.mxu0 0.0
        %821 = vmatprep.subr.mxu0 0.0
        %822 = vmatpush1.msra.mxu0 0.0
        %823 = vmatprep.subr.mxu0 0.0
        %824 = vmatpush1.msra.mxu0 0.0
        %825 = vmatprep.subr.mxu0 0.0
        %826 = vmatpush1.msra.mxu0 0.0
        %827 = vmatprep.subr.mxu0 0.0
        %828 = vmatpush1.msra.mxu0 0.0
        %829 = vmatprep.subr.mxu0 0.0
        %830 = vmatpush1.msra.mxu0 0.0
        %831 = vmatprep.subr.mxu0 0.0
        %832 = vmatpush1.msra.mxu0 0.0
        %833 = vmatprep.subr.mxu0 0.0
        %834 = vmatpush1.msra.mxu0 0.0
        %835 = vmatprep.subr.mxu0 0.0
        %836 = vmatpush1.msra.mxu0 0.0
        %837 = vmatprep.subr.mxu0 0.0
        %838 = vmatpush1.msra.mxu0 0.0
        %839 = vmatprep.subr.mxu0 0.0
        %840 = vmatpush1.msra.mxu0 0.0
        %841 = vmatprep.subr.mxu0 0.0
        %842 = vmatpush1.msra.mxu0 0.0
        %843 = vmatprep.subr.mxu0 0.0
        %844 = vmatpush1.msra.mxu0 0.0
        %845 = vmatprep.subr.mxu0 0.0
        %846 = vmatpush1.msra.mxu0 0.0
        %847 = vmatprep.subr.mxu0 0.0
        %848 = vmatpush1.msra.mxu0 0.0
        %849 = vmatprep.subr.mxu0 0.0
        %850 = vmatpush1.msra.mxu0 0.0
        %851 = vmatprep.mubr.f32.mxu0 0.0
        %852 = vmatmul.mubr.f32.gmra.mrb[0].mxu0 %v782
        %v853 = vpop.f32.mrb[0].mxu0
        %v854 = vadd.f32 0.0, %v853
        %v855 = vpop.f32.mrb[0].mxu0
        %856 = vmatprep.mubr.f32.mxu0 0.0
        %857 = vmatmul.mubr.f32.gmra.mrb[0].mxu0 %v785
        %v858 = vpop.f32.mrb[0].mxu0
        %v859 = vadd.f32 0.0, %v858
        %v860 = vpop.f32.mrb[0].mxu0
        %861 = vdwg.mxu0
        %v862 = vmul.f32 %v854, %v565
        %v863 = vmul.f32 %v859, %v565
        %v864 = vadd.f32 %v862, %v587
        %v865 = vadd.f32 %v863, %v587
        %vm866 = vcmp.ge.f32.partialorder %v864, 0.0
        %vm867 = vcmp.ge.f32.partialorder %v865, 0.0
        %v868 = vmul.f32 %v864, 0.1
        %v869 = vmul.f32 %v865, 0.1
        %v870 = vsel %vm866, %v864, %v868
        %v871 = vsel %vm867, %v865, %v869
        %s872 = scalar_lea.vmem [#allocation2], 288
        %873 = vst.msk [vmem:[%s872 + $0x8] sm:$0xff] %vm308, %v870
        %874 = vst.msk [vmem:[%s872 + $0x10] sm:$0xff] %vm308, %v871
      $region56: #{tpu_custom_call.1} parent=47 // pred_fallthru
        _
      %v875 = vld [vmem:[%s2] sm:$0xf]
      %v876 = vld [vmem:[%s2 + $0x4] sm:$0xf]
      %v877 = vld [vmem:[%s2 + $0x8] sm:$0xf]
      %v878 = vld [vmem:[%s2 + $0xc] sm:$0xf]
      %v879 = vld [vmem:[%s2 + $0x10] sm:$0xf]
      %v880 = vld [vmem:[%s2 + $0x14] sm:$0xf]
      %v881 = vld [vmem:[%s2 + $0x18] sm:$0xf]
      %v882 = vld [vmem:[%s2 + $0x1c] sm:$0xf]
      %v883 = vld [vmem:[%s2 + $0x20] sm:$0xf]
      %v884 = vld [vmem:[#allocation2] sm:$0xff]
      %v885 = vld [vmem:[#allocation2 + $0x8] sm:$0xff]
      %v886 = vld [vmem:[#allocation2 + $0x10] sm:$0xff]
      %v887 = vld [vmem:[#allocation2 + $0x18] sm:$0xff]
      %v888 = vld [vmem:[#allocation2 + $0x20] sm:$0xff]
      %v889 = vld [vmem:[#allocation2 + $0x28] sm:$0xff]
      %v890 = vld [vmem:[#allocation2 + $0x30] sm:$0xff]
      %v891 = vld [vmem:[#allocation2 + $0x38] sm:$0xff]
      %v892 = vld [vmem:[#allocation2 + $0x40] sm:$0xff]
      %v893 = vld [vmem:[#allocation2 + $0x48] sm:$0xff]
      %v894 = vld [vmem:[#allocation2 + $0x50] sm:$0xff]
      %v895 = vld [vmem:[#allocation2 + $0x58] sm:$0xff]
      %v896 = vld [vmem:[#allocation2 + $0x60] sm:$0xff]
      %v897 = vld [vmem:[#allocation2 + $0x68] sm:$0xff]
      %v898 = vld [vmem:[#allocation2 + $0x70] sm:$0xff]
      %v899 = vld [vmem:[#allocation2 + $0x78] sm:$0xff]
      %v900 = vld [vmem:[#allocation2 + $0x80] sm:$0xff]
      %v901 = vld [vmem:[#allocation2 + $0x88] sm:$0xff]
      %v902 = vld [vmem:[#allocation2 + $0x90] sm:$0xff]
      %v903 = vld [vmem:[#allocation2 + $0x98] sm:$0xff]
      %v904 = vld [vmem:[#allocation2 + $0xa0] sm:$0xff]
      %v905 = vld [vmem:[#allocation2 + $0xa8] sm:$0xff]
      %v906 = vld [vmem:[#allocation2 + $0xb0] sm:$0xff]
      %v907 = vld [vmem:[#allocation2 + $0xb8] sm:$0xff]
      %v908 = vld [vmem:[#allocation2 + $0xc0] sm:$0xff]
      %v909 = vld [vmem:[#allocation2 + $0xc8] sm:$0xff]
      %v910 = vld [vmem:[#allocation2 + $0xd0] sm:$0xff]
      %v911 = vld [vmem:[#allocation2 + $0xd8] sm:$0xff]
      %v912 = vld [vmem:[#allocation2 + $0xe0] sm:$0xff]
      %v913 = vld [vmem:[#allocation2 + $0xe8] sm:$0xff]
      %v914 = vld [vmem:[#allocation2 + $0xf0] sm:$0xff]
      %v915 = vld [vmem:[#allocation2 + $0xf8] sm:$0xff]
      %vm940 = vcmask 1040384
      %v941 = vrot.slane %v884, 7
      %v942 = vrot.slane %v885, 7
      %v943 = vsel %vm940, %v941, %v942
      %v944 = vrot.slane %v886, 7
      %v945 = vsel %vm940, %v942, %v944
      %v946 = vrot.slane %v888, 7
      %v947 = vrot.slane %v889, 7
      %v948 = vsel %vm940, %v946, %v947
      %v949 = vrot.slane %v890, 7
      %v950 = vsel %vm940, %v947, %v949
      %v951 = vrot.slane %v892, 7
      %v952 = vrot.slane %v893, 7
      %v953 = vsel %vm940, %v951, %v952
      %v954 = vrot.slane %v894, 7
      %v955 = vsel %vm940, %v952, %v954
      %v956 = vrot.slane %v896, 7
      %v957 = vrot.slane %v897, 7
      %v958 = vsel %vm940, %v956, %v957
      %v959 = vrot.slane %v898, 7
      %v960 = vsel %vm940, %v957, %v959
      %v961 = vrot.slane %v900, 7
      %v962 = vrot.slane %v901, 7
      %v963 = vsel %vm940, %v961, %v962
      %v964 = vrot.slane %v902, 7
      %v965 = vsel %vm940, %v962, %v964
      %v966 = vrot.slane %v904, 7
      %v967 = vrot.slane %v905, 7
      %v968 = vsel %vm940, %v966, %v967
      %v969 = vrot.slane %v906, 7
      %v970 = vsel %vm940, %v967, %v969
      %v971 = vrot.slane %v908, 7
      %v972 = vrot.slane %v909, 7
      %v973 = vsel %vm940, %v971, %v972
      %v974 = vrot.slane %v910, 7
      %v975 = vsel %vm940, %v972, %v974
      %v976 = vrot.slane %v912, 7
      %v977 = vrot.slane %v913, 7
      %v978 = vsel %vm940, %v976, %v977
      %v979 = vrot.slane %v914, 7
      %v980 = vsel %vm940, %v977, %v979
      %v981 = vsel %vm308, %v885, 0
      %v983 = vsel %vm308, %v886, 0
      %v985 = vsel %vm308, %v889, 0
      %v987 = vsel %vm308, %v890, 0
      %v989 = vsel %vm308, %v893, 0
      %v991 = vsel %vm308, %v894, 0
      %v993 = vsel %vm308, %v897, 0
      %v995 = vsel %vm308, %v898, 0
      %v997 = vsel %vm308, %v901, 0
      %v999 = vsel %vm308, %v902, 0
      %v1001 = vsel %vm308, %v905, 0
      %v1003 = vsel %vm308, %v906, 0
      %v1005 = vsel %vm308, %v909, 0
      %v1007 = vsel %vm308, %v910, 0
      %v1009 = vsel %vm308, %v913, 0
      %v1011 = vsel %vm308, %v914, 0
      %vm1013 = vcmask 1043456
      %v1015 = vsel %vm1013, %v876, 0
      %1017 = vmatprep.subr.mxu0 0.0
      %1018 = vmatpush1.msra.mxu0 %v1015
      %1019 = vmatprep.subr.mxu0 0.0
      %1020 = vmatpush1.msra.mxu0 0.0
      %1021 = vmatprep.subr.mxu0 0.0
      %1022 = vmatpush1.msra.mxu0 0.0
      %1023 = vmatprep.subr.mxu0 0.0
      %1024 = vmatpush1.msra.mxu0 0.0
      %1025 = vmatprep.subr.mxu0 0.0
      %1026 = vmatpush1.msra.mxu0 0.0
      %1027 = vmatprep.subr.mxu0 0.0
      %1028 = vmatpush1.msra.mxu0 0.0
      %1029 = vmatprep.subr.mxu0 0.0
      %1030 = vmatpush1.msra.mxu0 0.0
      %1031 = vmatprep.subr.mxu0 0.0
      %1032 = vmatpush1.msra.mxu0 0.0
      %1033 = vmatprep.subr.mxu0 0.0
      %1034 = vmatpush1.msra.mxu0 0.0
      %1035 = vmatprep.subr.mxu0 0.0
      %1036 = vmatpush1.msra.mxu0 0.0
      %1037 = vmatprep.subr.mxu0 0.0
      %1038 = vmatpush1.msra.mxu0 0.0
      %1039 = vmatprep.subr.mxu0 0.0
      %1040 = vmatpush1.msra.mxu0 0.0
      %1041 = vmatprep.subr.mxu0 0.0
      %1042 = vmatpush1.msra.mxu0 0.0
      %1043 = vmatprep.subr.mxu0 0.0
      %1044 = vmatpush1.msra.mxu0 0.0
      %1045 = vmatprep.subr.mxu0 0.0
      %1046 = vmatpush1.msra.mxu0 0.0
      %1047 = vmatprep.subr.mxu0 0.0
      %1048 = vmatpush1.msra.mxu0 0.0
      %1049 = vmatprep.subr.mxu0 0.0
      %1050 = vmatpush1.msra.mxu0 0.0
      %1051 = vmatprep.subr.mxu0 0.0
      %1052 = vmatpush1.msra.mxu0 0.0
      %1053 = vmatprep.subr.mxu0 0.0
      %1054 = vmatpush1.msra.mxu0 0.0
      %1055 = vmatprep.subr.mxu0 0.0
      %1056 = vmatpush1.msra.mxu0 0.0
      %1057 = vmatprep.subr.mxu0 0.0
      %1058 = vmatpush1.msra.mxu0 0.0
      %1059 = vmatprep.subr.mxu0 0.0
      %1060 = vmatpush1.msra.mxu0 0.0
      %1061 = vmatprep.subr.mxu0 0.0
      %1062 = vmatpush1.msra.mxu0 0.0
      %1063 = vmatprep.subr.mxu0 0.0
      %1064 = vmatpush1.msra.mxu0 0.0
      %1065 = vmatprep.subr.mxu0 0.0
      %1066 = vmatpush1.msra.mxu0 0.0
      %1067 = vmatprep.subr.mxu0 0.0
      %1068 = vmatpush1.msra.mxu0 0.0
      %1069 = vmatprep.subr.mxu0 0.0
      %1070 = vmatpush1.msra.mxu0 0.0
      %1071 = vmatprep.subr.mxu0 0.0
      %1072 = vmatpush1.msra.mxu0 0.0
      %1073 = vmatprep.subr.mxu0 0.0
      %1074 = vmatpush1.msra.mxu0 0.0
      %1075 = vmatprep.subr.mxu0 0.0
      %1076 = vmatpush1.msra.mxu0 0.0
      %1077 = vmatprep.subr.mxu0 0.0
      %1078 = vmatpush1.msra.mxu0 0.0
      %1079 = vmatprep.subr.mxu0 0.0
      %1080 = vmatpush1.msra.mxu0 0.0
      %1081 = vmatprep.mubr.f32.mxu0 0.0
      %1082 = vmatmul.mubr.f32.gmra.mrb[0].mxu0 %v981
      %v1083 = vpop.f32.mrb[0].mxu0
      %v1084 = vadd.f32 0.0, %v1083
      %v1085 = vpop.f32.mrb[0].mxu0
      %1086 = vmatprep.mubr.f32.mxu0 0.0
      %1087 = vmatmul.mubr.f32.gmra.mrb[0].mxu0 %v983
      %v1088 = vpop.f32.mrb[0].mxu0
      %v1089 = vadd.f32 0.0, %v1088
      %v1090 = vpop.f32.mrb[0].mxu0
      %1091 = vmatprep.mubr.f32.mxu0 0.0
      %1092 = vmatmul.mubr.f32.gmra.mrb[0].mxu0 %v985
      %v1093 = vpop.f32.mrb[0].mxu0
      %v1094 = vadd.f32 0.0, %v1093
      %v1095 = vpop.f32.mrb[0].mxu0
      %1096 = vmatprep.mubr.f32.mxu0 0.0
      %1097 = vmatmul.mubr.f32.gmra.mrb[0].mxu0 %v987
      %v1098 = vpop.f32.mrb[0].mxu0
      %v1099 = vadd.f32 0.0, %v1098
      %v1100 = vpop.f32.mrb[0].mxu0
      %1101 = vmatprep.mubr.f32.mxu0 0.0
      %1102 = vmatmul.mubr.f32.gmra.mrb[0].mxu0 %v989
      %v1103 = vpop.f32.mrb[0].mxu0
      %v1104 = vadd.f32 0.0, %v1103
      %v1105 = vpop.f32.mrb[0].mxu0
      %1106 = vmatprep.mubr.f32.mxu0 0.0
      %1107 = vmatmul.mubr.f32.gmra.mrb[0].mxu0 %v991
      %v1108 = vpop.f32.mrb[0].mxu0
      %v1109 = vadd.f32 0.0, %v1108
      %v1110 = vpop.f32.mrb[0].mxu0
      %1111 = vmatprep.mubr.f32.mxu0 0.0
      %1112 = vmatmul.mubr.f32.gmra.mrb[0].mxu0 %v993
      %v1113 = vpop.f32.mrb[0].mxu0
      %v1114 = vadd.f32 0.0, %v1113
      %v1115 = vpop.f32.mrb[0].mxu0
      %1116 = vmatprep.mubr.f32.mxu0 0.0
      %1117 = vmatmul.mubr.f32.gmra.mrb[0].mxu0 %v995
      %v1118 = vpop.f32.mrb[0].mxu0
      %v1119 = vadd.f32 0.0, %v1118
      %v1120 = vpop.f32.mrb[0].mxu0
      %1121 = vmatprep.mubr.f32.mxu0 0.0
      %1122 = vmatmul.mubr.f32.gmra.mrb[0].mxu0 %v997
      %v1123 = vpop.f32.mrb[0].mxu0
      %v1124 = vadd.f32 0.0, %v1123
      %v1125 = vpop.f32.mrb[0].mxu0
      %1126 = vmatprep.mubr.f32.mxu0 0.0
      %1127 = vmatmul.mubr.f32.gmra.mrb[0].mxu0 %v999
      %v1128 = vpop.f32.mrb[0].mxu0
      %v1129 = vadd.f32 0.0, %v1128
      %v1130 = vpop.f32.mrb[0].mxu0
      %1131 = vmatprep.mubr.f32.mxu0 0.0
      %1132 = vmatmul.mubr.f32.gmra.mrb[0].mxu0 %v1001
      %v1133 = vpop.f32.mrb[0].mxu0
      %v1134 = vadd.f32 0.0, %v1133
      %v1135 = vpop.f32.mrb[0].mxu0
      %1136 = vmatprep.mubr.f32.mxu0 0.0
      %1137 = vmatmul.mubr.f32.gmra.mrb[0].mxu0 %v1003
      %v1138 = vpop.f32.mrb[0].mxu0
      %v1139 = vadd.f32 0.0, %v1138
      %v1140 = vpop.f32.mrb[0].mxu0
      %1141 = vmatprep.mubr.f32.mxu0 0.0
      %1142 = vmatmul.mubr.f32.gmra.mrb[0].mxu0 %v1005
      %v1143 = vpop.f32.mrb[0].mxu0
      %v1144 = vadd.f32 0.0, %v1143
      %v1145 = vpop.f32.mrb[0].mxu0
      %1146 = vmatprep.mubr.f32.mxu0 0.0
      %1147 = vmatmul.mubr.f32.gmra.mrb[0].mxu0 %v1007
      %v1148 = vpop.f32.mrb[0].mxu0
      %v1149 = vadd.f32 0.0, %v1148
      %v1150 = vpop.f32.mrb[0].mxu0
      %1151 = vmatprep.mubr.f32.mxu0 0.0
      %1152 = vmatmul.mubr.f32.gmra.mrb[0].mxu0 %v1009
      %v1153 = vpop.f32.mrb[0].mxu0
      %v1154 = vadd.f32 0.0, %v1153
      %v1155 = vpop.f32.mrb[0].mxu0
      %1156 = vmatprep.mubr.f32.mxu0 0.0
      %1157 = vmatmul.mubr.f32.gmra.mrb[0].mxu0 %v1011
      %v1158 = vpop.f32.mrb[0].mxu0
      %v1159 = vadd.f32 0.0, %v1158
      %v1160 = vpop.f32.mrb[0].mxu0
      %1161 = vdwg.mxu0
      %v1162 = vsel %vm308, %v943, 0
      %v1164 = vsel %vm308, %v945, 0
      %v1166 = vsel %vm308, %v948, 0
      %v1168 = vsel %vm308, %v950, 0
      %v1170 = vsel %vm308, %v953, 0
      %v1172 = vsel %vm308, %v955, 0
      %v1174 = vsel %vm308, %v958, 0
      %v1176 = vsel %vm308, %v960, 0
      %v1178 = vsel %vm308, %v963, 0
      %v1180 = vsel %vm308, %v965, 0
      %v1182 = vsel %vm308, %v968, 0
      %v1184 = vsel %vm308, %v970, 0
      %v1186 = vsel %vm308, %v973, 0
      %v1188 = vsel %vm308, %v975, 0
      %v1190 = vsel %vm308, %v978, 0
      %v1192 = vsel %vm308, %v980, 0
      %v1195 = vsel %vm1013, %v875, 0
      %1197 = vmatprep.subr.mxu0 0.0
      %1198 = vmatpush1.msra.mxu0 %v1195
      %1199 = vmatprep.subr.mxu0 0.0
      %1200 = vmatpush1.msra.mxu0 0.0
      %1201 = vmatprep.subr.mxu0 0.0
      %1202 = vmatpush1.msra.mxu0 0.0
      %1203 = vmatprep.subr.mxu0 0.0
      %1204 = vmatpush1.msra.mxu0 0.0
      %1205 = vmatprep.subr.mxu0 0.0
      %1206 = vmatpush1.msra.mxu0 0.0
      %1207 = vmatprep.subr.mxu0 0.0
      %1208 = vmatpush1.msra.mxu0 0.0
      %1209 = vmatprep.subr.mxu0 0.0
      %1210 = vmatpush1.msra.mxu0 0.0
      %1211 = vmatprep.subr.mxu0 0.0
      %1212 = vmatpush1.msra.mxu0 0.0
      %1213 = vmatprep.subr.mxu0 0.0
      %1214 = vmatpush1.msra.mxu0 0.0
      %1215 = vmatprep.subr.mxu0 0.0
      %1216 = vmatpush1.msra.mxu0 0.0
      %1217 = vmatprep.subr.mxu0 0.0
      %1218 = vmatpush1.msra.mxu0 0.0
      %1219 = vmatprep.subr.mxu0 0.0
      %1220 = vmatpush1.msra.mxu0 0.0
      %1221 = vmatprep.subr.mxu0 0.0
      %1222 = vmatpush1.msra.mxu0 0.0
      %1223 = vmatprep.subr.mxu0 0.0
      %1224 = vmatpush1.msra.mxu0 0.0
      %1225 = vmatprep.subr.mxu0 0.0
      %1226 = vmatpush1.msra.mxu0 0.0
      %1227 = vmatprep.subr.mxu0 0.0
      %1228 = vmatpush1.msra.mxu0 0.0
      %1229 = vmatprep.subr.mxu0 0.0
      %1230 = vmatpush1.msra.mxu0 0.0
      %1231 = vmatprep.subr.mxu0 0.0
      %1232 = vmatpush1.msra.mxu0 0.0
      %1233 = vmatprep.subr.mxu0 0.0
      %1234 = vmatpush1.msra.mxu0 0.0
      %1235 = vmatprep.subr.mxu0 0.0
      %1236 = vmatpush1.msra.mxu0 0.0
      %1237 = vmatprep.subr.mxu0 0.0
      %1238 = vmatpush1.msra.mxu0 0.0
      %1239 = vmatprep.subr.mxu0 0.0
      %1240 = vmatpush1.msra.mxu0 0.0
      %1241 = vmatprep.subr.mxu0 0.0
      %1242 = vmatpush1.msra.mxu0 0.0
      %1243 = vmatprep.subr.mxu0 0.0
      %1244 = vmatpush1.msra.mxu0 0.0
      %1245 = vmatprep.subr.mxu0 0.0
      %1246 = vmatpush1.msra.mxu0 0.0
      %1247 = vmatprep.subr.mxu0 0.0
      %1248 = vmatpush1.msra.mxu0 0.0
      %1249 = vmatprep.subr.mxu0 0.0
      %1250 = vmatpush1.msra.mxu0 0.0
      %1251 = vmatprep.subr.mxu0 0.0
      %1252 = vmatpush1.msra.mxu0 0.0
      %1253 = vmatprep.subr.mxu0 0.0
      %1254 = vmatpush1.msra.mxu0 0.0
      %1255 = vmatprep.subr.mxu0 0.0
      %1256 = vmatpush1.msra.mxu0 0.0
      %1257 = vmatprep.subr.mxu0 0.0
      %1258 = vmatpush1.msra.mxu0 0.0
      %1259 = vmatprep.subr.mxu0 0.0
      %1260 = vmatpush1.msra.mxu0 0.0
      %1261 = vmatprep.mubr.f32.mxu0 0.0
      %1262 = vmatmul.mubr.f32.gmra.mrb[0].mxu0 %v1162
      %v1263 = vpop.f32.mrb[0].mxu0
      %v1264 = vadd.f32 %v1084, %v1263
      %v1265 = vpop.f32.mrb[0].mxu0
      %1266 = vmatprep.mubr.f32.mxu0 0.0
      %1267 = vmatmul.mubr.f32.gmra.mrb[0].mxu0 %v1164
      %v1268 = vpop.f32.mrb[0].mxu0
      %v1269 = vadd.f32 %v1089, %v1268
      %v1270 = vpop.f32.mrb[0].mxu0
      %1271 = vmatprep.mubr.f32.mxu0 0.0
      %1272 = vmatmul.mubr.f32.gmra.mrb[0].mxu0 %v1166
      %v1273 = vpop.f32.mrb[0].mxu0
      %v1274 = vadd.f32 %v1094, %v1273
      %v1275 = vpop.f32.mrb[0].mxu0
      %1276 = vmatprep.mubr.f32.mxu0 0.0
      %1277 = vmatmul.mubr.f32.gmra.mrb[0].mxu0 %v1168
      %v1278 = vpop.f32.mrb[0].mxu0
      %v1279 = vadd.f32 %v1099, %v1278
      %v1280 = vpop.f32.mrb[0].mxu0
      %1281 = vmatprep.mubr.f32.mxu0 0.0
      %1282 = vmatmul.mubr.f32.gmra.mrb[0].mxu0 %v1170
      %v1283 = vpop.f32.mrb[0].mxu0
      %v1284 = vadd.f32 %v1104, %v1283
      %v1285 = vpop.f32.mrb[0].mxu0
      %1286 = vmatprep.mubr.f32.mxu0 0.0
      %1287 = vmatmul.mubr.f32.gmra.mrb[0].mxu0 %v1172
      %v1288 = vpop.f32.mrb[0].mxu0
      %v1289 = vadd.f32 %v1109, %v1288
      %v1290 = vpop.f32.mrb[0].mxu0
      %1291 = vmatprep.mubr.f32.mxu0 0.0
      %1292 = vmatmul.mubr.f32.gmra.mrb[0].mxu0 %v1174
      %v1293 = vpop.f32.mrb[0].mxu0
      %v1294 = vadd.f32 %v1114, %v1293
      %v1295 = vpop.f32.mrb[0].mxu0
      %1296 = vmatprep.mubr.f32.mxu0 0.0
      %1297 = vmatmul.mubr.f32.gmra.mrb[0].mxu0 %v1176
      %v1298 = vpop.f32.mrb[0].mxu0
      %v1299 = vadd.f32 %v1119, %v1298
      %v1300 = vpop.f32.mrb[0].mxu0
      %1301 = vmatprep.mubr.f32.mxu0 0.0
      %1302 = vmatmul.mubr.f32.gmra.mrb[0].mxu0 %v1178
      %v1303 = vpop.f32.mrb[0].mxu0
      %v1304 = vadd.f32 %v1124, %v1303
      %v1305 = vpop.f32.mrb[0].mxu0
      %1306 = vmatprep.mubr.f32.mxu0 0.0
      %1307 = vmatmul.mubr.f32.gmra.mrb[0].mxu0 %v1180
      %v1308 = vpop.f32.mrb[0].mxu0
      %v1309 = vadd.f32 %v1129, %v1308
      %v1310 = vpop.f32.mrb[0].mxu0
      %1311 = vmatprep.mubr.f32.mxu0 0.0
      %1312 = vmatmul.mubr.f32.gmra.mrb[0].mxu0 %v1182
      %v1313 = vpop.f32.mrb[0].mxu0
      %v1314 = vadd.f32 %v1134, %v1313
      %v1315 = vpop.f32.mrb[0].mxu0
      %1316 = vmatprep.mubr.f32.mxu0 0.0
      %1317 = vmatmul.mubr.f32.gmra.mrb[0].mxu0 %v1184
      %v1318 = vpop.f32.mrb[0].mxu0
      %v1319 = vadd.f32 %v1139, %v1318
      %v1320 = vpop.f32.mrb[0].mxu0
      %1321 = vmatprep.mubr.f32.mxu0 0.0
      %1322 = vmatmul.mubr.f32.gmra.mrb[0].mxu0 %v1186
      %v1323 = vpop.f32.mrb[0].mxu0
      %v1324 = vadd.f32 %v1144, %v1323
      %v1325 = vpop.f32.mrb[0].mxu0
      %1326 = vmatprep.mubr.f32.mxu0 0.0
      %1327 = vmatmul.mubr.f32.gmra.mrb[0].mxu0 %v1188
      %v1328 = vpop.f32.mrb[0].mxu0
      %v1329 = vadd.f32 %v1149, %v1328
      %v1330 = vpop.f32.mrb[0].mxu0
      %1331 = vmatprep.mubr.f32.mxu0 0.0
      %1332 = vmatmul.mubr.f32.gmra.mrb[0].mxu0 %v1190
      %v1333 = vpop.f32.mrb[0].mxu0
      %v1334 = vadd.f32 %v1154, %v1333
      %v1335 = vpop.f32.mrb[0].mxu0
      %1336 = vmatprep.mubr.f32.mxu0 0.0
      %1337 = vmatmul.mubr.f32.gmra.mrb[0].mxu0 %v1192
      %v1338 = vpop.f32.mrb[0].mxu0
      %v1339 = vadd.f32 %v1159, %v1338
      %v1340 = vpop.f32.mrb[0].mxu0
      %1341 = vdwg.mxu0
      %vm1350 = vcmask 1046528
      %v1351 = vrot.slane %v885, 1
      %v1352 = vrot.slane %v886, 1
      %v1353 = vsel %vm1350, %v1351, %v1352
      %v1354 = vrot.slane %v887, 1
      %v1355 = vsel %vm1350, %v1352, %v1354
      %v1356 = vrot.slane %v889, 1
      %v1357 = vrot.slane %v890, 1
      %v1358 = vsel %vm1350, %v1356, %v1357
      %v1359 = vrot.slane %v891, 1
      %v1360 = vsel %vm1350, %v1357, %v1359
      %v1361 = vrot.slane %v893, 1
      %v1362 = vrot.slane %v894, 1
      %v1363 = vsel %vm1350, %v1361, %v1362
      %v1364 = vrot.slane %v895, 1
      %v1365 = vsel %vm1350, %v1362, %v1364
      %v1366 = vrot.slane %v897, 1
      %v1367 = vrot.slane %v898, 1
      %v1368 = vsel %vm1350, %v1366, %v1367
      %v1369 = vrot.slane %v899, 1
      %v1370 = vsel %vm1350, %v1367, %v1369
      %v1371 = vrot.slane %v901, 1
      %v1372 = vrot.slane %v902, 1
      %v1373 = vsel %vm1350, %v1371, %v1372
      %v1374 = vrot.slane %v903, 1
      %v1375 = vsel %vm1350, %v1372, %v1374
      %v1376 = vrot.slane %v905, 1
      %v1377 = vrot.slane %v906, 1
      %v1378 = vsel %vm1350, %v1376, %v1377
      %v1379 = vrot.slane %v907, 1
      %v1380 = vsel %vm1350, %v1377, %v1379
      %v1381 = vrot.slane %v909, 1
      %v1382 = vrot.slane %v910, 1
      %v1383 = vsel %vm1350, %v1381, %v1382
      %v1384 = vrot.slane %v911, 1
      %v1385 = vsel %vm1350, %v1382, %v1384
      %v1386 = vrot.slane %v913, 1
      %v1387 = vrot.slane %v914, 1
      %v1388 = vsel %vm1350, %v1386, %v1387
      %v1389 = vrot.slane %v915, 1
      %v1390 = vsel %vm1350, %v1387, %v1389
      %v1391 = vsel %vm308, %v1353, 0
      %v1393 = vsel %vm308, %v1355, 0
      %v1395 = vsel %vm308, %v1358, 0
      %v1397 = vsel %vm308, %v1360, 0
      %v1399 = vsel %vm308, %v1363, 0
      %v1401 = vsel %vm308, %v1365, 0
      %v1403 = vsel %vm308, %v1368, 0
      %v1405 = vsel %vm308, %v1370, 0
      %v1407 = vsel %vm308, %v1373, 0
      %v1409 = vsel %vm308, %v1375, 0
      %v1411 = vsel %vm308, %v1378, 0
      %v1413 = vsel %vm308, %v1380, 0
      %v1415 = vsel %vm308, %v1383, 0
      %v1417 = vsel %vm308, %v1385, 0
      %v1419 = vsel %vm308, %v1388, 0
      %v1421 = vsel %vm308, %v1390, 0
      %v1424 = vsel %vm1013, %v877, 0
      %1426 = vmatprep.subr.mxu0 0.0
      %1427 = vmatpush1.msra.mxu0 %v1424
      %1428 = vmatprep.subr.mxu0 0.0
      %1429 = vmatpush1.msra.mxu0 0.0
      %1430 = vmatprep.subr.mxu0 0.0
      %1431 = vmatpush1.msra.mxu0 0.0
      %1432 = vmatprep.subr.mxu0 0.0
      %1433 = vmatpush1.msra.mxu0 0.0
      %1434 = vmatprep.subr.mxu0 0.0
      %1435 = vmatpush1.msra.mxu0 0.0
      %1436 = vmatprep.subr.mxu0 0.0
      %1437 = vmatpush1.msra.mxu0 0.0
      %1438 = vmatprep.subr.mxu0 0.0
      %1439 = vmatpush1.msra.mxu0 0.0
      %1440 = vmatprep.subr.mxu0 0.0
      %1441 = vmatpush1.msra.mxu0 0.0
      %1442 = vmatprep.subr.mxu0 0.0
      %1443 = vmatpush1.msra.mxu0 0.0
      %1444 = vmatprep.subr.mxu0 0.0
      %1445 = vmatpush1.msra.mxu0 0.0
      %1446 = vmatprep.subr.mxu0 0.0
      %1447 = vmatpush1.msra.mxu0 0.0
      %1448 = vmatprep.subr.mxu0 0.0
      %1449 = vmatpush1.msra.mxu0 0.0
      %1450 = vmatprep.subr.mxu0 0.0
      %1451 = vmatpush1.msra.mxu0 0.0
      %1452 = vmatprep.subr.mxu0 0.0
      %1453 = vmatpush1.msra.mxu0 0.0
      %1454 = vmatprep.subr.mxu0 0.0
      %1455 = vmatpush1.msra.mxu0 0.0
      %1456 = vmatprep.subr.mxu0 0.0
      %1457 = vmatpush1.msra.mxu0 0.0
      %1458 = vmatprep.subr.mxu0 0.0
      %1459 = vmatpush1.msra.mxu0 0.0
      %1460 = vmatprep.subr.mxu0 0.0
      %1461 = vmatpush1.msra.mxu0 0.0
      %1462 = vmatprep.subr.mxu0 0.0
      %1463 = vmatpush1.msra.mxu0 0.0
      %1464 = vmatprep.subr.mxu0 0.0
      %1465 = vmatpush1.msra.mxu0 0.0
      %1466 = vmatprep.subr.mxu0 0.0
      %1467 = vmatpush1.msra.mxu0 0.0
      %1468 = vmatprep.subr.mxu0 0.0
      %1469 = vmatpush1.msra.mxu0 0.0
      %1470 = vmatprep.subr.mxu0 0.0
      %1471 = vmatpush1.msra.mxu0 0.0
      %1472 = vmatprep.subr.mxu0 0.0
      %1473 = vmatpush1.msra.mxu0 0.0
      %1474 = vmatprep.subr.mxu0 0.0
      %1475 = vmatpush1.msra.mxu0 0.0
      %1476 = vmatprep.subr.mxu0 0.0
      %1477 = vmatpush1.msra.mxu0 0.0
      %1478 = vmatprep.subr.mxu0 0.0
      %1479 = vmatpush1.msra.mxu0 0.0
      %1480 = vmatprep.subr.mxu0 0.0
      %1481 = vmatpush1.msra.mxu0 0.0
      %1482 = vmatprep.subr.mxu0 0.0
      %1483 = vmatpush1.msra.mxu0 0.0
      %1484 = vmatprep.subr.mxu0 0.0
      %1485 = vmatpush1.msra.mxu0 0.0
      %1486 = vmatprep.subr.mxu0 0.0
      %1487 = vmatpush1.msra.mxu0 0.0
      %1488 = vmatprep.subr.mxu0 0.0
      %1489 = vmatpush1.msra.mxu0 0.0
      %1490 = vmatprep.mubr.f32.mxu0 0.0
      %1491 = vmatmul.mubr.f32.gmra.mrb[0].mxu0 %v1391
      %v1492 = vpop.f32.mrb[0].mxu0
      %v1493 = vadd.f32 0.0, %v1492
      %v1494 = vpop.f32.mrb[0].mxu0
      %1495 = vmatprep.mubr.f32.mxu0 0.0
      %1496 = vmatmul.mubr.f32.gmra.mrb[0].mxu0 %v1393
      %v1497 = vpop.f32.mrb[0].mxu0
      %v1498 = vadd.f32 0.0, %v1497
      %v1499 = vpop.f32.mrb[0].mxu0
      %1500 = vmatprep.mubr.f32.mxu0 0.0
      %1501 = vmatmul.mubr.f32.gmra.mrb[0].mxu0 %v1395
      %v1502 = vpop.f32.mrb[0].mxu0
      %v1503 = vadd.f32 0.0, %v1502
      %v1504 = vpop.f32.mrb[0].mxu0
      %1505 = vmatprep.mubr.f32.mxu0 0.0
      %1506 = vmatmul.mubr.f32.gmra.mrb[0].mxu0 %v1397
      %v1507 = vpop.f32.mrb[0].mxu0
      %v1508 = vadd.f32 0.0, %v1507
      %v1509 = vpop.f32.mrb[0].mxu0
      %1510 = vmatprep.mubr.f32.mxu0 0.0
      %1511 = vmatmul.mubr.f32.gmra.mrb[0].mxu0 %v1399
      %v1512 = vpop.f32.mrb[0].mxu0
      %v1513 = vadd.f32 0.0, %v1512
      %v1514 = vpop.f32.mrb[0].mxu0
      %1515 = vmatprep.mubr.f32.mxu0 0.0
      %1516 = vmatmul.mubr.f32.gmra.mrb[0].mxu0 %v1401
      %v1517 = vpop.f32.mrb[0].mxu0
      %v1518 = vadd.f32 0.0, %v1517
      %v1519 = vpop.f32.mrb[0].mxu0
      %1520 = vmatprep.mubr.f32.mxu0 0.0
      %1521 = vmatmul.mubr.f32.gmra.mrb[0].mxu0 %v1403
      %v1522 = vpop.f32.mrb[0].mxu0
      %v1523 = vadd.f32 0.0, %v1522
      %v1524 = vpop.f32.mrb[0].mxu0
      %1525 = vmatprep.mubr.f32.mxu0 0.0
      %1526 = vmatmul.mubr.f32.gmra.mrb[0].mxu0 %v1405
      %v1527 = vpop.f32.mrb[0].mxu0
      %v1528 = vadd.f32 0.0, %v1527
      %v1529 = vpop.f32.mrb[0].mxu0
      %1530 = vmatprep.mubr.f32.mxu0 0.0
      %1531 = vmatmul.mubr.f32.gmra.mrb[0].mxu0 %v1407
      %v1532 = vpop.f32.mrb[0].mxu0
      %v1533 = vadd.f32 0.0, %v1532
      %v1534 = vpop.f32.mrb[0].mxu0
      %1535 = vmatprep.mubr.f32.mxu0 0.0
      %1536 = vmatmul.mubr.f32.gmra.mrb[0].mxu0 %v1409
      %v1537 = vpop.f32.mrb[0].mxu0
      %v1538 = vadd.f32 0.0, %v1537
      %v1539 = vpop.f32.mrb[0].mxu0
      %1540 = vmatprep.mubr.f32.mxu0 0.0
      %1541 = vmatmul.mubr.f32.gmra.mrb[0].mxu0 %v1411
      %v1542 = vpop.f32.mrb[0].mxu0
      %v1543 = vadd.f32 0.0, %v1542
      %v1544 = vpop.f32.mrb[0].mxu0
      %1545 = vmatprep.mubr.f32.mxu0 0.0
      %1546 = vmatmul.mubr.f32.gmra.mrb[0].mxu0 %v1413
      %v1547 = vpop.f32.mrb[0].mxu0
      %v1548 = vadd.f32 0.0, %v1547
      %v1549 = vpop.f32.mrb[0].mxu0
      %1550 = vmatprep.mubr.f32.mxu0 0.0
      %1551 = vmatmul.mubr.f32.gmra.mrb[0].mxu0 %v1415
      %v1552 = vpop.f32.mrb[0].mxu0
      %v1553 = vadd.f32 0.0, %v1552
      %v1554 = vpop.f32.mrb[0].mxu0
      %1555 = vmatprep.mubr.f32.mxu0 0.0
      %1556 = vmatmul.mubr.f32.gmra.mrb[0].mxu0 %v1417
      %v1557 = vpop.f32.mrb[0].mxu0
      %v1558 = vadd.f32 0.0, %v1557
      %v1559 = vpop.f32.mrb[0].mxu0
      %1560 = vmatprep.mubr.f32.mxu0 0.0
      %1561 = vmatmul.mubr.f32.gmra.mrb[0].mxu0 %v1419
      %v1562 = vpop.f32.mrb[0].mxu0
      %v1563 = vadd.f32 0.0, %v1562
      %v1564 = vpop.f32.mrb[0].mxu0
      %1565 = vmatprep.mubr.f32.mxu0 0.0
      %1566 = vmatmul.mubr.f32.gmra.mrb[0].mxu0 %v1421
      %v1567 = vpop.f32.mrb[0].mxu0
      %v1568 = vadd.f32 0.0, %v1567
      %v1569 = vpop.f32.mrb[0].mxu0
      %1570 = vdwg.mxu0
      %v1571 = vadd.f32 %v1264, %v1493
      %v1572 = vadd.f32 %v1269, %v1498
      %v1573 = vadd.f32 %v1274, %v1503
      %v1574 = vadd.f32 %v1279, %v1508
      %v1575 = vadd.f32 %v1284, %v1513
      %v1576 = vadd.f32 %v1289, %v1518
      %v1577 = vadd.f32 %v1294, %v1523
      %v1578 = vadd.f32 %v1299, %v1528
      %v1579 = vadd.f32 %v1304, %v1533
      %v1580 = vadd.f32 %v1309, %v1538
      %v1581 = vadd.f32 %v1314, %v1543
      %v1582 = vadd.f32 %v1319, %v1548
      %v1583 = vadd.f32 %v1324, %v1553
      %v1584 = vadd.f32 %v1329, %v1558
      %v1585 = vadd.f32 %v1334, %v1563
      %v1586 = vadd.f32 %v1339, %v1568
      %v1587 = vld [vmem:[%s653] sm:$0xff]
      %v1588 = vld [vmem:[%s653 + $0x8] sm:$0xff]
      %v1589 = vld [vmem:[%s653 + $0x10] sm:$0xff]
      %v1590 = vld [vmem:[%s653 + $0x18] sm:$0xff]
      %v1591 = vld [vmem:[%s653 + $0x20] sm:$0xff]
      %v1592 = vld [vmem:[%s653 + $0x28] sm:$0xff]
      %v1593 = vld [vmem:[%s653 + $0x30] sm:$0xff]
      %v1594 = vld [vmem:[%s653 + $0x38] sm:$0xff]
      %v1595 = vld [vmem:[%s653 + $0x40] sm:$0xff]
      %v1596 = vld [vmem:[%s653 + $0x48] sm:$0xff]
      %v1597 = vld [vmem:[%s653 + $0x50] sm:$0xff]
      %v1598 = vld [vmem:[%s653 + $0x58] sm:$0xff]
      %v1599 = vld [vmem:[%s653 + $0x60] sm:$0xff]
      %v1600 = vld [vmem:[%s653 + $0x68] sm:$0xff]
      %v1601 = vld [vmem:[%s653 + $0x70] sm:$0xff]
      %v1602 = vld [vmem:[%s653 + $0x78] sm:$0xff]
      %v1603 = vld [vmem:[%s653 + $0x80] sm:$0xff]
      %v1604 = vld [vmem:[%s653 + $0x88] sm:$0xff]
      %v1605 = vld [vmem:[%s653 + $0x90] sm:$0xff]
      %v1606 = vld [vmem:[%s653 + $0x98] sm:$0xff]
      %v1607 = vld [vmem:[%s653 + $0xa0] sm:$0xff]
      %v1608 = vld [vmem:[%s653 + $0xa8] sm:$0xff]
      %v1609 = vld [vmem:[%s653 + $0xb0] sm:$0xff]
      %v1610 = vld [vmem:[%s653 + $0xb8] sm:$0xff]
      %v1611 = vld [vmem:[%s653 + $0xc0] sm:$0xff]
      %v1612 = vld [vmem:[%s653 + $0xc8] sm:$0xff]
      %v1613 = vld [vmem:[%s653 + $0xd0] sm:$0xff]
      %v1614 = vld [vmem:[%s653 + $0xd8] sm:$0xff]
      %v1615 = vld [vmem:[%s653 + $0xe0] sm:$0xff]
      %v1616 = vld [vmem:[%s653 + $0xe8] sm:$0xff]
      %v1617 = vld [vmem:[%s653 + $0xf0] sm:$0xff]
      %v1618 = vld [vmem:[%s653 + $0xf8] sm:$0xff]
      %v1643 = vrot.slane %v1587, 7
      %v1644 = vrot.slane %v1588, 7
      %v1645 = vsel %vm940, %v1643, %v1644
      %v1646 = vrot.slane %v1589, 7
      %v1647 = vsel %vm940, %v1644, %v1646
      %v1648 = vrot.slane %v1591, 7
      %v1649 = vrot.slane %v1592, 7
      %v1650 = vsel %vm940, %v1648, %v1649
      %v1651 = vrot.slane %v1593, 7
      %v1652 = vsel %vm940, %v1649, %v1651
      %v1653 = vrot.slane %v1595, 7
      %v1654 = vrot.slane %v1596, 7
      %v1655 = vsel %vm940, %v1653, %v1654
      %v1656 = vrot.slane %v1597, 7
      %v1657 = vsel %vm940, %v1654, %v1656
      %v1658 = vrot.slane %v1599, 7
      %v1659 = vrot.slane %v1600, 7
      %v1660 = vsel %vm940, %v1658, %v1659
      %v1661 = vrot.slane %v1601, 7
      %v1662 = vsel %vm940, %v1659, %v1661
      %v1663 = vrot.slane %v1603, 7
      %v1664 = vrot.slane %v1604, 7
      %v1665 = vsel %vm940, %v1663, %v1664
      %v1666 = vrot.slane %v1605, 7
      %v1667 = vsel %vm940, %v1664, %v1666
      %v1668 = vrot.slane %v1607, 7
      %v1669 = vrot.slane %v1608, 7
      %v1670 = vsel %vm940, %v1668, %v1669
      %v1671 = vrot.slane %v1609, 7
      %v1672 = vsel %vm940, %v1669, %v1671
      %v1673 = vrot.slane %v1611, 7
      %v1674 = vrot.slane %v1612, 7
      %v1675 = vsel %vm940, %v1673, %v1674
      %v1676 = vrot.slane %v1613, 7
      %v1677 = vsel %vm940, %v1674, %v1676
      %v1678 = vrot.slane %v1615, 7
      %v1679 = vrot.slane %v1616, 7
      %v1680 = vsel %vm940, %v1678, %v1679
      %v1681 = vrot.slane %v1617, 7
      %v1682 = vsel %vm940, %v1679, %v1681
      %v1683 = vsel %vm308, %v1645, 0
      %v1685 = vsel %vm308, %v1647, 0
      %v1687 = vsel %vm308, %v1650, 0
      %v1689 = vsel %vm308, %v1652, 0
      %v1691 = vsel %vm308, %v1655, 0
      %v1693 = vsel %vm308, %v1657, 0
      %v1695 = vsel %vm308, %v1660, 0
      %v1697 = vsel %vm308, %v1662, 0
      %v1699 = vsel %vm308, %v1665, 0
      %v1701 = vsel %vm308, %v1667, 0
      %v1703 = vsel %vm308, %v1670, 0
      %v1705 = vsel %vm308, %v1672, 0
      %v1707 = vsel %vm308, %v1675, 0
      %v1709 = vsel %vm308, %v1677, 0
      %v1711 = vsel %vm308, %v1680, 0
      %v1713 = vsel %vm308, %v1682, 0
      %v1716 = vsel %vm1013, %v878, 0
      %1718 = vmatprep.subr.mxu0 0.0
      %1719 = vmatpush1.msra.mxu0 %v1716
      %1720 = vmatprep.subr.mxu0 0.0
      %1721 = vmatpush1.msra.mxu0 0.0
      %1722 = vmatprep.subr.mxu0 0.0
      %1723 = vmatpush1.msra.mxu0 0.0
      %1724 = vmatprep.subr.mxu0 0.0
      %1725 = vmatpush1.msra.mxu0 0.0
      %1726 = vmatprep.subr.mxu0 0.0
      %1727 = vmatpush1.msra.mxu0 0.0
      %1728 = vmatprep.subr.mxu0 0.0
      %1729 = vmatpush1.msra.mxu0 0.0
      %1730 = vmatprep.subr.mxu0 0.0
      %1731 = vmatpush1.msra.mxu0 0.0
      %1732 = vmatprep.subr.mxu0 0.0
      %1733 = vmatpush1.msra.mxu0 0.0
      %1734 = vmatprep.subr.mxu0 0.0
      %1735 = vmatpush1.msra.mxu0 0.0
      %1736 = vmatprep.subr.mxu0 0.0
      %1737 = vmatpush1.msra.mxu0 0.0
      %1738 = vmatprep.subr.mxu0 0.0
      %1739 = vmatpush1.msra.mxu0 0.0
      %1740 = vmatprep.subr.mxu0 0.0
      %1741 = vmatpush1.msra.mxu0 0.0
      %1742 = vmatprep.subr.mxu0 0.0
      %1743 = vmatpush1.msra.mxu0 0.0
      %1744 = vmatprep.subr.mxu0 0.0
      %1745 = vmatpush1.msra.mxu0 0.0
      %1746 = vmatprep.subr.mxu0 0.0
      %1747 = vmatpush1.msra.mxu0 0.0
      %1748 = vmatprep.subr.mxu0 0.0
      %1749 = vmatpush1.msra.mxu0 0.0
      %1750 = vmatprep.subr.mxu0 0.0
      %1751 = vmatpush1.msra.mxu0 0.0
      %1752 = vmatprep.subr.mxu0 0.0
      %1753 = vmatpush1.msra.mxu0 0.0
      %1754 = vmatprep.subr.mxu0 0.0
      %1755 = vmatpush1.msra.mxu0 0.0
      %1756 = vmatprep.subr.mxu0 0.0
      %1757 = vmatpush1.msra.mxu0 0.0
      %1758 = vmatprep.subr.mxu0 0.0
      %1759 = vmatpush1.msra.mxu0 0.0
      %1760 = vmatprep.subr.mxu0 0.0
      %1761 = vmatpush1.msra.mxu0 0.0
      %1762 = vmatprep.subr.mxu0 0.0
      %1763 = vmatpush1.msra.mxu0 0.0
      %1764 = vmatprep.subr.mxu0 0.0
      %1765 = vmatpush1.msra.mxu0 0.0
      %1766 = vmatprep.subr.mxu0 0.0
      %1767 = vmatpush1.msra.mxu0 0.0
      %1768 = vmatprep.subr.mxu0 0.0
      %1769 = vmatpush1.msra.mxu0 0.0
      %1770 = vmatprep.subr.mxu0 0.0
      %1771 = vmatpush1.msra.mxu0 0.0
      %1772 = vmatprep.subr.mxu0 0.0
      %1773 = vmatpush1.msra.mxu0 0.0
      %1774 = vmatprep.subr.mxu0 0.0
      %1775 = vmatpush1.msra.mxu0 0.0
      %1776 = vmatprep.subr.mxu0 0.0
      %1777 = vmatpush1.msra.mxu0 0.0
      %1778 = vmatprep.subr.mxu0 0.0
      %1779 = vmatpush1.msra.mxu0 0.0
      %1780 = vmatprep.subr.mxu0 0.0
      %1781 = vmatpush1.msra.mxu0 0.0
      %1782 = vmatprep.mubr.f32.mxu0 0.0
      %1783 = vmatmul.mubr.f32.gmra.mrb[0].mxu0 %v1683
      %v1784 = vpop.f32.mrb[0].mxu0
      %v1785 = vadd.f32 0.0, %v1784
      %v1786 = vpop.f32.mrb[0].mxu0
      %1787 = vmatprep.mubr.f32.mxu0 0.0
      %1788 = vmatmul.mubr.f32.gmra.mrb[0].mxu0 %v1685
      %v1789 = vpop.f32.mrb[0].mxu0
      %v1790 = vadd.f32 0.0, %v1789
      %v1791 = vpop.f32.mrb[0].mxu0
      %1792 = vmatprep.mubr.f32.mxu0 0.0
      %1793 = vmatmul.mubr.f32.gmra.mrb[0].mxu0 %v1687
      %v1794 = vpop.f32.mrb[0].mxu0
      %v1795 = vadd.f32 0.0, %v1794
      %v1796 = vpop.f32.mrb[0].mxu0
      %1797 = vmatprep.mubr.f32.mxu0 0.0
      %1798 = vmatmul.mubr.f32.gmra.mrb[0].mxu0 %v1689
      %v1799 = vpop.f32.mrb[0].mxu0
      %v1800 = vadd.f32 0.0, %v1799
      %v1801 = vpop.f32.mrb[0].mxu0
      %1802 = vmatprep.mubr.f32.mxu0 0.0
      %1803 = vmatmul.mubr.f32.gmra.mrb[0].mxu0 %v1691
      %v1804 = vpop.f32.mrb[0].mxu0
      %v1805 = vadd.f32 0.0, %v1804
      %v1806 = vpop.f32.mrb[0].mxu0
      %1807 = vmatprep.mubr.f32.mxu0 0.0
      %1808 = vmatmul.mubr.f32.gmra.mrb[0].mxu0 %v1693
      %v1809 = vpop.f32.mrb[0].mxu0
      %v1810 = vadd.f32 0.0, %v1809
      %v1811 = vpop.f32.mrb[0].mxu0
      %1812 = vmatprep.mubr.f32.mxu0 0.0
      %1813 = vmatmul.mubr.f32.gmra.mrb[0].mxu0 %v1695
      %v1814 = vpop.f32.mrb[0].mxu0
      %v1815 = vadd.f32 0.0, %v1814
      %v1816 = vpop.f32.mrb[0].mxu0
      %1817 = vmatprep.mubr.f32.mxu0 0.0
      %1818 = vmatmul.mubr.f32.gmra.mrb[0].mxu0 %v1697
      %v1819 = vpop.f32.mrb[0].mxu0
      %v1820 = vadd.f32 0.0, %v1819
      %v1821 = vpop.f32.mrb[0].mxu0
      %1822 = vmatprep.mubr.f32.mxu0 0.0
      %1823 = vmatmul.mubr.f32.gmra.mrb[0].mxu0 %v1699
      %v1824 = vpop.f32.mrb[0].mxu0
      %v1825 = vadd.f32 0.0, %v1824
      %v1826 = vpop.f32.mrb[0].mxu0
      %1827 = vmatprep.mubr.f32.mxu0 0.0
      %1828 = vmatmul.mubr.f32.gmra.mrb[0].mxu0 %v1701
      %v1829 = vpop.f32.mrb[0].mxu0
      %v1830 = vadd.f32 0.0, %v1829
      %v1831 = vpop.f32.mrb[0].mxu0
      %1832 = vmatprep.mubr.f32.mxu0 0.0
      %1833 = vmatmul.mubr.f32.gmra.mrb[0].mxu0 %v1703
      %v1834 = vpop.f32.mrb[0].mxu0
      %v1835 = vadd.f32 0.0, %v1834
      %v1836 = vpop.f32.mrb[0].mxu0
      %1837 = vmatprep.mubr.f32.mxu0 0.0
      %1838 = vmatmul.mubr.f32.gmra.mrb[0].mxu0 %v1705
      %v1839 = vpop.f32.mrb[0].mxu0
      %v1840 = vadd.f32 0.0, %v1839
      %v1841 = vpop.f32.mrb[0].mxu0
      %1842 = vmatprep.mubr.f32.mxu0 0.0
      %1843 = vmatmul.mubr.f32.gmra.mrb[0].mxu0 %v1707
      %v1844 = vpop.f32.mrb[0].mxu0
      %v1845 = vadd.f32 0.0, %v1844
      %v1846 = vpop.f32.mrb[0].mxu0
      %1847 = vmatprep.mubr.f32.mxu0 0.0
      %1848 = vmatmul.mubr.f32.gmra.mrb[0].mxu0 %v1709
      %v1849 = vpop.f32.mrb[0].mxu0
      %v1850 = vadd.f32 0.0, %v1849
      %v1851 = vpop.f32.mrb[0].mxu0
      %1852 = vmatprep.mubr.f32.mxu0 0.0
      %1853 = vmatmul.mubr.f32.gmra.mrb[0].mxu0 %v1711
      %v1854 = vpop.f32.mrb[0].mxu0
      %v1855 = vadd.f32 0.0, %v1854
      %v1856 = vpop.f32.mrb[0].mxu0
      %1857 = vmatprep.mubr.f32.mxu0 0.0
      %1858 = vmatmul.mubr.f32.gmra.mrb[0].mxu0 %v1713
      %v1859 = vpop.f32.mrb[0].mxu0
      %v1860 = vadd.f32 0.0, %v1859
      %v1861 = vpop.f32.mrb[0].mxu0
      %1862 = vdwg.mxu0
      %v1863 = vadd.f32 %v1571, %v1785
      %v1864 = vadd.f32 %v1572, %v1790
      %v1865 = vadd.f32 %v1573, %v1795
      %v1866 = vadd.f32 %v1574, %v1800
      %v1867 = vadd.f32 %v1575, %v1805
      %v1868 = vadd.f32 %v1576, %v1810
      %v1869 = vadd.f32 %v1577, %v1815
      %v1870 = vadd.f32 %v1578, %v1820
      %v1871 = vadd.f32 %v1579, %v1825
      %v1872 = vadd.f32 %v1580, %v1830
      %v1873 = vadd.f32 %v1581, %v1835
      %v1874 = vadd.f32 %v1582, %v1840
      %v1875 = vadd.f32 %v1583, %v1845
      %v1876 = vadd.f32 %v1584, %v1850
      %v1877 = vadd.f32 %v1585, %v1855
      %v1878 = vadd.f32 %v1586, %v1860
      %v1879 = vsel %vm308, %v1588, 0
      %v1881 = vsel %vm308, %v1589, 0
      %v1883 = vsel %vm308, %v1592, 0
      %v1885 = vsel %vm308, %v1593, 0
      %v1887 = vsel %vm308, %v1596, 0
      %v1889 = vsel %vm308, %v1597, 0
      %v1891 = vsel %vm308, %v1600, 0
      %v1893 = vsel %vm308, %v1601, 0
      %v1895 = vsel %vm308, %v1604, 0
      %v1897 = vsel %vm308, %v1605, 0
      %v1899 = vsel %vm308, %v1608, 0
      %v1901 = vsel %vm308, %v1609, 0
      %v1903 = vsel %vm308, %v1612, 0
      %v1905 = vsel %vm308, %v1613, 0
      %v1907 = vsel %vm308, %v1616, 0
      %v1909 = vsel %vm308, %v1617, 0
      %v1912 = vsel %vm1013, %v879, 0
      %1914 = vmatprep.subr.mxu0 0.0
      %1915 = vmatpush1.msra.mxu0 %v1912
      %1916 = vmatprep.subr.mxu0 0.0
      %1917 = vmatpush1.msra.mxu0 0.0
      %1918 = vmatprep.subr.mxu0 0.0
      %1919 = vmatpush1.msra.mxu0 0.0
      %1920 = vmatprep.subr.mxu0 0.0
      %1921 = vmatpush1.msra.mxu0 0.0
      %1922 = vmatprep.subr.mxu0 0.0
      %1923 = vmatpush1.msra.mxu0 0.0
      %1924 = vmatprep.subr.mxu0 0.0
      %1925 = vmatpush1.msra.mxu0 0.0
      %1926 = vmatprep.subr.mxu0 0.0
      %1927 = vmatpush1.msra.mxu0 0.0
      %1928 = vmatprep.subr.mxu0 0.0
      %1929 = vmatpush1.msra.mxu0 0.0
      %1930 = vmatprep.subr.mxu0 0.0
      %1931 = vmatpush1.msra.mxu0 0.0
      %1932 = vmatprep.subr.mxu0 0.0
      %1933 = vmatpush1.msra.mxu0 0.0
      %1934 = vmatprep.subr.mxu0 0.0
      %1935 = vmatpush1.msra.mxu0 0.0
      %1936 = vmatprep.subr.mxu0 0.0
      %1937 = vmatpush1.msra.mxu0 0.0
      %1938 = vmatprep.subr.mxu0 0.0
      %1939 = vmatpush1.msra.mxu0 0.0
      %1940 = vmatprep.subr.mxu0 0.0
      %1941 = vmatpush1.msra.mxu0 0.0
      %1942 = vmatprep.subr.mxu0 0.0
      %1943 = vmatpush1.msra.mxu0 0.0
      %1944 = vmatprep.subr.mxu0 0.0
      %1945 = vmatpush1.msra.mxu0 0.0
      %1946 = vmatprep.subr.mxu0 0.0
      %1947 = vmatpush1.msra.mxu0 0.0
      %1948 = vmatprep.subr.mxu0 0.0
      %1949 = vmatpush1.msra.mxu0 0.0
      %1950 = vmatprep.subr.mxu0 0.0
      %1951 = vmatpush1.msra.mxu0 0.0
      %1952 = vmatprep.subr.mxu0 0.0
      %1953 = vmatpush1.msra.mxu0 0.0
      %1954 = vmatprep.subr.mxu0 0.0
      %1955 = vmatpush1.msra.mxu0 0.0
      %1956 = vmatprep.subr.mxu0 0.0
      %1957 = vmatpush1.msra.mxu0 0.0
      %1958 = vmatprep.subr.mxu0 0.0
      %1959 = vmatpush1.msra.mxu0 0.0
      %1960 = vmatprep.subr.mxu0 0.0
      %1961 = vmatpush1.msra.mxu0 0.0
      %1962 = vmatprep.subr.mxu0 0.0
      %1963 = vmatpush1.msra.mxu0 0.0
      %1964 = vmatprep.subr.mxu0 0.0
      %1965 = vmatpush1.msra.mxu0 0.0
      %1966 = vmatprep.subr.mxu0 0.0
      %1967 = vmatpush1.msra.mxu0 0.0
      %1968 = vmatprep.subr.mxu0 0.0
      %1969 = vmatpush1.msra.mxu0 0.0
      %1970 = vmatprep.subr.mxu0 0.0
      %1971 = vmatpush1.msra.mxu0 0.0
      %1972 = vmatprep.subr.mxu0 0.0
      %1973 = vmatpush1.msra.mxu0 0.0
      %1974 = vmatprep.subr.mxu0 0.0
      %1975 = vmatpush1.msra.mxu0 0.0
      %1976 = vmatprep.subr.mxu0 0.0
      %1977 = vmatpush1.msra.mxu0 0.0
      %1978 = vmatprep.mubr.f32.mxu0 0.0
      %1979 = vmatmul.mubr.f32.gmra.mrb[0].mxu0 %v1879
      %v1980 = vpop.f32.mrb[0].mxu0
      %v1981 = vadd.f32 0.0, %v1980
      %v1982 = vpop.f32.mrb[0].mxu0
      %1983 = vmatprep.mubr.f32.mxu0 0.0
      %1984 = vmatmul.mubr.f32.gmra.mrb[0].mxu0 %v1881
      %v1985 = vpop.f32.mrb[0].mxu0
      %v1986 = vadd.f32 0.0, %v1985
      %v1987 = vpop.f32.mrb[0].mxu0
      %1988 = vmatprep.mubr.f32.mxu0 0.0
      %1989 = vmatmul.mubr.f32.gmra.mrb[0].mxu0 %v1883
      %v1990 = vpop.f32.mrb[0].mxu0
      %v1991 = vadd.f32 0.0, %v1990
      %v1992 = vpop.f32.mrb[0].mxu0
      %1993 = vmatprep.mubr.f32.mxu0 0.0
      %1994 = vmatmul.mubr.f32.gmra.mrb[0].mxu0 %v1885
      %v1995 = vpop.f32.mrb[0].mxu0
      %v1996 = vadd.f32 0.0, %v1995
      %v1997 = vpop.f32.mrb[0].mxu0
      %1998 = vmatprep.mubr.f32.mxu0 0.0
      %1999 = vmatmul.mubr.f32.gmra.mrb[0].mxu0 %v1887
      %v2000 = vpop.f32.mrb[0].mxu0
      %v2001 = vadd.f32 0.0, %v2000
      %v2002 = vpop.f32.mrb[0].mxu0
      %2003 = vmatprep.mubr.f32.mxu0 0.0
      %2004 = vmatmul.mubr.f32.gmra.mrb[0].mxu0 %v1889
      %v2005 = vpop.f32.mrb[0].mxu0
      %v2006 = vadd.f32 0.0, %v2005
      %v2007 = vpop.f32.mrb[0].mxu0
      %2008 = vmatprep.mubr.f32.mxu0 0.0
      %2009 = vmatmul.mubr.f32.gmra.mrb[0].mxu0 %v1891
      %v2010 = vpop.f32.mrb[0].mxu0
      %v2011 = vadd.f32 0.0, %v2010
      %v2012 = vpop.f32.mrb[0].mxu0
      %2013 = vmatprep.mubr.f32.mxu0 0.0
      %2014 = vmatmul.mubr.f32.gmra.mrb[0].mxu0 %v1893
      %v2015 = vpop.f32.mrb[0].mxu0
      %v2016 = vadd.f32 0.0, %v2015
      %v2017 = vpop.f32.mrb[0].mxu0
      %2018 = vmatprep.mubr.f32.mxu0 0.0
      %2019 = vmatmul.mubr.f32.gmra.mrb[0].mxu0 %v1895
      %v2020 = vpop.f32.mrb[0].mxu0
      %v2021 = vadd.f32 0.0, %v2020
      %v2022 = vpop.f32.mrb[0].mxu0
      %2023 = vmatprep.mubr.f32.mxu0 0.0
      %2024 = vmatmul.mubr.f32.gmra.mrb[0].mxu0 %v1897
      %v2025 = vpop.f32.mrb[0].mxu0
      %v2026 = vadd.f32 0.0, %v2025
      %v2027 = vpop.f32.mrb[0].mxu0
      %2028 = vmatprep.mubr.f32.mxu0 0.0
      %2029 = vmatmul.mubr.f32.gmra.mrb[0].mxu0 %v1899
      %v2030 = vpop.f32.mrb[0].mxu0
      %v2031 = vadd.f32 0.0, %v2030
      %v2032 = vpop.f32.mrb[0].mxu0
      %2033 = vmatprep.mubr.f32.mxu0 0.0
      %2034 = vmatmul.mubr.f32.gmra.mrb[0].mxu0 %v1901
      %v2035 = vpop.f32.mrb[0].mxu0
      %v2036 = vadd.f32 0.0, %v2035
      %v2037 = vpop.f32.mrb[0].mxu0
      %2038 = vmatprep.mubr.f32.mxu0 0.0
      %2039 = vmatmul.mubr.f32.gmra.mrb[0].mxu0 %v1903
      %v2040 = vpop.f32.mrb[0].mxu0
      %v2041 = vadd.f32 0.0, %v2040
      %v2042 = vpop.f32.mrb[0].mxu0
      %2043 = vmatprep.mubr.f32.mxu0 0.0
      %2044 = vmatmul.mubr.f32.gmra.mrb[0].mxu0 %v1905
      %v2045 = vpop.f32.mrb[0].mxu0
      %v2046 = vadd.f32 0.0, %v2045
      %v2047 = vpop.f32.mrb[0].mxu0
      %2048 = vmatprep.mubr.f32.mxu0 0.0
      %2049 = vmatmul.mubr.f32.gmra.mrb[0].mxu0 %v1907
      %v2050 = vpop.f32.mrb[0].mxu0
      %v2051 = vadd.f32 0.0, %v2050
      %v2052 = vpop.f32.mrb[0].mxu0
      %2053 = vmatprep.mubr.f32.mxu0 0.0
      %2054 = vmatmul.mubr.f32.gmra.mrb[0].mxu0 %v1909
      %v2055 = vpop.f32.mrb[0].mxu0
      %v2056 = vadd.f32 0.0, %v2055
      %v2057 = vpop.f32.mrb[0].mxu0
      %2058 = vdwg.mxu0
      %v2059 = vadd.f32 %v1863, %v1981
      %v2060 = vadd.f32 %v1864, %v1986
      %v2061 = vadd.f32 %v1865, %v1991
      %v2062 = vadd.f32 %v1866, %v1996
      %v2063 = vadd.f32 %v1867, %v2001
      %v2064 = vadd.f32 %v1868, %v2006
      %v2065 = vadd.f32 %v1869, %v2011
      %v2066 = vadd.f32 %v1870, %v2016
      %v2067 = vadd.f32 %v1871, %v2021
      %v2068 = vadd.f32 %v1872, %v2026
      %v2069 = vadd.f32 %v1873, %v2031
      %v2070 = vadd.f32 %v1874, %v2036
      %v2071 = vadd.f32 %v1875, %v2041
      %v2072 = vadd.f32 %v1876, %v2046
      %v2073 = vadd.f32 %v1877, %v2051
      %v2074 = vadd.f32 %v1878, %v2056
      %v2083 = vrot.slane %v1588, 1
      %v2084 = vrot.slane %v1589, 1
      %v2085 = vsel %vm1350, %v2083, %v2084
      %v2086 = vrot.slane %v1590, 1
      %v2087 = vsel %vm1350, %v2084, %v2086
      %v2088 = vrot.slane %v1592, 1
      %v2089 = vrot.slane %v1593, 1
      %v2090 = vsel %vm1350, %v2088, %v2089
      %v2091 = vrot.slane %v1594, 1
      %v2092 = vsel %vm1350, %v2089, %v2091
      %v2093 = vrot.slane %v1596, 1
      %v2094 = vrot.slane %v1597, 1
      %v2095 = vsel %vm1350, %v2093, %v2094
      %v2096 = vrot.slane %v1598, 1
      %v2097 = vsel %vm1350, %v2094, %v2096
      %v2098 = vrot.slane %v1600, 1
      %v2099 = vrot.slane %v1601, 1
      %v2100 = vsel %vm1350, %v2098, %v2099
      %v2101 = vrot.slane %v1602, 1
      %v2102 = vsel %vm1350, %v2099, %v2101
      %v2103 = vrot.slane %v1604, 1
      %v2104 = vrot.slane %v1605, 1
      %v2105 = vsel %vm1350, %v2103, %v2104
      %v2106 = vrot.slane %v1606, 1
      %v2107 = vsel %vm1350, %v2104, %v2106
      %v2108 = vrot.slane %v1608, 1
      %v2109 = vrot.slane %v1609, 1
      %v2110 = vsel %vm1350, %v2108, %v2109
      %v2111 = vrot.slane %v1610, 1
      %v2112 = vsel %vm1350, %v2109, %v2111
      %v2113 = vrot.slane %v1612, 1
      %v2114 = vrot.slane %v1613, 1
      %v2115 = vsel %vm1350, %v2113, %v2114
      %v2116 = vrot.slane %v1614, 1
      %v2117 = vsel %vm1350, %v2114, %v2116
      %v2118 = vrot.slane %v1616, 1
      %v2119 = vrot.slane %v1617, 1
      %v2120 = vsel %vm1350, %v2118, %v2119
      %v2121 = vrot.slane %v1618, 1
      %v2122 = vsel %vm1350, %v2119, %v2121
      %v2123 = vsel %vm308, %v2085, 0
      %v2125 = vsel %vm308, %v2087, 0
      %v2127 = vsel %vm308, %v2090, 0
      %v2129 = vsel %vm308, %v2092, 0
      %v2131 = vsel %vm308, %v2095, 0
      %v2133 = vsel %vm308, %v2097, 0
      %v2135 = vsel %vm308, %v2100, 0
      %v2137 = vsel %vm308, %v2102, 0
      %v2139 = vsel %vm308, %v2105, 0
      %v2141 = vsel %vm308, %v2107, 0
      %v2143 = vsel %vm308, %v2110, 0
      %v2145 = vsel %vm308, %v2112, 0
      %v2147 = vsel %vm308, %v2115, 0
      %v2149 = vsel %vm308, %v2117, 0
      %v2151 = vsel %vm308, %v2120, 0
      %v2153 = vsel %vm308, %v2122, 0
      %v2156 = vsel %vm1013, %v880, 0
      %2158 = vmatprep.subr.mxu0 0.0
      %2159 = vmatpush1.msra.mxu0 %v2156
      %2160 = vmatprep.subr.mxu0 0.0
      %2161 = vmatpush1.msra.mxu0 0.0
      %2162 = vmatprep.subr.mxu0 0.0
      %2163 = vmatpush1.msra.mxu0 0.0
      %2164 = vmatprep.subr.mxu0 0.0
      %2165 = vmatpush1.msra.mxu0 0.0
      %2166 = vmatprep.subr.mxu0 0.0
      %2167 = vmatpush1.msra.mxu0 0.0
      %2168 = vmatprep.subr.mxu0 0.0
      %2169 = vmatpush1.msra.mxu0 0.0
      %2170 = vmatprep.subr.mxu0 0.0
      %2171 = vmatpush1.msra.mxu0 0.0
      %2172 = vmatprep.subr.mxu0 0.0
      %2173 = vmatpush1.msra.mxu0 0.0
      %2174 = vmatprep.subr.mxu0 0.0
      %2175 = vmatpush1.msra.mxu0 0.0
      %2176 = vmatprep.subr.mxu0 0.0
      %2177 = vmatpush1.msra.mxu0 0.0
      %2178 = vmatprep.subr.mxu0 0.0
      %2179 = vmatpush1.msra.mxu0 0.0
      %2180 = vmatprep.subr.mxu0 0.0
      %2181 = vmatpush1.msra.mxu0 0.0
      %2182 = vmatprep.subr.mxu0 0.0
      %2183 = vmatpush1.msra.mxu0 0.0
      %2184 = vmatprep.subr.mxu0 0.0
      %2185 = vmatpush1.msra.mxu0 0.0
      %2186 = vmatprep.subr.mxu0 0.0
      %2187 = vmatpush1.msra.mxu0 0.0
      %2188 = vmatprep.subr.mxu0 0.0
      %2189 = vmatpush1.msra.mxu0 0.0
      %2190 = vmatprep.subr.mxu0 0.0
      %2191 = vmatpush1.msra.mxu0 0.0
      %2192 = vmatprep.subr.mxu0 0.0
      %2193 = vmatpush1.msra.mxu0 0.0
      %2194 = vmatprep.subr.mxu0 0.0
      %2195 = vmatpush1.msra.mxu0 0.0
      %2196 = vmatprep.subr.mxu0 0.0
      %2197 = vmatpush1.msra.mxu0 0.0
      %2198 = vmatprep.subr.mxu0 0.0
      %2199 = vmatpush1.msra.mxu0 0.0
      %2200 = vmatprep.subr.mxu0 0.0
      %2201 = vmatpush1.msra.mxu0 0.0
      %2202 = vmatprep.subr.mxu0 0.0
      %2203 = vmatpush1.msra.mxu0 0.0
      %2204 = vmatprep.subr.mxu0 0.0
      %2205 = vmatpush1.msra.mxu0 0.0
      %2206 = vmatprep.subr.mxu0 0.0
      %2207 = vmatpush1.msra.mxu0 0.0
      %2208 = vmatprep.subr.mxu0 0.0
      %2209 = vmatpush1.msra.mxu0 0.0
      %2210 = vmatprep.subr.mxu0 0.0
      %2211 = vmatpush1.msra.mxu0 0.0
      %2212 = vmatprep.subr.mxu0 0.0
      %2213 = vmatpush1.msra.mxu0 0.0
      %2214 = vmatprep.subr.mxu0 0.0
      %2215 = vmatpush1.msra.mxu0 0.0
      %2216 = vmatprep.subr.mxu0 0.0
      %2217 = vmatpush1.msra.mxu0 0.0
      %2218 = vmatprep.subr.mxu0 0.0
      %2219 = vmatpush1.msra.mxu0 0.0
      %2220 = vmatprep.subr.mxu0 0.0
      %2221 = vmatpush1.msra.mxu0 0.0
      %2222 = vmatprep.mubr.f32.mxu0 0.0
      %2223 = vmatmul.mubr.f32.gmra.mrb[0].mxu0 %v2123
      %v2224 = vpop.f32.mrb[0].mxu0
      %v2225 = vadd.f32 0.0, %v2224
      %v2226 = vpop.f32.mrb[0].mxu0
      %2227 = vmatprep.mubr.f32.mxu0 0.0
      %2228 = vmatmul.mubr.f32.gmra.mrb[0].mxu0 %v2125
      %v2229 = vpop.f32.mrb[0].mxu0
      %v2230 = vadd.f32 0.0, %v2229
      %v2231 = vpop.f32.mrb[0].mxu0
      %2232 = vmatprep.mubr.f32.mxu0 0.0
      %2233 = vmatmul.mubr.f32.gmra.mrb[0].mxu0 %v2127
      %v2234 = vpop.f32.mrb[0].mxu0
      %v2235 = vadd.f32 0.0, %v2234
      %v2236 = vpop.f32.mrb[0].mxu0
      %2237 = vmatprep.mubr.f32.mxu0 0.0
      %2238 = vmatmul.mubr.f32.gmra.mrb[0].mxu0 %v2129
      %v2239 = vpop.f32.mrb[0].mxu0
      %v2240 = vadd.f32 0.0, %v2239
      %v2241 = vpop.f32.mrb[0].mxu0
      %2242 = vmatprep.mubr.f32.mxu0 0.0
      %2243 = vmatmul.mubr.f32.gmra.mrb[0].mxu0 %v2131
      %v2244 = vpop.f32.mrb[0].mxu0
      %v2245 = vadd.f32 0.0, %v2244
      %v2246 = vpop.f32.mrb[0].mxu0
      %2247 = vmatprep.mubr.f32.mxu0 0.0
      %2248 = vmatmul.mubr.f32.gmra.mrb[0].mxu0 %v2133
      %v2249 = vpop.f32.mrb[0].mxu0
      %v2250 = vadd.f32 0.0, %v2249
      %v2251 = vpop.f32.mrb[0].mxu0
      %2252 = vmatprep.mubr.f32.mxu0 0.0
      %2253 = vmatmul.mubr.f32.gmra.mrb[0].mxu0 %v2135
      %v2254 = vpop.f32.mrb[0].mxu0
      %v2255 = vadd.f32 0.0, %v2254
      %v2256 = vpop.f32.mrb[0].mxu0
      %2257 = vmatprep.mubr.f32.mxu0 0.0
      %2258 = vmatmul.mubr.f32.gmra.mrb[0].mxu0 %v2137
      %v2259 = vpop.f32.mrb[0].mxu0
      %v2260 = vadd.f32 0.0, %v2259
      %v2261 = vpop.f32.mrb[0].mxu0
      %2262 = vmatprep.mubr.f32.mxu0 0.0
      %2263 = vmatmul.mubr.f32.gmra.mrb[0].mxu0 %v2139
      %v2264 = vpop.f32.mrb[0].mxu0
      %v2265 = vadd.f32 0.0, %v2264
      %v2266 = vpop.f32.mrb[0].mxu0
      %2267 = vmatprep.mubr.f32.mxu0 0.0
      %2268 = vmatmul.mubr.f32.gmra.mrb[0].mxu0 %v2141
      %v2269 = vpop.f32.mrb[0].mxu0
      %v2270 = vadd.f32 0.0, %v2269
      %v2271 = vpop.f32.mrb[0].mxu0
      %2272 = vmatprep.mubr.f32.mxu0 0.0
      %2273 = vmatmul.mubr.f32.gmra.mrb[0].mxu0 %v2143
      %v2274 = vpop.f32.mrb[0].mxu0
      %v2275 = vadd.f32 0.0, %v2274
      %v2276 = vpop.f32.mrb[0].mxu0
      %2277 = vmatprep.mubr.f32.mxu0 0.0
      %2278 = vmatmul.mubr.f32.gmra.mrb[0].mxu0 %v2145
      %v2279 = vpop.f32.mrb[0].mxu0
      %v2280 = vadd.f32 0.0, %v2279
      %v2281 = vpop.f32.mrb[0].mxu0
      %2282 = vmatprep.mubr.f32.mxu0 0.0
      %2283 = vmatmul.mubr.f32.gmra.mrb[0].mxu0 %v2147
      %v2284 = vpop.f32.mrb[0].mxu0
      %v2285 = vadd.f32 0.0, %v2284
      %v2286 = vpop.f32.mrb[0].mxu0
      %2287 = vmatprep.mubr.f32.mxu0 0.0
      %2288 = vmatmul.mubr.f32.gmra.mrb[0].mxu0 %v2149
      %v2289 = vpop.f32.mrb[0].mxu0
      %v2290 = vadd.f32 0.0, %v2289
      %v2291 = vpop.f32.mrb[0].mxu0
      %2292 = vmatprep.mubr.f32.mxu0 0.0
      %2293 = vmatmul.mubr.f32.gmra.mrb[0].mxu0 %v2151
      %v2294 = vpop.f32.mrb[0].mxu0
      %v2295 = vadd.f32 0.0, %v2294
      %v2296 = vpop.f32.mrb[0].mxu0
      %2297 = vmatprep.mubr.f32.mxu0 0.0
      %2298 = vmatmul.mubr.f32.gmra.mrb[0].mxu0 %v2153
      %v2299 = vpop.f32.mrb[0].mxu0
      %v2300 = vadd.f32 0.0, %v2299
      %v2301 = vpop.f32.mrb[0].mxu0
      %2302 = vdwg.mxu0
      %v2303 = vadd.f32 %v2059, %v2225
      %v2304 = vadd.f32 %v2060, %v2230
      %v2305 = vadd.f32 %v2061, %v2235
      %v2306 = vadd.f32 %v2062, %v2240
      %v2307 = vadd.f32 %v2063, %v2245
      %v2308 = vadd.f32 %v2064, %v2250
      %v2309 = vadd.f32 %v2065, %v2255
      %v2310 = vadd.f32 %v2066, %v2260
      %v2311 = vadd.f32 %v2067, %v2265
      %v2312 = vadd.f32 %v2068, %v2270
      %v2313 = vadd.f32 %v2069, %v2275
      %v2314 = vadd.f32 %v2070, %v2280
      %v2315 = vadd.f32 %v2071, %v2285
      %v2316 = vadd.f32 %v2072, %v2290
      %v2317 = vadd.f32 %v2073, %v2295
      %v2318 = vadd.f32 %v2074, %v2300
      %s2319 = scalar_lea.vmem [#allocation2], 64
      %v2320 = vld [vmem:[%s2319] sm:$0xff]
      %v2321 = vld [vmem:[%s2319 + $0x8] sm:$0xff]
      %v2322 = vld [vmem:[%s2319 + $0x10] sm:$0xff]
      %v2323 = vld [vmem:[%s2319 + $0x18] sm:$0xff]
      %v2324 = vld [vmem:[%s2319 + $0x20] sm:$0xff]
      %v2325 = vld [vmem:[%s2319 + $0x28] sm:$0xff]
      %v2326 = vld [vmem:[%s2319 + $0x30] sm:$0xff]
      %v2327 = vld [vmem:[%s2319 + $0x38] sm:$0xff]
      %v2328 = vld [vmem:[%s2319 + $0x40] sm:$0xff]
      %v2329 = vld [vmem:[%s2319 + $0x48] sm:$0xff]
      %v2330 = vld [vmem:[%s2319 + $0x50] sm:$0xff]
      %v2331 = vld [vmem:[%s2319 + $0x58] sm:$0xff]
      %v2332 = vld [vmem:[%s2319 + $0x60] sm:$0xff]
      %v2333 = vld [vmem:[%s2319 + $0x68] sm:$0xff]
      %v2334 = vld [vmem:[%s2319 + $0x70] sm:$0xff]
      %v2335 = vld [vmem:[%s2319 + $0x78] sm:$0xff]
      %v2336 = vld [vmem:[%s2319 + $0x80] sm:$0xff]
      %v2337 = vld [vmem:[%s2319 + $0x88] sm:$0xff]
      %v2338 = vld [vmem:[%s2319 + $0x90] sm:$0xff]
      %v2339 = vld [vmem:[%s2319 + $0x98] sm:$0xff]
      %v2340 = vld [vmem:[%s2319 + $0xa0] sm:$0xff]
      %v2341 = vld [vmem:[%s2319 + $0xa8] sm:$0xff]
      %v2342 = vld [vmem:[%s2319 + $0xb0] sm:$0xff]
      %v2343 = vld [vmem:[%s2319 + $0xb8] sm:$0xff]
      %v2344 = vld [vmem:[%s2319 + $0xc0] sm:$0xff]
      %v2345 = vld [vmem:[%s2319 + $0xc8] sm:$0xff]
      %v2346 = vld [vmem:[%s2319 + $0xd0] sm:$0xff]
      %v2347 = vld [vmem:[%s2319 + $0xd8] sm:$0xff]
      %v2348 = vld [vmem:[%s2319 + $0xe0] sm:$0xff]
      %v2349 = vld [vmem:[%s2319 + $0xe8] sm:$0xff]
      %v2350 = vld [vmem:[%s2319 + $0xf0] sm:$0xff]
      %v2351 = vld [vmem:[%s2319 + $0xf8] sm:$0xff]
      %v2376 = vrot.slane %v2320, 7
      %v2377 = vrot.slane %v2321, 7
      %v2378 = vsel %vm940, %v2376, %v2377
      %v2379 = vrot.slane %v2322, 7
      %v2380 = vsel %vm940, %v2377, %v2379
      %v2381 = vrot.slane %v2324, 7
      %v2382 = vrot.slane %v2325, 7
      %v2383 = vsel %vm940, %v2381, %v2382
      %v2384 = vrot.slane %v2326, 7
      %v2385 = vsel %vm940, %v2382, %v2384
      %v2386 = vrot.slane %v2328, 7
      %v2387 = vrot.slane %v2329, 7
      %v2388 = vsel %vm940, %v2386, %v2387
      %v2389 = vrot.slane %v2330, 7
      %v2390 = vsel %vm940, %v2387, %v2389
      %v2391 = vrot.slane %v2332, 7
      %v2392 = vrot.slane %v2333, 7
      %v2393 = vsel %vm940, %v2391, %v2392
      %v2394 = vrot.slane %v2334, 7
      %v2395 = vsel %vm940, %v2392, %v2394
      %v2396 = vrot.slane %v2336, 7
      %v2397 = vrot.slane %v2337, 7
      %v2398 = vsel %vm940, %v2396, %v2397
      %v2399 = vrot.slane %v2338, 7
      %v2400 = vsel %vm940, %v2397, %v2399
      %v2401 = vrot.slane %v2340, 7
      %v2402 = vrot.slane %v2341, 7
      %v2403 = vsel %vm940, %v2401, %v2402
      %v2404 = vrot.slane %v2342, 7
      %v2405 = vsel %vm940, %v2402, %v2404
      %v2406 = vrot.slane %v2344, 7
      %v2407 = vrot.slane %v2345, 7
      %v2408 = vsel %vm940, %v2406, %v2407
      %v2409 = vrot.slane %v2346, 7
      %v2410 = vsel %vm940, %v2407, %v2409
      %v2411 = vrot.slane %v2348, 7
      %v2412 = vrot.slane %v2349, 7
      %v2413 = vsel %vm940, %v2411, %v2412
      %v2414 = vrot.slane %v2350, 7
      %v2415 = vsel %vm940, %v2412, %v2414
      %v2416 = vsel %vm308, %v2378, 0
      %v2418 = vsel %vm308, %v2380, 0
      %v2420 = vsel %vm308, %v2383, 0
      %v2422 = vsel %vm308, %v2385, 0
      %v2424 = vsel %vm308, %v2388, 0
      %v2426 = vsel %vm308, %v2390, 0
      %v2428 = vsel %vm308, %v2393, 0
      %v2430 = vsel %vm308, %v2395, 0
      %v2432 = vsel %vm308, %v2398, 0
      %v2434 = vsel %vm308, %v2400, 0
      %v2436 = vsel %vm308, %v2403, 0
      %v2438 = vsel %vm308, %v2405, 0
      %v2440 = vsel %vm308, %v2408, 0
      %v2442 = vsel %vm308, %v2410, 0
      %v2444 = vsel %vm308, %v2413, 0
      %v2446 = vsel %vm308, %v2415, 0
      %v2449 = vsel %vm1013, %v881, 0
      %2451 = vmatprep.subr.mxu0 0.0
      %2452 = vmatpush1.msra.mxu0 %v2449
      %2453 = vmatprep.subr.mxu0 0.0
      %2454 = vmatpush1.msra.mxu0 0.0
      %2455 = vmatprep.subr.mxu0 0.0
      %2456 = vmatpush1.msra.mxu0 0.0
      %2457 = vmatprep.subr.mxu0 0.0
      %2458 = vmatpush1.msra.mxu0 0.0
      %2459 = vmatprep.subr.mxu0 0.0
      %2460 = vmatpush1.msra.mxu0 0.0
      %2461 = vmatprep.subr.mxu0 0.0
      %2462 = vmatpush1.msra.mxu0 0.0
      %2463 = vmatprep.subr.mxu0 0.0
      %2464 = vmatpush1.msra.mxu0 0.0
      %2465 = vmatprep.subr.mxu0 0.0
      %2466 = vmatpush1.msra.mxu0 0.0
      %2467 = vmatprep.subr.mxu0 0.0
      %2468 = vmatpush1.msra.mxu0 0.0
      %2469 = vmatprep.subr.mxu0 0.0
      %2470 = vmatpush1.msra.mxu0 0.0
      %2471 = vmatprep.subr.mxu0 0.0
      %2472 = vmatpush1.msra.mxu0 0.0
      %2473 = vmatprep.subr.mxu0 0.0
      %2474 = vmatpush1.msra.mxu0 0.0
      %2475 = vmatprep.subr.mxu0 0.0
      %2476 = vmatpush1.msra.mxu0 0.0
      %2477 = vmatprep.subr.mxu0 0.0
      %2478 = vmatpush1.msra.mxu0 0.0
      %2479 = vmatprep.subr.mxu0 0.0
      %2480 = vmatpush1.msra.mxu0 0.0
      %2481 = vmatprep.subr.mxu0 0.0
      %2482 = vmatpush1.msra.mxu0 0.0
      %2483 = vmatprep.subr.mxu0 0.0
      %2484 = vmatpush1.msra.mxu0 0.0
      %2485 = vmatprep.subr.mxu0 0.0
      %2486 = vmatpush1.msra.mxu0 0.0
      %2487 = vmatprep.subr.mxu0 0.0
      %2488 = vmatpush1.msra.mxu0 0.0
      %2489 = vmatprep.subr.mxu0 0.0
      %2490 = vmatpush1.msra.mxu0 0.0
      %2491 = vmatprep.subr.mxu0 0.0
      %2492 = vmatpush1.msra.mxu0 0.0
      %2493 = vmatprep.subr.mxu0 0.0
      %2494 = vmatpush1.msra.mxu0 0.0
      %2495 = vmatprep.subr.mxu0 0.0
      %2496 = vmatpush1.msra.mxu0 0.0
      %2497 = vmatprep.subr.mxu0 0.0
      %2498 = vmatpush1.msra.mxu0 0.0
      %2499 = vmatprep.subr.mxu0 0.0
      %2500 = vmatpush1.msra.mxu0 0.0
      %2501 = vmatprep.subr.mxu0 0.0
      %2502 = vmatpush1.msra.mxu0 0.0
      %2503 = vmatprep.subr.mxu0 0.0
      %2504 = vmatpush1.msra.mxu0 0.0
      %2505 = vmatprep.subr.mxu0 0.0
      %2506 = vmatpush1.msra.mxu0 0.0
      %2507 = vmatprep.subr.mxu0 0.0
      %2508 = vmatpush1.msra.mxu0 0.0
      %2509 = vmatprep.subr.mxu0 0.0
      %2510 = vmatpush1.msra.mxu0 0.0
      %2511 = vmatprep.subr.mxu0 0.0
      %2512 = vmatpush1.msra.mxu0 0.0
      %2513 = vmatprep.subr.mxu0 0.0
      %2514 = vmatpush1.msra.mxu0 0.0
      %2515 = vmatprep.mubr.f32.mxu0 0.0
      %2516 = vmatmul.mubr.f32.gmra.mrb[0].mxu0 %v2416
      %v2517 = vpop.f32.mrb[0].mxu0
      %v2518 = vadd.f32 0.0, %v2517
      %v2519 = vpop.f32.mrb[0].mxu0
      %2520 = vmatprep.mubr.f32.mxu0 0.0
      %2521 = vmatmul.mubr.f32.gmra.mrb[0].mxu0 %v2418
      %v2522 = vpop.f32.mrb[0].mxu0
      %v2523 = vadd.f32 0.0, %v2522
      %v2524 = vpop.f32.mrb[0].mxu0
      %2525 = vmatprep.mubr.f32.mxu0 0.0
      %2526 = vmatmul.mubr.f32.gmra.mrb[0].mxu0 %v2420
      %v2527 = vpop.f32.mrb[0].mxu0
      %v2528 = vadd.f32 0.0, %v2527
      %v2529 = vpop.f32.mrb[0].mxu0
      %2530 = vmatprep.mubr.f32.mxu0 0.0
      %2531 = vmatmul.mubr.f32.gmra.mrb[0].mxu0 %v2422
      %v2532 = vpop.f32.mrb[0].mxu0
      %v2533 = vadd.f32 0.0, %v2532
      %v2534 = vpop.f32.mrb[0].mxu0
      %2535 = vmatprep.mubr.f32.mxu0 0.0
      %2536 = vmatmul.mubr.f32.gmra.mrb[0].mxu0 %v2424
      %v2537 = vpop.f32.mrb[0].mxu0
      %v2538 = vadd.f32 0.0, %v2537
      %v2539 = vpop.f32.mrb[0].mxu0
      %2540 = vmatprep.mubr.f32.mxu0 0.0
      %2541 = vmatmul.mubr.f32.gmra.mrb[0].mxu0 %v2426
      %v2542 = vpop.f32.mrb[0].mxu0
      %v2543 = vadd.f32 0.0, %v2542
      %v2544 = vpop.f32.mrb[0].mxu0
      %2545 = vmatprep.mubr.f32.mxu0 0.0
      %2546 = vmatmul.mubr.f32.gmra.mrb[0].mxu0 %v2428
      %v2547 = vpop.f32.mrb[0].mxu0
      %v2548 = vadd.f32 0.0, %v2547
      %v2549 = vpop.f32.mrb[0].mxu0
      %2550 = vmatprep.mubr.f32.mxu0 0.0
      %2551 = vmatmul.mubr.f32.gmra.mrb[0].mxu0 %v2430
      %v2552 = vpop.f32.mrb[0].mxu0
      %v2553 = vadd.f32 0.0, %v2552
      %v2554 = vpop.f32.mrb[0].mxu0
      %2555 = vmatprep.mubr.f32.mxu0 0.0
      %2556 = vmatmul.mubr.f32.gmra.mrb[0].mxu0 %v2432
      %v2557 = vpop.f32.mrb[0].mxu0
      %v2558 = vadd.f32 0.0, %v2557
      %v2559 = vpop.f32.mrb[0].mxu0
      %2560 = vmatprep.mubr.f32.mxu0 0.0
      %2561 = vmatmul.mubr.f32.gmra.mrb[0].mxu0 %v2434
      %v2562 = vpop.f32.mrb[0].mxu0
      %v2563 = vadd.f32 0.0, %v2562
      %v2564 = vpop.f32.mrb[0].mxu0
      %2565 = vmatprep.mubr.f32.mxu0 0.0
      %2566 = vmatmul.mubr.f32.gmra.mrb[0].mxu0 %v2436
      %v2567 = vpop.f32.mrb[0].mxu0
      %v2568 = vadd.f32 0.0, %v2567
      %v2569 = vpop.f32.mrb[0].mxu0
      %2570 = vmatprep.mubr.f32.mxu0 0.0
      %2571 = vmatmul.mubr.f32.gmra.mrb[0].mxu0 %v2438
      %v2572 = vpop.f32.mrb[0].mxu0
      %v2573 = vadd.f32 0.0, %v2572
      %v2574 = vpop.f32.mrb[0].mxu0
      %2575 = vmatprep.mubr.f32.mxu0 0.0
      %2576 = vmatmul.mubr.f32.gmra.mrb[0].mxu0 %v2440
      %v2577 = vpop.f32.mrb[0].mxu0
      %v2578 = vadd.f32 0.0, %v2577
      %v2579 = vpop.f32.mrb[0].mxu0
      %2580 = vmatprep.mubr.f32.mxu0 0.0
      %2581 = vmatmul.mubr.f32.gmra.mrb[0].mxu0 %v2442
      %v2582 = vpop.f32.mrb[0].mxu0
      %v2583 = vadd.f32 0.0, %v2582
      %v2584 = vpop.f32.mrb[0].mxu0
      %2585 = vmatprep.mubr.f32.mxu0 0.0
      %2586 = vmatmul.mubr.f32.gmra.mrb[0].mxu0 %v2444
      %v2587 = vpop.f32.mrb[0].mxu0
      %v2588 = vadd.f32 0.0, %v2587
      %v2589 = vpop.f32.mrb[0].mxu0
      %2590 = vmatprep.mubr.f32.mxu0 0.0
      %2591 = vmatmul.mubr.f32.gmra.mrb[0].mxu0 %v2446
      %v2592 = vpop.f32.mrb[0].mxu0
      %v2593 = vadd.f32 0.0, %v2592
      %v2594 = vpop.f32.mrb[0].mxu0
      %2595 = vdwg.mxu0
      %v2596 = vadd.f32 %v2303, %v2518
      %v2597 = vadd.f32 %v2304, %v2523
      %v2598 = vadd.f32 %v2305, %v2528
      %v2599 = vadd.f32 %v2306, %v2533
      %v2600 = vadd.f32 %v2307, %v2538
      %v2601 = vadd.f32 %v2308, %v2543
      %v2602 = vadd.f32 %v2309, %v2548
      %v2603 = vadd.f32 %v2310, %v2553
      %v2604 = vadd.f32 %v2311, %v2558
      %v2605 = vadd.f32 %v2312, %v2563
      %v2606 = vadd.f32 %v2313, %v2568
      %v2607 = vadd.f32 %v2314, %v2573
      %v2608 = vadd.f32 %v2315, %v2578
      %v2609 = vadd.f32 %v2316, %v2583
      %v2610 = vadd.f32 %v2317, %v2588
      %v2611 = vadd.f32 %v2318, %v2593
      %v2612 = vsel %vm308, %v2321, 0
      %v2614 = vsel %vm308, %v2322, 0
      %v2616 = vsel %vm308, %v2325, 0
      %v2618 = vsel %vm308, %v2326, 0
      %v2620 = vsel %vm308, %v2329, 0
      %v2622 = vsel %vm308, %v2330, 0
      %v2624 = vsel %vm308, %v2333, 0
      %v2626 = vsel %vm308, %v2334, 0
      %v2628 = vsel %vm308, %v2337, 0
      %v2630 = vsel %vm308, %v2338, 0
      %v2632 = vsel %vm308, %v2341, 0
      %v2634 = vsel %vm308, %v2342, 0
      %v2636 = vsel %vm308, %v2345, 0
      %v2638 = vsel %vm308, %v2346, 0
      %v2640 = vsel %vm308, %v2349, 0
      %v2642 = vsel %vm308, %v2350, 0
      %v2645 = vsel %vm1013, %v882, 0
      %2647 = vmatprep.subr.mxu0 0.0
      %2648 = vmatpush1.msra.mxu0 %v2645
      %2649 = vmatprep.subr.mxu0 0.0
      %2650 = vmatpush1.msra.mxu0 0.0
      %2651 = vmatprep.subr.mxu0 0.0
      %2652 = vmatpush1.msra.mxu0 0.0
      %2653 = vmatprep.subr.mxu0 0.0
      %2654 = vmatpush1.msra.mxu0 0.0
      %2655 = vmatprep.subr.mxu0 0.0
      %2656 = vmatpush1.msra.mxu0 0.0
      %2657 = vmatprep.subr.mxu0 0.0
      %2658 = vmatpush1.msra.mxu0 0.0
      %2659 = vmatprep.subr.mxu0 0.0
      %2660 = vmatpush1.msra.mxu0 0.0
      %2661 = vmatprep.subr.mxu0 0.0
      %2662 = vmatpush1.msra.mxu0 0.0
      %2663 = vmatprep.subr.mxu0 0.0
      %2664 = vmatpush1.msra.mxu0 0.0
      %2665 = vmatprep.subr.mxu0 0.0
      %2666 = vmatpush1.msra.mxu0 0.0
      %2667 = vmatprep.subr.mxu0 0.0
      %2668 = vmatpush1.msra.mxu0 0.0
      %2669 = vmatprep.subr.mxu0 0.0
      %2670 = vmatpush1.msra.mxu0 0.0
      %2671 = vmatprep.subr.mxu0 0.0
      %2672 = vmatpush1.msra.mxu0 0.0
      %2673 = vmatprep.subr.mxu0 0.0
      %2674 = vmatpush1.msra.mxu0 0.0
      %2675 = vmatprep.subr.mxu0 0.0
      %2676 = vmatpush1.msra.mxu0 0.0
      %2677 = vmatprep.subr.mxu0 0.0
      %2678 = vmatpush1.msra.mxu0 0.0
      %2679 = vmatprep.subr.mxu0 0.0
      %2680 = vmatpush1.msra.mxu0 0.0
      %2681 = vmatprep.subr.mxu0 0.0
      %2682 = vmatpush1.msra.mxu0 0.0
      %2683 = vmatprep.subr.mxu0 0.0
      %2684 = vmatpush1.msra.mxu0 0.0
      %2685 = vmatprep.subr.mxu0 0.0
      %2686 = vmatpush1.msra.mxu0 0.0
      %2687 = vmatprep.subr.mxu0 0.0
      %2688 = vmatpush1.msra.mxu0 0.0
      %2689 = vmatprep.subr.mxu0 0.0
      %2690 = vmatpush1.msra.mxu0 0.0
      %2691 = vmatprep.subr.mxu0 0.0
      %2692 = vmatpush1.msra.mxu0 0.0
      %2693 = vmatprep.subr.mxu0 0.0
      %2694 = vmatpush1.msra.mxu0 0.0
      %2695 = vmatprep.subr.mxu0 0.0
      %2696 = vmatpush1.msra.mxu0 0.0
      %2697 = vmatprep.subr.mxu0 0.0
      %2698 = vmatpush1.msra.mxu0 0.0
      %2699 = vmatprep.subr.mxu0 0.0
      %2700 = vmatpush1.msra.mxu0 0.0
      %2701 = vmatprep.subr.mxu0 0.0
      %2702 = vmatpush1.msra.mxu0 0.0
      %2703 = vmatprep.subr.mxu0 0.0
      %2704 = vmatpush1.msra.mxu0 0.0
      %2705 = vmatprep.subr.mxu0 0.0
      %2706 = vmatpush1.msra.mxu0 0.0
      %2707 = vmatprep.subr.mxu0 0.0
      %2708 = vmatpush1.msra.mxu0 0.0
      %2709 = vmatprep.subr.mxu0 0.0
      %2710 = vmatpush1.msra.mxu0 0.0
      %2711 = vmatprep.mubr.f32.mxu0 0.0
      %2712 = vmatmul.mubr.f32.gmra.mrb[0].mxu0 %v2612
      %v2713 = vpop.f32.mrb[0].mxu0
      %v2714 = vadd.f32 0.0, %v2713
      %v2715 = vpop.f32.mrb[0].mxu0
      %2716 = vmatprep.mubr.f32.mxu0 0.0
      %2717 = vmatmul.mubr.f32.gmra.mrb[0].mxu0 %v2614
      %v2718 = vpop.f32.mrb[0].mxu0
      %v2719 = vadd.f32 0.0, %v2718
      %v2720 = vpop.f32.mrb[0].mxu0
      %2721 = vmatprep.mubr.f32.mxu0 0.0
      %2722 = vmatmul.mubr.f32.gmra.mrb[0].mxu0 %v2616
      %v2723 = vpop.f32.mrb[0].mxu0
      %v2724 = vadd.f32 0.0, %v2723
      %v2725 = vpop.f32.mrb[0].mxu0
      %2726 = vmatprep.mubr.f32.mxu0 0.0
      %2727 = vmatmul.mubr.f32.gmra.mrb[0].mxu0 %v2618
      %v2728 = vpop.f32.mrb[0].mxu0
      %v2729 = vadd.f32 0.0, %v2728
      %v2730 = vpop.f32.mrb[0].mxu0
      %2731 = vmatprep.mubr.f32.mxu0 0.0
      %2732 = vmatmul.mubr.f32.gmra.mrb[0].mxu0 %v2620
      %v2733 = vpop.f32.mrb[0].mxu0
      %v2734 = vadd.f32 0.0, %v2733
      %v2735 = vpop.f32.mrb[0].mxu0
      %2736 = vmatprep.mubr.f32.mxu0 0.0
      %2737 = vmatmul.mubr.f32.gmra.mrb[0].mxu0 %v2622
      %v2738 = vpop.f32.mrb[0].mxu0
      %v2739 = vadd.f32 0.0, %v2738
      %v2740 = vpop.f32.mrb[0].mxu0
      %2741 = vmatprep.mubr.f32.mxu0 0.0
      %2742 = vmatmul.mubr.f32.gmra.mrb[0].mxu0 %v2624
      %v2743 = vpop.f32.mrb[0].mxu0
      %v2744 = vadd.f32 0.0, %v2743
      %v2745 = vpop.f32.mrb[0].mxu0
      %2746 = vmatprep.mubr.f32.mxu0 0.0
      %2747 = vmatmul.mubr.f32.gmra.mrb[0].mxu0 %v2626
      %v2748 = vpop.f32.mrb[0].mxu0
      %v2749 = vadd.f32 0.0, %v2748
      %v2750 = vpop.f32.mrb[0].mxu0
      %2751 = vmatprep.mubr.f32.mxu0 0.0
      %2752 = vmatmul.mubr.f32.gmra.mrb[0].mxu0 %v2628
      %v2753 = vpop.f32.mrb[0].mxu0
      %v2754 = vadd.f32 0.0, %v2753
      %v2755 = vpop.f32.mrb[0].mxu0
      %2756 = vmatprep.mubr.f32.mxu0 0.0
      %2757 = vmatmul.mubr.f32.gmra.mrb[0].mxu0 %v2630
      %v2758 = vpop.f32.mrb[0].mxu0
      %v2759 = vadd.f32 0.0, %v2758
      %v2760 = vpop.f32.mrb[0].mxu0
      %2761 = vmatprep.mubr.f32.mxu0 0.0
      %2762 = vmatmul.mubr.f32.gmra.mrb[0].mxu0 %v2632
      %v2763 = vpop.f32.mrb[0].mxu0
      %v2764 = vadd.f32 0.0, %v2763
      %v2765 = vpop.f32.mrb[0].mxu0
      %2766 = vmatprep.mubr.f32.mxu0 0.0
      %2767 = vmatmul.mubr.f32.gmra.mrb[0].mxu0 %v2634
      %v2768 = vpop.f32.mrb[0].mxu0
      %v2769 = vadd.f32 0.0, %v2768
      %v2770 = vpop.f32.mrb[0].mxu0
      %2771 = vmatprep.mubr.f32.mxu0 0.0
      %2772 = vmatmul.mubr.f32.gmra.mrb[0].mxu0 %v2636
      %v2773 = vpop.f32.mrb[0].mxu0
      %v2774 = vadd.f32 0.0, %v2773
      %v2775 = vpop.f32.mrb[0].mxu0
      %2776 = vmatprep.mubr.f32.mxu0 0.0
      %2777 = vmatmul.mubr.f32.gmra.mrb[0].mxu0 %v2638
      %v2778 = vpop.f32.mrb[0].mxu0
      %v2779 = vadd.f32 0.0, %v2778
      %v2780 = vpop.f32.mrb[0].mxu0
      %2781 = vmatprep.mubr.f32.mxu0 0.0
      %2782 = vmatmul.mubr.f32.gmra.mrb[0].mxu0 %v2640
      %v2783 = vpop.f32.mrb[0].mxu0
      %v2784 = vadd.f32 0.0, %v2783
      %v2785 = vpop.f32.mrb[0].mxu0
      %2786 = vmatprep.mubr.f32.mxu0 0.0
      %2787 = vmatmul.mubr.f32.gmra.mrb[0].mxu0 %v2642
      %v2788 = vpop.f32.mrb[0].mxu0
      %v2789 = vadd.f32 0.0, %v2788
      %v2790 = vpop.f32.mrb[0].mxu0
      %2791 = vdwg.mxu0
      %v2792 = vadd.f32 %v2596, %v2714
      %v2793 = vadd.f32 %v2597, %v2719
      %v2794 = vadd.f32 %v2598, %v2724
      %v2795 = vadd.f32 %v2599, %v2729
      %v2796 = vadd.f32 %v2600, %v2734
      %v2797 = vadd.f32 %v2601, %v2739
      %v2798 = vadd.f32 %v2602, %v2744
      %v2799 = vadd.f32 %v2603, %v2749
      %v2800 = vadd.f32 %v2604, %v2754
      %v2801 = vadd.f32 %v2605, %v2759
      %v2802 = vadd.f32 %v2606, %v2764
      %v2803 = vadd.f32 %v2607, %v2769
      %v2804 = vadd.f32 %v2608, %v2774
      %v2805 = vadd.f32 %v2609, %v2779
      %v2806 = vadd.f32 %v2610, %v2784
      %v2807 = vadd.f32 %v2611, %v2789
      %v2816 = vrot.slane %v2321, 1
      %v2817 = vrot.slane %v2322, 1
      %v2818 = vsel %vm1350, %v2816, %v2817
      %v2819 = vrot.slane %v2323, 1
      %v2820 = vsel %vm1350, %v2817, %v2819
      %v2821 = vrot.slane %v2325, 1
      %v2822 = vrot.slane %v2326, 1
      %v2823 = vsel %vm1350, %v2821, %v2822
      %v2824 = vrot.slane %v2327, 1
      %v2825 = vsel %vm1350, %v2822, %v2824
      %v2826 = vrot.slane %v2329, 1
      %v2827 = vrot.slane %v2330, 1
      %v2828 = vsel %vm1350, %v2826, %v2827
      %v2829 = vrot.slane %v2331, 1
      %v2830 = vsel %vm1350, %v2827, %v2829
      %v2831 = vrot.slane %v2333, 1
      %v2832 = vrot.slane %v2334, 1
      %v2833 = vsel %vm1350, %v2831, %v2832
      %v2834 = vrot.slane %v2335, 1
      %v2835 = vsel %vm1350, %v2832, %v2834
      %v2836 = vrot.slane %v2337, 1
      %v2837 = vrot.slane %v2338, 1
      %v2838 = vsel %vm1350, %v2836, %v2837
      %v2839 = vrot.slane %v2339, 1
      %v2840 = vsel %vm1350, %v2837, %v2839
      %v2841 = vrot.slane %v2341, 1
      %v2842 = vrot.slane %v2342, 1
      %v2843 = vsel %vm1350, %v2841, %v2842
      %v2844 = vrot.slane %v2343, 1
      %v2845 = vsel %vm1350, %v2842, %v2844
      %v2846 = vrot.slane %v2345, 1
      %v2847 = vrot.slane %v2346, 1
      %v2848 = vsel %vm1350, %v2846, %v2847
      %v2849 = vrot.slane %v2347, 1
      %v2850 = vsel %vm1350, %v2847, %v2849
      %v2851 = vrot.slane %v2349, 1
      %v2852 = vrot.slane %v2350, 1
      %v2853 = vsel %vm1350, %v2851, %v2852
      %v2854 = vrot.slane %v2351, 1
      %v2855 = vsel %vm1350, %v2852, %v2854
      %v2856 = vsel %vm308, %v2818, 0
      %v2858 = vsel %vm308, %v2820, 0
      %v2860 = vsel %vm308, %v2823, 0
      %v2862 = vsel %vm308, %v2825, 0
      %v2864 = vsel %vm308, %v2828, 0
      %v2866 = vsel %vm308, %v2830, 0
      %v2868 = vsel %vm308, %v2833, 0
      %v2870 = vsel %vm308, %v2835, 0
      %v2872 = vsel %vm308, %v2838, 0
      %v2874 = vsel %vm308, %v2840, 0
      %v2876 = vsel %vm308, %v2843, 0
      %v2878 = vsel %vm308, %v2845, 0
      %v2880 = vsel %vm308, %v2848, 0
      %v2882 = vsel %vm308, %v2850, 0
      %v2884 = vsel %vm308, %v2853, 0
      %v2886 = vsel %vm308, %v2855, 0
      %v2889 = vsel %vm1013, %v883, 0
      %2891 = vmatprep.subr.mxu0 0.0
      %2892 = vmatpush1.msra.mxu0 %v2889
      %2893 = vmatprep.subr.mxu0 0.0
      %2894 = vmatpush1.msra.mxu0 0.0
      %2895 = vmatprep.subr.mxu0 0.0
      %2896 = vmatpush1.msra.mxu0 0.0
      %2897 = vmatprep.subr.mxu0 0.0
      %2898 = vmatpush1.msra.mxu0 0.0
      %2899 = vmatprep.subr.mxu0 0.0
      %2900 = vmatpush1.msra.mxu0 0.0
      %2901 = vmatprep.subr.mxu0 0.0
      %2902 = vmatpush1.msra.mxu0 0.0
      %2903 = vmatprep.subr.mxu0 0.0
      %2904 = vmatpush1.msra.mxu0 0.0
      %2905 = vmatprep.subr.mxu0 0.0
      %2906 = vmatpush1.msra.mxu0 0.0
      %2907 = vmatprep.subr.mxu0 0.0
      %2908 = vmatpush1.msra.mxu0 0.0
      %2909 = vmatprep.subr.mxu0 0.0
      %2910 = vmatpush1.msra.mxu0 0.0
      %2911 = vmatprep.subr.mxu0 0.0
      %2912 = vmatpush1.msra.mxu0 0.0
      %2913 = vmatprep.subr.mxu0 0.0
      %2914 = vmatpush1.msra.mxu0 0.0
      %2915 = vmatprep.subr.mxu0 0.0
      %2916 = vmatpush1.msra.mxu0 0.0
      %2917 = vmatprep.subr.mxu0 0.0
      %2918 = vmatpush1.msra.mxu0 0.0
      %2919 = vmatprep.subr.mxu0 0.0
      %2920 = vmatpush1.msra.mxu0 0.0
      %2921 = vmatprep.subr.mxu0 0.0
      %2922 = vmatpush1.msra.mxu0 0.0
      %2923 = vmatprep.subr.mxu0 0.0
      %2924 = vmatpush1.msra.mxu0 0.0
      %2925 = vmatprep.subr.mxu0 0.0
      %2926 = vmatpush1.msra.mxu0 0.0
      %2927 = vmatprep.subr.mxu0 0.0
      %2928 = vmatpush1.msra.mxu0 0.0
      %2929 = vmatprep.subr.mxu0 0.0
      %2930 = vmatpush1.msra.mxu0 0.0
      %2931 = vmatprep.subr.mxu0 0.0
      %2932 = vmatpush1.msra.mxu0 0.0
      %2933 = vmatprep.subr.mxu0 0.0
      %2934 = vmatpush1.msra.mxu0 0.0
      %2935 = vmatprep.subr.mxu0 0.0
      %2936 = vmatpush1.msra.mxu0 0.0
      %2937 = vmatprep.subr.mxu0 0.0
      %2938 = vmatpush1.msra.mxu0 0.0
      %2939 = vmatprep.subr.mxu0 0.0
      %2940 = vmatpush1.msra.mxu0 0.0
      %2941 = vmatprep.subr.mxu0 0.0
      %2942 = vmatpush1.msra.mxu0 0.0
      %2943 = vmatprep.subr.mxu0 0.0
      %2944 = vmatpush1.msra.mxu0 0.0
      %2945 = vmatprep.subr.mxu0 0.0
      %2946 = vmatpush1.msra.mxu0 0.0
      %2947 = vmatprep.subr.mxu0 0.0
      %2948 = vmatpush1.msra.mxu0 0.0
      %2949 = vmatprep.subr.mxu0 0.0
      %2950 = vmatpush1.msra.mxu0 0.0
      %2951 = vmatprep.subr.mxu0 0.0
      %2952 = vmatpush1.msra.mxu0 0.0
      %2953 = vmatprep.subr.mxu0 0.0
      %2954 = vmatpush1.msra.mxu0 0.0
      %2955 = vmatprep.mubr.f32.mxu0 0.0
      %2956 = vmatmul.mubr.f32.gmra.mrb[0].mxu0 %v2856
      %v2957 = vpop.f32.mrb[0].mxu0
      %v2958 = vadd.f32 0.0, %v2957
      %v2959 = vpop.f32.mrb[0].mxu0
      %2960 = vmatprep.mubr.f32.mxu0 0.0
      %2961 = vmatmul.mubr.f32.gmra.mrb[0].mxu0 %v2858
      %v2962 = vpop.f32.mrb[0].mxu0
      %v2963 = vadd.f32 0.0, %v2962
      %v2964 = vpop.f32.mrb[0].mxu0
      %2965 = vmatprep.mubr.f32.mxu0 0.0
      %2966 = vmatmul.mubr.f32.gmra.mrb[0].mxu0 %v2860
      %v2967 = vpop.f32.mrb[0].mxu0
      %v2968 = vadd.f32 0.0, %v2967
      %v2969 = vpop.f32.mrb[0].mxu0
      %2970 = vmatprep.mubr.f32.mxu0 0.0
      %2971 = vmatmul.mubr.f32.gmra.mrb[0].mxu0 %v2862
      %v2972 = vpop.f32.mrb[0].mxu0
      %v2973 = vadd.f32 0.0, %v2972
      %v2974 = vpop.f32.mrb[0].mxu0
      %2975 = vmatprep.mubr.f32.mxu0 0.0
      %2976 = vmatmul.mubr.f32.gmra.mrb[0].mxu0 %v2864
      %v2977 = vpop.f32.mrb[0].mxu0
      %v2978 = vadd.f32 0.0, %v2977
      %v2979 = vpop.f32.mrb[0].mxu0
      %2980 = vmatprep.mubr.f32.mxu0 0.0
      %2981 = vmatmul.mubr.f32.gmra.mrb[0].mxu0 %v2866
      %v2982 = vpop.f32.mrb[0].mxu0
      %v2983 = vadd.f32 0.0, %v2982
      %v2984 = vpop.f32.mrb[0].mxu0
      %2985 = vmatprep.mubr.f32.mxu0 0.0
      %2986 = vmatmul.mubr.f32.gmra.mrb[0].mxu0 %v2868
      %v2987 = vpop.f32.mrb[0].mxu0
      %v2988 = vadd.f32 0.0, %v2987
      %v2989 = vpop.f32.mrb[0].mxu0
      %2990 = vmatprep.mubr.f32.mxu0 0.0
      %2991 = vmatmul.mubr.f32.gmra.mrb[0].mxu0 %v2870
      %v2992 = vpop.f32.mrb[0].mxu0
      %v2993 = vadd.f32 0.0, %v2992
      %v2994 = vpop.f32.mrb[0].mxu0
      %2995 = vmatprep.mubr.f32.mxu0 0.0
      %2996 = vmatmul.mubr.f32.gmra.mrb[0].mxu0 %v2872
      %v2997 = vpop.f32.mrb[0].mxu0
      %v2998 = vadd.f32 0.0, %v2997
      %v2999 = vpop.f32.mrb[0].mxu0
      %3000 = vmatprep.mubr.f32.mxu0 0.0
      %3001 = vmatmul.mubr.f32.gmra.mrb[0].mxu0 %v2874
      %v3002 = vpop.f32.mrb[0].mxu0
      %v3003 = vadd.f32 0.0, %v3002
      %v3004 = vpop.f32.mrb[0].mxu0
      %3005 = vmatprep.mubr.f32.mxu0 0.0
      %3006 = vmatmul.mubr.f32.gmra.mrb[0].mxu0 %v2876
      %v3007 = vpop.f32.mrb[0].mxu0
      %v3008 = vadd.f32 0.0, %v3007
      %v3009 = vpop.f32.mrb[0].mxu0
      %3010 = vmatprep.mubr.f32.mxu0 0.0
      %3011 = vmatmul.mubr.f32.gmra.mrb[0].mxu0 %v2878
      %v3012 = vpop.f32.mrb[0].mxu0
      %v3013 = vadd.f32 0.0, %v3012
      %v3014 = vpop.f32.mrb[0].mxu0
      %3015 = vmatprep.mubr.f32.mxu0 0.0
      %3016 = vmatmul.mubr.f32.gmra.mrb[0].mxu0 %v2880
      %v3017 = vpop.f32.mrb[0].mxu0
      %v3018 = vadd.f32 0.0, %v3017
      %v3019 = vpop.f32.mrb[0].mxu0
      %3020 = vmatprep.mubr.f32.mxu0 0.0
      %3021 = vmatmul.mubr.f32.gmra.mrb[0].mxu0 %v2882
      %v3022 = vpop.f32.mrb[0].mxu0
      %v3023 = vadd.f32 0.0, %v3022
      %v3024 = vpop.f32.mrb[0].mxu0
      %3025 = vmatprep.mubr.f32.mxu0 0.0
      %3026 = vmatmul.mubr.f32.gmra.mrb[0].mxu0 %v2884
      %v3027 = vpop.f32.mrb[0].mxu0
      %v3028 = vadd.f32 0.0, %v3027
      %v3029 = vpop.f32.mrb[0].mxu0
      %3030 = vmatprep.mubr.f32.mxu0 0.0
      %3031 = vmatmul.mubr.f32.gmra.mrb[0].mxu0 %v2886
      %v3032 = vpop.f32.mrb[0].mxu0
      %v3033 = vadd.f32 0.0, %v3032
      %v3034 = vpop.f32.mrb[0].mxu0
      %3035 = vdwg.mxu0
      %v3036 = vadd.f32 %v2792, %v2958
      %v3037 = vadd.f32 %v2793, %v2963
      %v3038 = vadd.f32 %v2794, %v2968
      %v3039 = vadd.f32 %v2795, %v2973
      %v3040 = vadd.f32 %v2796, %v2978
      %v3041 = vadd.f32 %v2797, %v2983
      %v3042 = vadd.f32 %v2798, %v2988
      %v3043 = vadd.f32 %v2799, %v2993
      %v3044 = vadd.f32 %v2800, %v2998
      %v3045 = vadd.f32 %v2801, %v3003
      %v3046 = vadd.f32 %v2802, %v3008
      %v3047 = vadd.f32 %v2803, %v3013
      %v3048 = vadd.f32 %v2804, %v3018
      %v3049 = vadd.f32 %v2805, %v3023
      %v3050 = vadd.f32 %v2806, %v3028
      %v3051 = vadd.f32 %v2807, %v3033
      %v3052 = vld [vmem:[%s5] sm:$0x1]
      %v3054 = vlaneseq
      %v3055 = vshrl.u32 %v3054, 7
      %v3056 = vsub.s32 0, %v3055
      %v3057 = vrot.slane %v3052, %v3056
      %v3059 = vmul.f32 %v3036, %v3057
      %v3060 = vmul.f32 %v3037, %v3057
      %v3061 = vmul.f32 %v3038, %v3057
      %v3062 = vmul.f32 %v3039, %v3057
      %v3063 = vmul.f32 %v3040, %v3057
      %v3064 = vmul.f32 %v3041, %v3057
      %v3065 = vmul.f32 %v3042, %v3057
      %v3066 = vmul.f32 %v3043, %v3057
      %v3067 = vmul.f32 %v3044, %v3057
      %v3068 = vmul.f32 %v3045, %v3057
      %v3069 = vmul.f32 %v3046, %v3057
      %v3070 = vmul.f32 %v3047, %v3057
      %v3071 = vmul.f32 %v3048, %v3057
      %v3072 = vmul.f32 %v3049, %v3057
      %v3073 = vmul.f32 %v3050, %v3057
      %v3074 = vmul.f32 %v3051, %v3057
      %v3075 = vld [vmem:[%s6] sm:$0x1]
      %v3077 = vlaneseq
      %v3078 = vshrl.u32 %v3077, 7
      %v3079 = vsub.s32 0, %v3078
      %v3080 = vrot.slane %v3075, %v3079
      %v3082 = vadd.f32 %v3059, %v3080
      %v3083 = vadd.f32 %v3060, %v3080
      %v3084 = vadd.f32 %v3061, %v3080
      %v3085 = vadd.f32 %v3062, %v3080
      %v3086 = vadd.f32 %v3063, %v3080
      %v3087 = vadd.f32 %v3064, %v3080
      %v3088 = vadd.f32 %v3065, %v3080
      %v3089 = vadd.f32 %v3066, %v3080
      %v3090 = vadd.f32 %v3067, %v3080
      %v3091 = vadd.f32 %v3068, %v3080
      %v3092 = vadd.f32 %v3069, %v3080
      %v3093 = vadd.f32 %v3070, %v3080
      %v3094 = vadd.f32 %v3071, %v3080
      %v3095 = vadd.f32 %v3072, %v3080
      %v3096 = vadd.f32 %v3073, %v3080
      %v3097 = vadd.f32 %v3074, %v3080
      %vm3098 = vcmp.ge.f32.partialorder %v3082, 0.0
      %vm3099 = vcmp.ge.f32.partialorder %v3083, 0.0
      %vm3100 = vcmp.ge.f32.partialorder %v3084, 0.0
      %vm3101 = vcmp.ge.f32.partialorder %v3085, 0.0
      %vm3102 = vcmp.ge.f32.partialorder %v3086, 0.0
      %vm3103 = vcmp.ge.f32.partialorder %v3087, 0.0
      %vm3104 = vcmp.ge.f32.partialorder %v3088, 0.0
      %vm3105 = vcmp.ge.f32.partialorder %v3089, 0.0
      %vm3106 = vcmp.ge.f32.partialorder %v3090, 0.0
      %vm3107 = vcmp.ge.f32.partialorder %v3091, 0.0
      %vm3108 = vcmp.ge.f32.partialorder %v3092, 0.0
      %vm3109 = vcmp.ge.f32.partialorder %v3093, 0.0
      %vm3110 = vcmp.ge.f32.partialorder %v3094, 0.0
      %vm3111 = vcmp.ge.f32.partialorder %v3095, 0.0
      %vm3112 = vcmp.ge.f32.partialorder %v3096, 0.0
      %vm3113 = vcmp.ge.f32.partialorder %v3097, 0.0
      %v3114 = vmul.f32 %v3082, 0.1
      %v3115 = vmul.f32 %v3083, 0.1
      %v3116 = vmul.f32 %v3084, 0.1
      %v3117 = vmul.f32 %v3085, 0.1
      %v3118 = vmul.f32 %v3086, 0.1
      %v3119 = vmul.f32 %v3087, 0.1
      %v3120 = vmul.f32 %v3088, 0.1
      %v3121 = vmul.f32 %v3089, 0.1
      %v3122 = vmul.f32 %v3090, 0.1
      %v3123 = vmul.f32 %v3091, 0.1
      %v3124 = vmul.f32 %v3092, 0.1
      %v3125 = vmul.f32 %v3093, 0.1
      %v3126 = vmul.f32 %v3094, 0.1
      %v3127 = vmul.f32 %v3095, 0.1
      %v3128 = vmul.f32 %v3096, 0.1
      %v3129 = vmul.f32 %v3097, 0.1
      %v3130 = vsel %vm3098, %v3082, %v3114
      %v3131 = vsel %vm3099, %v3083, %v3115
      %v3132 = vsel %vm3100, %v3084, %v3116
      %v3133 = vsel %vm3101, %v3085, %v3117
      %v3134 = vsel %vm3102, %v3086, %v3118
      %v3135 = vsel %vm3103, %v3087, %v3119
      %v3136 = vsel %vm3104, %v3088, %v3120
      %v3137 = vsel %vm3105, %v3089, %v3121
      %v3138 = vsel %vm3106, %v3090, %v3122
      %v3139 = vsel %vm3107, %v3091, %v3123
      %v3140 = vsel %vm3108, %v3092, %v3124
      %v3141 = vsel %vm3109, %v3093, %v3125
      %v3142 = vsel %vm3110, %v3094, %v3126
      %v3143 = vsel %vm3111, %v3095, %v3127
      %v3144 = vsel %vm3112, %v3096, %v3128
      %v3145 = vsel %vm3113, %v3097, %v3129
      %v3146 = vadd.f32 %v3130, %v351
      %v3147 = vadd.f32 %v3131, %v352
      %v3148 = vadd.f32 %v3132, %v353
      %v3149 = vadd.f32 %v3133, %v354
      %v3150 = vadd.f32 %v3134, %v355
      %v3151 = vadd.f32 %v3135, %v356
      %v3152 = vadd.f32 %v3136, %v357
      %v3153 = vadd.f32 %v3137, %v358
      %v3154 = vadd.f32 %v3138, %v359
      %v3155 = vadd.f32 %v3139, %v360
      %v3156 = vadd.f32 %v3140, %v361
      %v3157 = vadd.f32 %v3141, %v362
      %v3158 = vadd.f32 %v3142, %v363
      %v3159 = vadd.f32 %v3143, %v364
      %v3160 = vadd.f32 %v3144, %v365
      %v3161 = vadd.f32 %v3145, %v366
      %3162 = vst.msk [vmem:[%s302] sm:$0xff] %vm367, %v3146
      %3163 = vst.msk [vmem:[%s302 + $0x8] sm:$0xff] %vm367, %v3147
      %3164 = vst.msk [vmem:[%s302 + $0x10] sm:$0xff] %vm367, %v3148
      %3165 = vst.msk [vmem:[%s302 + $0x18] sm:$0xff] %vm367, %v3149
      %3166 = vst.msk [vmem:[%s302 + $0x20] sm:$0xff] %vm367, %v3150
      %3167 = vst.msk [vmem:[%s302 + $0x28] sm:$0xff] %vm367, %v3151
      %3168 = vst.msk [vmem:[%s302 + $0x30] sm:$0xff] %vm367, %v3152
      %3169 = vst.msk [vmem:[%s302 + $0x38] sm:$0xff] %vm367, %v3153
      %3170 = vst.msk [vmem:[%s302 + $0x40] sm:$0xff] %vm367, %v3154
      %3171 = vst.msk [vmem:[%s302 + $0x48] sm:$0xff] %vm367, %v3155
      %3172 = vst.msk [vmem:[%s302 + $0x50] sm:$0xff] %vm367, %v3156
      %3173 = vst.msk [vmem:[%s302 + $0x58] sm:$0xff] %vm367, %v3157
      %3174 = vst.msk [vmem:[%s302 + $0x60] sm:$0xff] %vm367, %v3158
      %3175 = vst.msk [vmem:[%s302 + $0x68] sm:$0xff] %vm367, %v3159
      %3176 = vst.msk [vmem:[%s302 + $0x70] sm:$0xff] %vm367, %v3160
      %3177 = vst.msk [vmem:[%s302 + $0x78] sm:$0xff] %vm367, %v3161
      %s3178 = smul.u32 8, %s23
      %p3179 = scmp.lt.s32.totalorder %s22, 1
      %s3180 = scalar_select %p3179, %s22, 1
      %p3181 = scmp.lt.s32.totalorder %s3178, 15
      %s3182 = scalar_select %p3181, %s3178, 15
      %s3183 = smul.addr %s3182, 2
      %s3184 = smul.addr %s3180, 32
      %s3185 = sadd.s32 %s3183, %s3184
      %s3186 = smul.addr %s3185, 8
      %s3187 = scalar_lea.vmem %s7, %s3186
      // Predicated region
      $region57: #{tpu_custom_call.1} parent=47 // pred_check
        %p3188 = pneg %p202
      $region58: #{tpu_custom_call.1} parent=47 // pred_check_branch
        %3190 = sbr.rel (%p3188) target = $region60
      $region59: #{tpu_custom_call.1} parent=47 // pred_region
        %s3191 = smul.u32 8, %s23
      $region60: #{tpu_custom_call.1} parent=47 // pred_fallthru
        _
    $region48: #{tpu_custom_call.1} parent=5 // pred_fallthru
      _
    %p3192 = scmp.le.s32.totalorder 2, %s13
    // Predicated region
    $region61: #{tpu_custom_call.1} parent=5 // pred_check
      %p3193 = pneg %p3192
    $region62: #{tpu_custom_call.1} parent=5 // pred_check_branch
      %3195 = sbr.rel (%p3193) target = $region64
    $region63: #{tpu_custom_call.1} parent=5 // pred_region
      %s3196 = ssub.s32 %s13, 2
      // Predicated region
      $region65: #{tpu_custom_call.1} parent=63 // pred_check
        %p3197 = pneg %p208
      $region66: #{tpu_custom_call.1} parent=63 // pred_check_branch
        %3199 = sbr.rel (%p3197) target = $region68
      $region67: #{tpu_custom_call.1} parent=63 // pred_region
        %s3200 = smul.u32 8, %s25
        %p3201 = scmp.lt.s32.totalorder %s24, 1
        %s3202 = scalar_select %p3201, %s24, 1
        %p3203 = scmp.lt.s32.totalorder %s3200, 15
        %s3204 = scalar_select %p3203, %s3200, 15
        %s3205 = smul.addr %s3204, 2
        %s3206 = smul.addr %s3202, 32
        %s3207 = sadd.s32 %s3205, %s3206
        %s3208 = smul.addr %s3207, 8
        %s3209 = scalar_lea.vmem %s7, %s3208
      $region68: #{tpu_custom_call.1} parent=63 // pred_fallthru
        _
    $region64: #{tpu_custom_call.1} parent=5 // pred_fallthru
      _
  $region6: #{tpu_custom_call.1} parent=0 // loop_footer
    %s17 = sadd.s32 1, %s13
  $region7: #{tpu_custom_call.1} parent=0 // loop_footer_branch
    %12 = sbr.rel target = $region3
  $region8: #{tpu_custom_call.1} parent=0 // loop_exit
    _

</llo_original>
